<compile_context>
chip_gen: v7x
topology: tpu7x:2x2x1
jax: 0.10.0
libtpu: 0.0.40
codegen_flags: <defaults>
</compile_context>

<pallas_src>
import math
from functools import partial

import jax
import jax.numpy as jnp
from jax import lax
from jax.experimental import pallas as pl
from jax.experimental.pallas import tpu as pltpu


# ----------------------------------------------------------------------------
# Fused Pallas kernel: conv1 -> pool1 -> conv2 -> pool2 -> fc1 -> fc2
# ----------------------------------------------------------------------------
def _fused_cnn_kernel(pcol_ref, w1_ref, b1_ref, w2_ref, b2_ref,
                      wf1_ref, bf1_ref, wf2_ref, bf2_ref,
                      out_ref,
                      p1_ref, xt_ref, c2_ref, ps_ref,
                      *, N, K, C1, C2, Hp1, Wp1, H2u, W2u, Hp2, Wp2, HID):
    f32 = jnp.float32

    # ---- conv1 (+bias) with the 2x2 maxpool fused in -----------------------
    # pcol_ref[b] holds the im2col patches for pool offset b=(dh,dw); the pool
    # is an elementwise max over the four per-offset conv outputs.
    w1 = w1_ref[...]
    m = jnp.dot(pcol_ref[0], w1, preferred_element_type=f32)
    for b in range(1, 4):
        m = jnp.maximum(m, jnp.dot(pcol_ref[b], w1, preferred_element_type=f32))
    p1_ref[...] = m + b1_ref[...]          # [N*Hp1*Wp1, C1], rows = (n, h, w)

    # ---- conv2 (+bias): per-tap accumulation; im2col gathered in VMEM ------
    rows2 = N * H2u * W2u
    acc = jnp.zeros((rows2, C2), dtype=f32)
    for i in range(K):
        for j in range(K):
            # X_tap[n*H2u*W2u + ho*W2u + wo, :] = pooled1[n, ho + i, wo + j, :]
            for n in range(N):
                for ho in range(H2u):
                    dst = n * H2u * W2u + ho * W2u
                    src = n * Hp1 * Wp1 + (ho + i) * Wp1 + j
                    xt_ref[dst:dst + W2u, :] = p1_ref[src:src + W2u, :]
            t = i * K + j
            acc = acc + jnp.dot(xt_ref[...], w2_ref[t * C1:(t + 1) * C1, :],
                                preferred_element_type=f32)
    c2_ref[...] = acc + b2_ref[...]        # [N*H2u*W2u, C2], rows = (n, ho, wo)

    # ---- maxpool2 + NCHW flatten + fc1 (flatten order folded into wf1) -----
    a1 = jnp.zeros((N, HID), dtype=f32)
    for hp in range(Hp2):
        for wp in range(Wp2):
            s = hp * Wp2 + wp
            for n in range(N):
                r = n * H2u * W2u + (2 * hp) * W2u + 2 * wp
                v = jnp.maximum(
                    jnp.maximum(c2_ref[r:r + 1, :], c2_ref[r + 1:r + 2, :]),
                    jnp.maximum(c2_ref[r + W2u:r + W2u + 1, :],
                                c2_ref[r + W2u + 1:r + W2u + 2, :]))
                ps_ref[n:n + 1, :] = v
            a1 = a1 + jnp.dot(ps_ref[...], wf1_ref[s * C2:(s + 1) * C2, :],
                              preferred_element_type=f32)
    a1 = a1 + bf1_ref[...]

    # ---- fc2 ----------------------------------------------------------------
    out_ref[...] = (jnp.dot(a1, wf2_ref[...], preferred_element_type=f32)
                    + bf2_ref[...])


# ----------------------------------------------------------------------------
# Glue (runs under jit; layout plumbing only)
# ----------------------------------------------------------------------------
def _im2col_pool_blocks(x_nhwc, K):
    """im2col for a valid KxK conv followed by a 2x2/stride-2 maxpool.

    Returns [4, N*Hp*Wp, K*K*C]; block b=(dh,dw) holds, at row (n, h, w), the
    flattened (i, j, ci) input window of conv output pixel (2h+dh, 2w+dw).
    Only conv outputs actually consumed by the (floor-mode) pool are produced.
    """
    N, H, W, C = x_nhwc.shape
    Hc, Wc = H - K + 1, W - K + 1
    Hp, Wp = Hc // 2, Wc // 2
    blocks = []
    for dh in range(2):
        for dw in range(2):
            taps = []
            for i in range(K):
                for j in range(K):
                    taps.append(x_nhwc[:, dh + i: dh + i + 2 * Hp: 2,
                                          dw + j: dw + j + 2 * Wp: 2, :])
            pat = jnp.stack(taps, axis=3).reshape(N * Hp * Wp, K * K * C)
            blocks.append(pat)
    return jnp.stack(blocks, axis=0), Hp, Wp


def prepare_cnn_params(conv_params, fc_params, pool2_positions):
    """One-time parameter preprocessing (hoisted out of the forward pass)."""
    (w1, b1), (w2, b2) = conv_params
    (wf1, bf1), (wf2, bf2) = fc_params
    C1, Cin, K, _ = w1.shape
    C2 = w2.shape[0]
    HID = wf1.shape[0]
    S = pool2_positions                     # Hp2 * Wp2 spatial positions
    f32 = jnp.float32
    w1m = jnp.transpose(w1, (2, 3, 1, 0)).reshape(K * K * Cin, C1).astype(f32)
    w2m = jnp.transpose(w2, (2, 3, 1, 0)).reshape(K * K * C1, C2).astype(f32)
    # PyTorch flattens pooled2 as (c, h, w) -> c*S + s; the kernel accumulates
    # fc1 with spatial-major (s, c) ordering, so permute fc1's input dim here.
    wf1m = jnp.transpose(wf1.reshape(HID, C2, S), (2, 1, 0)).reshape(S * C2, HID).astype(f32)
    wf2m = jnp.transpose(wf2, (1, 0)).astype(f32)
    return dict(w1=w1m, b1=b1.reshape(1, -1).astype(f32),
                w2=w2m, b2=b2.reshape(1, -1).astype(f32),
                wf1=wf1m, bf1=bf1.reshape(1, -1).astype(f32),
                wf2=wf2m, bf2=bf2.reshape(1, -1).astype(f32))


def cnn_forward_pallas(x_nchw, params):
    """Replicates CNNNet.forward.  x_nchw: [N, C_in, H, W] (PyTorch layout)."""
    x = jnp.transpose(x_nchw, (0, 2, 3, 1)).astype(jnp.float32)   # NHWC
    N, H, W, Cin = x.shape
    K = math.isqrt(params["w1"].shape[0] // Cin)
    C1 = params["w1"].shape[1]
    C2 = params["w2"].shape[1]
    HID = params["wf1"].shape[1]
    NCLS = params["wf2"].shape[1]

    patches, Hp1, Wp1 = _im2col_pool_blocks(x, K)   # [4, N*Hp1*Wp1, K*K*Cin]
    H2, W2 = Hp1 - K + 1, Wp1 - K + 1               # conv2 output size (5x5)
    Hp2, Wp2 = H2 // 2, W2 // 2                     # pool2 output size (2x2)
    H2u, W2u = 2 * Hp2, 2 * Wp2                     # conv2 region the pool reads

    kernel = partial(_fused_cnn_kernel, N=N, K=K, C1=C1, C2=C2,
                     Hp1=Hp1, Wp1=Wp1, H2u=H2u, W2u=W2u,
                     Hp2=Hp2, Wp2=Wp2, HID=HID)

    return pl.pallas_call(
        kernel,
        out_shape=jax.ShapeDtypeStruct((N, NCLS), jnp.float32),
        grid=(1,),
        in_specs=[
            pl.BlockSpec((4, N * Hp1 * Wp1, K * K * Cin), lambda i: (0, 0, 0)),
            pl.BlockSpec((K * K * Cin, C1), lambda i: (0, 0)),
            pl.BlockSpec((1, C1), lambda i: (0, 0)),
            pl.BlockSpec((K * K * C1, C2), lambda i: (0, 0)),
            pl.BlockSpec((1, C2), lambda i: (0, 0)),
            pl.BlockSpec((Hp2 * Wp2 * C2, HID), lambda i: (0, 0)),
            pl.BlockSpec((1, HID), lambda i: (0, 0)),
            pl.BlockSpec((HID, NCLS), lambda i: (0, 0)),
            pl.BlockSpec((1, NCLS), lambda i: (0, 0)),
        ],
        out_specs=pl.BlockSpec((N, NCLS), lambda i: (0, 0)),
        scratch_shapes=[
            pltpu.VMEM((N * Hp1 * Wp1, C1), jnp.float32),   # pooled conv1
            pltpu.VMEM((N * H2u * W2u, C1), jnp.float32),   # conv2 per-tap operand
            pltpu.VMEM((N * H2u * W2u, C2), jnp.float32),   # conv2 output
            pltpu.VMEM((N, C2), jnp.float32),               # pooled2 slab (one position)
        ],
        compiler_params=pltpu.CompilerParams(
            dimension_semantics=("arbitrary",)),
    )(patches, params["w1"], params["b1"], params["w2"], params["b2"],
      params["wf1"], params["bf1"], params["wf2"], params["bf2"])


# ----------------------------------------------------------------------------
# Pure-JAX reference (for correctness checking only)
# ----------------------------------------------------------------------------
def cnn_forward_reference(x_nchw, conv_params, fc_params, fc_input_dim):
    y = x_nchw
    for (w, b) in conv_params:
        y = lax.conv_general_dilated(
            y, w, window_strides=(1, 1), padding="VALID",
            dimension_numbers=("NCHW", "OIHW", "NCHW"))
        y = y + b[None, :, None, None]
        y = lax.reduce_window(y, -jnp.inf, lax.max,
                              (1, 1, 2, 2), (1, 1, 2, 2), "VALID")
    N = y.shape[0]
    y = y.reshape(N, fc_input_dim)
    for (w, b) in fc_params:
        y = y @ w.T + b
    return y


# ----------------------------------------------------------------------------
# Main
# ----------------------------------------------------------------------------
if __name__ == "__main__":
    # Module hyper-parameters (small, consistent with CNNNet.__init__).
    batch = 2
    c_in, h_in, w_in = 4, 16, 16
    c_out = [8, 16]
    kernel_size = 3
    hidden_dim = [32]
    n_class = 10
    # dropout=0.0, stride=1, padding=0, dilation=1, kernel_size_maxPool=2

    # Derived output dims (same arithmetic as get_out_dim_conv).
    def out_dim(d, k, s):
        return math.floor((d - (k - 1) - 1) / s + 1)

    h, w = h_in, w_in
    h, w = out_dim(h, kernel_size, 1), out_dim(w, kernel_size, 1)   # conv1
    h, w = out_dim(h, 2, 2), out_dim(w, 2, 2)                       # pool1
    h, w = out_dim(h, kernel_size, 1), out_dim(w, kernel_size, 1)   # conv2
    h, w = out_dim(h, 2, 2), out_dim(w, 2, 2)                       # pool2
    fc_input_dim = h * w * c_out[-1]

    # Deterministic synthetic parameters.
    key = jax.random.PRNGKey(0)
    ks = jax.random.split(key, 16)
    conv_params = [
        (0.1 * jax.random.normal(ks[0], (c_out[0], c_in, kernel_size, kernel_size), jnp.float32),
         0.1 * jax.random.normal(ks[1], (c_out[0],), jnp.float32)),
        (0.1 * jax.random.normal(ks[2], (c_out[1], c_out[0], kernel_size, kernel_size), jnp.float32),
         0.1 * jax.random.normal(ks[3], (c_out[1],), jnp.float32)),
    ]
    fc_dims = [fc_input_dim] + hidden_dim + [n_class]
    fc_params = []
    for li in range(len(fc_dims) - 1):
        fc_params.append(
            (0.1 * jax.random.normal(ks[4 + 2 * li], (fc_dims[li + 1], fc_dims[li]), jnp.float32),
             0.1 * jax.random.normal(ks[5 + 2 * li], (fc_dims[li + 1],), jnp.float32)))

    # Example input (PyTorch NCHW convention).
    x = jax.random.normal(ks[15], (batch, c_in, h_in, w_in), jnp.float32)

    # One-time parameter prep + jitted fused forward.
    params = prepare_cnn_params(conv_params, fc_params,
                                pool2_positions=h * w)
    forward = jax.jit(cnn_forward_pallas)

    out = forward(x, params)
    out = jax.block_until_ready(out)
    assert out.shape == (batch, n_class), out.shape

    ref = cnn_forward_reference(x, conv_params, fc_params, fc_input_dim)
    assert jnp.allclose(out, ref, rtol=1e-3, atol=1e-3), (
        float(jnp.max(jnp.abs(out - ref))))

    print("KERNEL_OK")
</pallas_src>

<mosaic_0001>
module attributes {stable_mosaic.version = 11 : i64} {
  func.func @_fused_cnn_kernel(%arg0: i32, %arg1: memref<4x98x36xf32, #tpu.memory_space<vmem>>, %arg2: memref<36x8xf32, #tpu.memory_space<vmem>>, %arg3: memref<1x8xf32, #tpu.memory_space<vmem>>, %arg4: memref<72x16xf32, #tpu.memory_space<vmem>>, %arg5: memref<1x16xf32, #tpu.memory_space<vmem>>, %arg6: memref<64x32xf32, #tpu.memory_space<vmem>>, %arg7: memref<1x32xf32, #tpu.memory_space<vmem>>, %arg8: memref<32x10xf32, #tpu.memory_space<vmem>>, %arg9: memref<1x10xf32, #tpu.memory_space<vmem>>, %arg10: memref<2x10xf32, #tpu.memory_space<vmem>>, %arg11: memref<98x8xf32, #tpu.memory_space<vmem>>, %arg12: memref<32x8xf32, #tpu.memory_space<vmem>>, %arg13: memref<32x16xf32, #tpu.memory_space<vmem>>, %arg14: memref<2x16xf32, #tpu.memory_space<vmem>>) attributes {dimension_semantics = [#tpu.dimension_semantics<arbitrary>], iteration_bounds = array<i64: 1>, scalar_prefetch = 0 : i64, scratch_operands = 4 : i64, tpu.core_type = #tpu.core_type<tc>, window_params = [{pipeline_mode = #tpu.pipeline_mode<synchronous>, transform_indices = @transform_0, window_bounds = array<i64: 4, 98, 36>}, {pipeline_mode = #tpu.pipeline_mode<synchronous>, transform_indices = @transform_1, window_bounds = array<i64: 36, 8>}, {pipeline_mode = #tpu.pipeline_mode<synchronous>, transform_indices = @transform_2, window_bounds = array<i64: 1, 8>}, {pipeline_mode = #tpu.pipeline_mode<synchronous>, transform_indices = @transform_3, window_bounds = array<i64: 72, 16>}, {pipeline_mode = #tpu.pipeline_mode<synchronous>, transform_indices = @transform_4, window_bounds = array<i64: 1, 16>}, {pipeline_mode = #tpu.pipeline_mode<synchronous>, transform_indices = @transform_5, window_bounds = array<i64: 64, 32>}, {pipeline_mode = #tpu.pipeline_mode<synchronous>, transform_indices = @transform_6, window_bounds = array<i64: 1, 32>}, {pipeline_mode = #tpu.pipeline_mode<synchronous>, transform_indices = @transform_7, window_bounds = array<i64: 32, 10>}, {pipeline_mode = #tpu.pipeline_mode<synchronous>, transform_indices = @transform_8, window_bounds = array<i64: 1, 10>}, {pipeline_mode = #tpu.pipeline_mode<synchronous>, transform_indices = @transform_9, window_bounds = array<i64: 2, 10>}]} {
    %c0 = arith.constant 0 : index
    %c0_0 = arith.constant 0 : index
    %0 = vector.load %arg2[%c0, %c0_0] : memref<36x8xf32, #tpu.memory_space<vmem>>, vector<36x8xf32>
    %c0_1 = arith.constant 0 : index
    %c0_2 = arith.constant 0 : index
    %c0_3 = arith.constant 0 : index
    %1 = vector.load %arg1[%c0_1, %c0_2, %c0_3] : memref<4x98x36xf32, #tpu.memory_space<vmem>>, vector<1x98x36xf32>
    %2 = vector.shape_cast %1 : vector<1x98x36xf32> to vector<98x36xf32>
    %cst = arith.constant dense<0.000000e+00> : vector<98x8xf32>
    %3 = tpu.matmul %2, %0, %cst {dimension_numbers = #tpu.dot_dimension_numbers<[1], [0], [0], [1], [0, 0, 1, 1], [], []>} : vector<98x36xf32>, vector<36x8xf32>, vector<98x8xf32> -> vector<98x8xf32>
    %c1 = arith.constant 1 : index
    %c0_4 = arith.constant 0 : index
    %c0_5 = arith.constant 0 : index
    %4 = vector.load %arg1[%c1, %c0_4, %c0_5] : memref<4x98x36xf32, #tpu.memory_space<vmem>>, vector<1x98x36xf32>
    %5 = vector.shape_cast %4 : vector<1x98x36xf32> to vector<98x36xf32>
    %cst_6 = arith.constant dense<0.000000e+00> : vector<98x8xf32>
    %6 = tpu.matmul %5, %0, %cst_6 {dimension_numbers = #tpu.dot_dimension_numbers<[1], [0], [0], [1], [0, 0, 1, 1], [], []>} : vector<98x36xf32>, vector<36x8xf32>, vector<98x8xf32> -> vector<98x8xf32>
    %7 = arith.maximumf %3, %6 : vector<98x8xf32>
    %c2 = arith.constant 2 : index
    %c0_7 = arith.constant 0 : index
    %c0_8 = arith.constant 0 : index
    %8 = vector.load %arg1[%c2, %c0_7, %c0_8] : memref<4x98x36xf32, #tpu.memory_space<vmem>>, vector<1x98x36xf32>
    %9 = vector.shape_cast %8 : vector<1x98x36xf32> to vector<98x36xf32>
    %cst_9 = arith.constant dense<0.000000e+00> : vector<98x8xf32>
    %10 = tpu.matmul %9, %0, %cst_9 {dimension_numbers = #tpu.dot_dimension_numbers<[1], [0], [0], [1], [0, 0, 1, 1], [], []>} : vector<98x36xf32>, vector<36x8xf32>, vector<98x8xf32> -> vector<98x8xf32>
    %11 = arith.maximumf %7, %10 : vector<98x8xf32>
    %c3 = arith.constant 3 : index
    %c0_10 = arith.constant 0 : index
    %c0_11 = arith.constant 0 : index
    %12 = vector.load %arg1[%c3, %c0_10, %c0_11] : memref<4x98x36xf32, #tpu.memory_space<vmem>>, vector<1x98x36xf32>
    %13 = vector.shape_cast %12 : vector<1x98x36xf32> to vector<98x36xf32>
    %cst_12 = arith.constant dense<0.000000e+00> : vector<98x8xf32>
    %14 = tpu.matmul %13, %0, %cst_12 {dimension_numbers = #tpu.dot_dimension_numbers<[1], [0], [0], [1], [0, 0, 1, 1], [], []>} : vector<98x36xf32>, vector<36x8xf32>, vector<98x8xf32> -> vector<98x8xf32>
    %15 = arith.maximumf %11, %14 : vector<98x8xf32>
    %c0_13 = arith.constant 0 : index
    %c0_14 = arith.constant 0 : index
    %16 = vector.load %arg3[%c0_13, %c0_14] : memref<1x8xf32, #tpu.memory_space<vmem>>, vector<1x8xf32>
    %17 = vector.broadcast %16 : vector<1x8xf32> to vector<98x8xf32>
    %18 = arith.addf %15, %17 : vector<98x8xf32>
    %c0_15 = arith.constant 0 : index
    %c0_16 = arith.constant 0 : index
    %19 = vector.load %arg11[%c0_15, %c0_16] : memref<98x8xf32, #tpu.memory_space<vmem>>, vector<98x8xf32>
    tpu.vector_store %arg11[%c0_15, %c0_16], %18 {strides = array<i32>} : memref<98x8xf32, #tpu.memory_space<vmem>>, vector<98x8xf32>,
    %cst_17 = arith.constant 0.000000e+00 : f32
    %20 = vector.broadcast %cst_17 : f32 to vector<32x16xf32>
    %c0_18 = arith.constant 0 : index
    %c0_19 = arith.constant 0 : index
    %21 = vector.load %arg11[%c0_18, %c0_19] : memref<98x8xf32, #tpu.memory_space<vmem>>, vector<4x8xf32>
    %c0_20 = arith.constant 0 : index
    %c0_21 = arith.constant 0 : index
    %22 = vector.load %arg12[%c0_20, %c0_21] : memref<32x8xf32, #tpu.memory_space<vmem>>, vector<4x8xf32>
    tpu.vector_store %arg12[%c0_20, %c0_21], %21 {strides = array<i32>} : memref<32x8xf32, #tpu.memory_space<vmem>>, vector<4x8xf32>,
    %c7 = arith.constant 7 : index
    %c0_22 = arith.constant 0 : index
    %23 = vector.load %arg11[%c7, %c0_22] : memref<98x8xf32, #tpu.memory_space<vmem>>, vector<4x8xf32>
    %c4 = arith.constant 4 : index
    %c0_23 = arith.constant 0 : index
    %24 = vector.load %arg12[%c4, %c0_23] : memref<32x8xf32, #tpu.memory_space<vmem>>, vector<4x8xf32>
    tpu.vector_store %arg12[%c4, %c0_23], %23 {strides = array<i32>} : memref<32x8xf32, #tpu.memory_space<vmem>>, vector<4x8xf32>,
    %c14 = arith.constant 14 : index
    %c0_24 = arith.constant 0 : index
    %25 = vector.load %arg11[%c14, %c0_24] : memref<98x8xf32, #tpu.memory_space<vmem>>, vector<4x8xf32>
    %c8 = arith.constant 8 : index
    %c0_25 = arith.constant 0 : index
    %26 = vector.load %arg12[%c8, %c0_25] : memref<32x8xf32, #tpu.memory_space<vmem>>, vector<4x8xf32>
    tpu.vector_store %arg12[%c8, %c0_25], %25 {strides = array<i32>} : memref<32x8xf32, #tpu.memory_space<vmem>>, vector<4x8xf32>,
    %c21 = arith.constant 21 : index
    %c0_26 = arith.constant 0 : index
    %27 = vector.load %arg11[%c21, %c0_26] : memref<98x8xf32, #tpu.memory_space<vmem>>, vector<4x8xf32>
    %c12 = arith.constant 12 : index
    %c0_27 = arith.constant 0 : index
    %28 = vector.load %arg12[%c12, %c0_27] : memref<32x8xf32, #tpu.memory_space<vmem>>, vector<4x8xf32>
    tpu.vector_store %arg12[%c12, %c0_27], %27 {strides = array<i32>} : memref<32x8xf32, #tpu.memory_space<vmem>>, vector<4x8xf32>,
    %c49 = arith.constant 49 : index
    %c0_28 = arith.constant 0 : index
    %29 = vector.load %arg11[%c49, %c0_28] : memref<98x8xf32, #tpu.memory_space<vmem>>, vector<4x8xf32>
    %c16 = arith.constant 16 : index
    %c0_29 = arith.constant 0 : index
    %30 = vector.load %arg12[%c16, %c0_29] : memref<32x8xf32, #tpu.memory_space<vmem>>, vector<4x8xf32>
    tpu.vector_store %arg12[%c16, %c0_29], %29 {strides = array<i32>} : memref<32x8xf32, #tpu.memory_space<vmem>>, vector<4x8xf32>,
    %c56 = arith.constant 56 : index
    %c0_30 = arith.constant 0 : index
    %31 = vector.load %arg11[%c56, %c0_30] : memref<98x8xf32, #tpu.memory_space<vmem>>, vector<4x8xf32>
    %c20 = arith.constant 20 : index
    %c0_31 = arith.constant 0 : index
    %32 = vector.load %arg12[%c20, %c0_31] : memref<32x8xf32, #tpu.memory_space<vmem>>, vector<4x8xf32>
    tpu.vector_store %arg12[%c20, %c0_31], %31 {strides = array<i32>} : memref<32x8xf32, #tpu.memory_space<vmem>>, vector<4x8xf32>,
    %c63 = arith.constant 63 : index
    %c0_32 = arith.constant 0 : index
    %33 = vector.load %arg11[%c63, %c0_32] : memref<98x8xf32, #tpu.memory_space<vmem>>, vector<4x8xf32>
    %c24 = arith.constant 24 : index
    %c0_33 = arith.constant 0 : index
    %34 = vector.load %arg12[%c24, %c0_33] : memref<32x8xf32, #tpu.memory_space<vmem>>, vector<4x8xf32>
    tpu.vector_store %arg12[%c24, %c0_33], %33 {strides = array<i32>} : memref<32x8xf32, #tpu.memory_space<vmem>>, vector<4x8xf32>,
    %c70 = arith.constant 70 : index
    %c0_34 = arith.constant 0 : index
    %35 = vector.load %arg11[%c70, %c0_34] : memref<98x8xf32, #tpu.memory_space<vmem>>, vector<4x8xf32>
    %c28 = arith.constant 28 : index
    %c0_35 = arith.constant 0 : index
    %36 = vector.load %arg12[%c28, %c0_35] : memref<32x8xf32, #tpu.memory_space<vmem>>, vector<4x8xf32>
    tpu.vector_store %arg12[%c28, %c0_35], %35 {strides = array<i32>} : memref<32x8xf32, #tpu.memory_space<vmem>>, vector<4x8xf32>,
    %c0_36 = arith.constant 0 : index
    %c0_37 = arith.constant 0 : index
    %37 = vector.load %arg12[%c0_36, %c0_37] : memref<32x8xf32, #tpu.memory_space<vmem>>, vector<32x8xf32>
    %c0_38 = arith.constant 0 : index
    %c0_39 = arith.constant 0 : index
    %38 = vector.load %arg4[%c0_38, %c0_39] : memref<72x16xf32, #tpu.memory_space<vmem>>, vector<8x16xf32>
    %cst_40 = arith.constant dense<0.000000e+00> : vector<32x16xf32>
    %39 = tpu.matmul %37, %38, %cst_40 {dimension_numbers = #tpu.dot_dimension_numbers<[1], [0], [0], [1], [0, 0, 1, 1], [], []>} : vector<32x8xf32>, vector<8x16xf32>, vector<32x16xf32> -> vector<32x16xf32>
    %40 = arith.addf %20, %39 : vector<32x16xf32>
    %c1_41 = arith.constant 1 : index
    %c0_42 = arith.constant 0 : index
    %41 = vector.load %arg11[%c1_41, %c0_42] : memref<98x8xf32, #tpu.memory_space<vmem>>, vector<4x8xf32>
    %c0_43 = arith.constant 0 : index
    %c0_44 = arith.constant 0 : index
    %42 = vector.load %arg12[%c0_43, %c0_44] : memref<32x8xf32, #tpu.memory_space<vmem>>, vector<4x8xf32>
    tpu.vector_store %arg12[%c0_43, %c0_44], %41 {strides = array<i32>} : memref<32x8xf32, #tpu.memory_space<vmem>>, vector<4x8xf32>,
    %c8_45 = arith.constant 8 : index
    %c0_46 = arith.constant 0 : index
    %43 = vector.load %arg11[%c8_45, %c0_46] : memref<98x8xf32, #tpu.memory_space<vmem>>, vector<4x8xf32>
    %c4_47 = arith.constant 4 : index
    %c0_48 = arith.constant 0 : index
    %44 = vector.load %arg12[%c4_47, %c0_48] : memref<32x8xf32, #tpu.memory_space<vmem>>, vector<4x8xf32>
    tpu.vector_store %arg12[%c4_47, %c0_48], %43 {strides = array<i32>} : memref<32x8xf32, #tpu.memory_space<vmem>>, vector<4x8xf32>,
    %c15 = arith.constant 15 : index
    %c0_49 = arith.constant 0 : index
    %45 = vector.load %arg11[%c15, %c0_49] : memref<98x8xf32, #tpu.memory_space<vmem>>, vector<4x8xf32>
    %c8_50 = arith.constant 8 : index
    %c0_51 = arith.constant 0 : index
    %46 = vector.load %arg12[%c8_50, %c0_51] : memref<32x8xf32, #tpu.memory_space<vmem>>, vector<4x8xf32>
    tpu.vector_store %arg12[%c8_50, %c0_51], %45 {strides = array<i32>} : memref<32x8xf32, #tpu.memory_space<vmem>>, vector<4x8xf32>,
    %c22 = arith.constant 22 : index
    %c0_52 = arith.constant 0 : index
    %47 = vector.load %arg11[%c22, %c0_52] : memref<98x8xf32, #tpu.memory_space<vmem>>, vector<4x8xf32>
    %c12_53 = arith.constant 12 : index
    %c0_54 = arith.constant 0 : index
    %48 = vector.load %arg12[%c12_53, %c0_54] : memref<32x8xf32, #tpu.memory_space<vmem>>, vector<4x8xf32>
    tpu.vector_store %arg12[%c12_53, %c0_54], %47 {strides = array<i32>} : memref<32x8xf32, #tpu.memory_space<vmem>>, vector<4x8xf32>,
    %c50 = arith.constant 50 : index
    %c0_55 = arith.constant 0 : index
    %49 = vector.load %arg11[%c50, %c0_55] : memref<98x8xf32, #tpu.memory_space<vmem>>, vector<4x8xf32>
    %c16_56 = arith.constant 16 : index
    %c0_57 = arith.constant 0 : index
    %50 = vector.load %arg12[%c16_56, %c0_57] : memref<32x8xf32, #tpu.memory_space<vmem>>, vector<4x8xf32>
    tpu.vector_store %arg12[%c16_56, %c0_57], %49 {strides = array<i32>} : memref<32x8xf32, #tpu.memory_space<vmem>>, vector<4x8xf32>,
    %c57 = arith.constant 57 : index
    %c0_58 = arith.constant 0 : index
    %51 = vector.load %arg11[%c57, %c0_58] : memref<98x8xf32, #tpu.memory_space<vmem>>, vector<4x8xf32>
    %c20_59 = arith.constant 20 : index
    %c0_60 = arith.constant 0 : index
    %52 = vector.load %arg12[%c20_59, %c0_60] : memref<32x8xf32, #tpu.memory_space<vmem>>, vector<4x8xf32>
    tpu.vector_store %arg12[%c20_59, %c0_60], %51 {strides = array<i32>} : memref<32x8xf32, #tpu.memory_space<vmem>>, vector<4x8xf32>,
    %c64 = arith.constant 64 : index
    %c0_61 = arith.constant 0 : index
    %53 = vector.load %arg11[%c64, %c0_61] : memref<98x8xf32, #tpu.memory_space<vmem>>, vector<4x8xf32>
    %c24_62 = arith.constant 24 : index
    %c0_63 = arith.constant 0 : index
    %54 = vector.load %arg12[%c24_62, %c0_63] : memref<32x8xf32, #tpu.memory_space<vmem>>, vector<4x8xf32>
    tpu.vector_store %arg12[%c24_62, %c0_63], %53 {strides = array<i32>} : memref<32x8xf32, #tpu.memory_space<vmem>>, vector<4x8xf32>,
    %c71 = arith.constant 71 : index
    %c0_64 = arith.constant 0 : index
    %55 = vector.load %arg11[%c71, %c0_64] : memref<98x8xf32, #tpu.memory_space<vmem>>, vector<4x8xf32>
    %c28_65 = arith.constant 28 : index
    %c0_66 = arith.constant 0 : index
    %56 = vector.load %arg12[%c28_65, %c0_66] : memref<32x8xf32, #tpu.memory_space<vmem>>, vector<4x8xf32>
    tpu.vector_store %arg12[%c28_65, %c0_66], %55 {strides = array<i32>} : memref<32x8xf32, #tpu.memory_space<vmem>>, vector<4x8xf32>,
    %c0_67 = arith.constant 0 : index
    %c0_68 = arith.constant 0 : index
    %57 = vector.load %arg12[%c0_67, %c0_68] : memref<32x8xf32, #tpu.memory_space<vmem>>, vector<32x8xf32>
    %c8_69 = arith.constant 8 : index
    %c0_70 = arith.constant 0 : index
    %58 = vector.load %arg4[%c8_69, %c0_70] : memref<72x16xf32, #tpu.memory_space<vmem>>, vector<8x16xf32>
    %cst_71 = arith.constant dense<0.000000e+00> : vector<32x16xf32>
    %59 = tpu.matmul %57, %58, %cst_71 {dimension_numbers = #tpu.dot_dimension_numbers<[1], [0], [0], [1], [0, 0, 1, 1], [], []>} : vector<32x8xf32>, vector<8x16xf32>, vector<32x16xf32> -> vector<32x16xf32>
    %60 = arith.addf %40, %59 : vector<32x16xf32>
    %c2_72 = arith.constant 2 : index
    %c0_73 = arith.constant 0 : index
    %61 = vector.load %arg11[%c2_72, %c0_73] : memref<98x8xf32, #tpu.memory_space<vmem>>, vector<4x8xf32>
    %c0_74 = arith.constant 0 : index
    %c0_75 = arith.constant 0 : index
    %62 = vector.load %arg12[%c0_74, %c0_75] : memref<32x8xf32, #tpu.memory_space<vmem>>, vector<4x8xf32>
    tpu.vector_store %arg12[%c0_74, %c0_75], %61 {strides = array<i32>} : memref<32x8xf32, #tpu.memory_space<vmem>>, vector<4x8xf32>,
    %c9 = arith.constant 9 : index
    %c0_76 = arith.constant 0 : index
    %63 = vector.load %arg11[%c9, %c0_76] : memref<98x8xf32, #tpu.memory_space<vmem>>, vector<4x8xf32>
    %c4_77 = arith.constant 4 : index
    %c0_78 = arith.constant 0 : index
    %64 = vector.load %arg12[%c4_77, %c0_78] : memref<32x8xf32, #tpu.memory_space<vmem>>, vector<4x8xf32>
    tpu.vector_store %arg12[%c4_77, %c0_78], %63 {strides = array<i32>} : memref<32x8xf32, #tpu.memory_space<vmem>>, vector<4x8xf32>,
    %c16_79 = arith.constant 16 : index
    %c0_80 = arith.constant 0 : index
    %65 = vector.load %arg11[%c16_79, %c0_80] : memref<98x8xf32, #tpu.memory_space<vmem>>, vector<4x8xf32>
    %c8_81 = arith.constant 8 : index
    %c0_82 = arith.constant 0 : index
    %66 = vector.load %arg12[%c8_81, %c0_82] : memref<32x8xf32, #tpu.memory_space<vmem>>, vector<4x8xf32>
    tpu.vector_store %arg12[%c8_81, %c0_82], %65 {strides = array<i32>} : memref<32x8xf32, #tpu.memory_space<vmem>>, vector<4x8xf32>,
    %c23 = arith.constant 23 : index
    %c0_83 = arith.constant 0 : index
    %67 = vector.load %arg11[%c23, %c0_83] : memref<98x8xf32, #tpu.memory_space<vmem>>, vector<4x8xf32>
    %c12_84 = arith.constant 12 : index
    %c0_85 = arith.constant 0 : index
    %68 = vector.load %arg12[%c12_84, %c0_85] : memref<32x8xf32, #tpu.memory_space<vmem>>, vector<4x8xf32>
    tpu.vector_store %arg12[%c12_84, %c0_85], %67 {strides = array<i32>} : memref<32x8xf32, #tpu.memory_space<vmem>>, vector<4x8xf32>,
    %c51 = arith.constant 51 : index
    %c0_86 = arith.constant 0 : index
    %69 = vector.load %arg11[%c51, %c0_86] : memref<98x8xf32, #tpu.memory_space<vmem>>, vector<4x8xf32>
    %c16_87 = arith.constant 16 : index
    %c0_88 = arith.constant 0 : index
    %70 = vector.load %arg12[%c16_87, %c0_88] : memref<32x8xf32, #tpu.memory_space<vmem>>, vector<4x8xf32>
    tpu.vector_store %arg12[%c16_87, %c0_88], %69 {strides = array<i32>} : memref<32x8xf32, #tpu.memory_space<vmem>>, vector<4x8xf32>,
    %c58 = arith.constant 58 : index
    %c0_89 = arith.constant 0 : index
    %71 = vector.load %arg11[%c58, %c0_89] : memref<98x8xf32, #tpu.memory_space<vmem>>, vector<4x8xf32>
    %c20_90 = arith.constant 20 : index
    %c0_91 = arith.constant 0 : index
    %72 = vector.load %arg12[%c20_90, %c0_91] : memref<32x8xf32, #tpu.memory_space<vmem>>, vector<4x8xf32>
    tpu.vector_store %arg12[%c20_90, %c0_91], %71 {strides = array<i32>} : memref<32x8xf32, #tpu.memory_space<vmem>>, vector<4x8xf32>,
    %c65 = arith.constant 65 : index
    %c0_92 = arith.constant 0 : index
    %73 = vector.load %arg11[%c65, %c0_92] : memref<98x8xf32, #tpu.memory_space<vmem>>, vector<4x8xf32>
    %c24_93 = arith.constant 24 : index
    %c0_94 = arith.constant 0 : index
    %74 = vector.load %arg12[%c24_93, %c0_94] : memref<32x8xf32, #tpu.memory_space<vmem>>, vector<4x8xf32>
    tpu.vector_store %arg12[%c24_93, %c0_94], %73 {strides = array<i32>} : memref<32x8xf32, #tpu.memory_space<vmem>>, vector<4x8xf32>,
    %c72 = arith.constant 72 : index
    %c0_95 = arith.constant 0 : index
    %75 = vector.load %arg11[%c72, %c0_95] : memref<98x8xf32, #tpu.memory_space<vmem>>, vector<4x8xf32>
    %c28_96 = arith.constant 28 : index
    %c0_97 = arith.constant 0 : index
    %76 = vector.load %arg12[%c28_96, %c0_97] : memref<32x8xf32, #tpu.memory_space<vmem>>, vector<4x8xf32>
    tpu.vector_store %arg12[%c28_96, %c0_97], %75 {strides = array<i32>} : memref<32x8xf32, #tpu.memory_space<vmem>>, vector<4x8xf32>,
    %c0_98 = arith.constant 0 : index
    %c0_99 = arith.constant 0 : index
    %77 = vector.load %arg12[%c0_98, %c0_99] : memref<32x8xf32, #tpu.memory_space<vmem>>, vector<32x8xf32>
    %c16_100 = arith.constant 16 : index
    %c0_101 = arith.constant 0 : index
    %78 = vector.load %arg4[%c16_100, %c0_101] : memref<72x16xf32, #tpu.memory_space<vmem>>, vector<8x16xf32>
    %cst_102 = arith.constant dense<0.000000e+00> : vector<32x16xf32>
    %79 = tpu.matmul %77, %78, %cst_102 {dimension_numbers = #tpu.dot_dimension_numbers<[1], [0], [0], [1], [0, 0, 1, 1], [], []>} : vector<32x8xf32>, vector<8x16xf32>, vector<32x16xf32> -> vector<32x16xf32>
    %80 = arith.addf %60, %79 : vector<32x16xf32>
    %c7_103 = arith.constant 7 : index
    %c0_104 = arith.constant 0 : index
    %81 = vector.load %arg11[%c7_103, %c0_104] : memref<98x8xf32, #tpu.memory_space<vmem>>, vector<4x8xf32>
    %c0_105 = arith.constant 0 : index
    %c0_106 = arith.constant 0 : index
    %82 = vector.load %arg12[%c0_105, %c0_106] : memref<32x8xf32, #tpu.memory_space<vmem>>, vector<4x8xf32>
    tpu.vector_store %arg12[%c0_105, %c0_106], %81 {strides = array<i32>} : memref<32x8xf32, #tpu.memory_space<vmem>>, vector<4x8xf32>,
    %c14_107 = arith.constant 14 : index
    %c0_108 = arith.constant 0 : index
    %83 = vector.load %arg11[%c14_107, %c0_108] : memref<98x8xf32, #tpu.memory_space<vmem>>, vector<4x8xf32>
    %c4_109 = arith.constant 4 : index
    %c0_110 = arith.constant 0 : index
    %84 = vector.load %arg12[%c4_109, %c0_110] : memref<32x8xf32, #tpu.memory_space<vmem>>, vector<4x8xf32>
    tpu.vector_store %arg12[%c4_109, %c0_110], %83 {strides = array<i32>} : memref<32x8xf32, #tpu.memory_space<vmem>>, vector<4x8xf32>,
    %c21_111 = arith.constant 21 : index
    %c0_112 = arith.constant 0 : index
    %85 = vector.load %arg11[%c21_111, %c0_112] : memref<98x8xf32, #tpu.memory_space<vmem>>, vector<4x8xf32>
    %c8_113 = arith.constant 8 : index
    %c0_114 = arith.constant 0 : index
    %86 = vector.load %arg12[%c8_113, %c0_114] : memref<32x8xf32, #tpu.memory_space<vmem>>, vector<4x8xf32>
    tpu.vector_store %arg12[%c8_113, %c0_114], %85 {strides = array<i32>} : memref<32x8xf32, #tpu.memory_space<vmem>>, vector<4x8xf32>,
    %c28_115 = arith.constant 28 : index
    %c0_116 = arith.constant 0 : index
    %87 = vector.load %arg11[%c28_115, %c0_116] : memref<98x8xf32, #tpu.memory_space<vmem>>, vector<4x8xf32>
    %c12_117 = arith.constant 12 : index
    %c0_118 = arith.constant 0 : index
    %88 = vector.load %arg12[%c12_117, %c0_118] : memref<32x8xf32, #tpu.memory_space<vmem>>, vector<4x8xf32>
    tpu.vector_store %arg12[%c12_117, %c0_118], %87 {strides = array<i32>} : memref<32x8xf32, #tpu.memory_space<vmem>>, vector<4x8xf32>,
    %c56_119 = arith.constant 56 : index
    %c0_120 = arith.constant 0 : index
    %89 = vector.load %arg11[%c56_119, %c0_120] : memref<98x8xf32, #tpu.memory_space<vmem>>, vector<4x8xf32>
    %c16_121 = arith.constant 16 : index
    %c0_122 = arith.constant 0 : index
    %90 = vector.load %arg12[%c16_121, %c0_122] : memref<32x8xf32, #tpu.memory_space<vmem>>, vector<4x8xf32>
    tpu.vector_store %arg12[%c16_121, %c0_122], %89 {strides = array<i32>} : memref<32x8xf32, #tpu.memory_space<vmem>>, vector<4x8xf32>,
    %c63_123 = arith.constant 63 : index
    %c0_124 = arith.constant 0 : index
    %91 = vector.load %arg11[%c63_123, %c0_124] : memref<98x8xf32, #tpu.memory_space<vmem>>, vector<4x8xf32>
    %c20_125 = arith.constant 20 : index
    %c0_126 = arith.constant 0 : index
    %92 = vector.load %arg12[%c20_125, %c0_126] : memref<32x8xf32, #tpu.memory_space<vmem>>, vector<4x8xf32>
    tpu.vector_store %arg12[%c20_125, %c0_126], %91 {strides = array<i32>} : memref<32x8xf32, #tpu.memory_space<vmem>>, vector<4x8xf32>,
    %c70_127 = arith.constant 70 : index
    %c0_128 = arith.constant 0 : index
    %93 = vector.load %arg11[%c70_127, %c0_128] : memref<98x8xf32, #tpu.memory_space<vmem>>, vector<4x8xf32>
    %c24_129 = arith.constant 24 : index
    %c0_130 = arith.constant 0 : index
    %94 = vector.load %arg12[%c24_129, %c0_130] : memref<32x8xf32, #tpu.memory_space<vmem>>, vector<4x8xf32>
    tpu.vector_store %arg12[%c24_129, %c0_130], %93 {strides = array<i32>} : memref<32x8xf32, #tpu.memory_space<vmem>>, vector<4x8xf32>,
    %c77 = arith.constant 77 : index
    %c0_131 = arith.constant 0 : index
    %95 = vector.load %arg11[%c77, %c0_131] : memref<98x8xf32, #tpu.memory_space<vmem>>, vector<4x8xf32>
    %c28_132 = arith.constant 28 : index
    %c0_133 = arith.constant 0 : index
    %96 = vector.load %arg12[%c28_132, %c0_133] : memref<32x8xf32, #tpu.memory_space<vmem>>, vector<4x8xf32>
    tpu.vector_store %arg12[%c28_132, %c0_133], %95 {strides = array<i32>} : memref<32x8xf32, #tpu.memory_space<vmem>>, vector<4x8xf32>,
    %c0_134 = arith.constant 0 : index
    %c0_135 = arith.constant 0 : index
    %97 = vector.load %arg12[%c0_134, %c0_135] : memref<32x8xf32, #tpu.memory_space<vmem>>, vector<32x8xf32>
    %c24_136 = arith.constant 24 : index
    %c0_137 = arith.constant 0 : index
    %98 = vector.load %arg4[%c24_136, %c0_137] : memref<72x16xf32, #tpu.memory_space<vmem>>, vector<8x16xf32>
    %cst_138 = arith.constant dense<0.000000e+00> : vector<32x16xf32>
    %99 = tpu.matmul %97, %98, %cst_138 {dimension_numbers = #tpu.dot_dimension_numbers<[1], [0], [0], [1], [0, 0, 1, 1], [], []>} : vector<32x8xf32>, vector<8x16xf32>, vector<32x16xf32> -> vector<32x16xf32>
    %100 = arith.addf %80, %99 : vector<32x16xf32>
    %c8_139 = arith.constant 8 : index
    %c0_140 = arith.constant 0 : index
    %101 = vector.load %arg11[%c8_139, %c0_140] : memref<98x8xf32, #tpu.memory_space<vmem>>, vector<4x8xf32>
    %c0_141 = arith.constant 0 : index
    %c0_142 = arith.constant 0 : index
    %102 = vector.load %arg12[%c0_141, %c0_142] : memref<32x8xf32, #tpu.memory_space<vmem>>, vector<4x8xf32>
    tpu.vector_store %arg12[%c0_141, %c0_142], %101 {strides = array<i32>} : memref<32x8xf32, #tpu.memory_space<vmem>>, vector<4x8xf32>,
    %c15_143 = arith.constant 15 : index
    %c0_144 = arith.constant 0 : index
    %103 = vector.load %arg11[%c15_143, %c0_144] : memref<98x8xf32, #tpu.memory_space<vmem>>, vector<4x8xf32>
    %c4_145 = arith.constant 4 : index
    %c0_146 = arith.constant 0 : index
    %104 = vector.load %arg12[%c4_145, %c0_146] : memref<32x8xf32, #tpu.memory_space<vmem>>, vector<4x8xf32>
    tpu.vector_store %arg12[%c4_145, %c0_146], %103 {strides = array<i32>} : memref<32x8xf32, #tpu.memory_space<vmem>>, vector<4x8xf32>,
    %c22_147 = arith.constant 22 : index
    %c0_148 = arith.constant 0 : index
    %105 = vector.load %arg11[%c22_147, %c0_148] : memref<98x8xf32, #tpu.memory_space<vmem>>, vector<4x8xf32>
    %c8_149 = arith.constant 8 : index
    %c0_150 = arith.constant 0 : index
    %106 = vector.load %arg12[%c8_149, %c0_150] : memref<32x8xf32, #tpu.memory_space<vmem>>, vector<4x8xf32>
    tpu.vector_store %arg12[%c8_149, %c0_150], %105 {strides = array<i32>} : memref<32x8xf32, #tpu.memory_space<vmem>>, vector<4x8xf32>,
    %c29 = arith.constant 29 : index
    %c0_151 = arith.constant 0 : index
    %107 = vector.load %arg11[%c29, %c0_151] : memref<98x8xf32, #tpu.memory_space<vmem>>, vector<4x8xf32>
    %c12_152 = arith.constant 12 : index
    %c0_153 = arith.constant 0 : index
    %108 = vector.load %arg12[%c12_152, %c0_153] : memref<32x8xf32, #tpu.memory_space<vmem>>, vector<4x8xf32>
    tpu.vector_store %arg12[%c12_152, %c0_153], %107 {strides = array<i32>} : memref<32x8xf32, #tpu.memory_space<vmem>>, vector<4x8xf32>,
    %c57_154 = arith.constant 57 : index
    %c0_155 = arith.constant 0 : index
    %109 = vector.load %arg11[%c57_154, %c0_155] : memref<98x8xf32, #tpu.memory_space<vmem>>, vector<4x8xf32>
    %c16_156 = arith.constant 16 : index
    %c0_157 = arith.constant 0 : index
    %110 = vector.load %arg12[%c16_156, %c0_157] : memref<32x8xf32, #tpu.memory_space<vmem>>, vector<4x8xf32>
    tpu.vector_store %arg12[%c16_156, %c0_157], %109 {strides = array<i32>} : memref<32x8xf32, #tpu.memory_space<vmem>>, vector<4x8xf32>,
    %c64_158 = arith.constant 64 : index
    %c0_159 = arith.constant 0 : index
    %111 = vector.load %arg11[%c64_158, %c0_159] : memref<98x8xf32, #tpu.memory_space<vmem>>, vector<4x8xf32>
    %c20_160 = arith.constant 20 : index
    %c0_161 = arith.constant 0 : index
    %112 = vector.load %arg12[%c20_160, %c0_161] : memref<32x8xf32, #tpu.memory_space<vmem>>, vector<4x8xf32>
    tpu.vector_store %arg12[%c20_160, %c0_161], %111 {strides = array<i32>} : memref<32x8xf32, #tpu.memory_space<vmem>>, vector<4x8xf32>,
    %c71_162 = arith.constant 71 : index
    %c0_163 = arith.constant 0 : index
    %113 = vector.load %arg11[%c71_162, %c0_163] : memref<98x8xf32, #tpu.memory_space<vmem>>, vector<4x8xf32>
    %c24_164 = arith.constant 24 : index
    %c0_165 = arith.constant 0 : index
    %114 = vector.load %arg12[%c24_164, %c0_165] : memref<32x8xf32, #tpu.memory_space<vmem>>, vector<4x8xf32>
    tpu.vector_store %arg12[%c24_164, %c0_165], %113 {strides = array<i32>} : memref<32x8xf32, #tpu.memory_space<vmem>>, vector<4x8xf32>,
    %c78 = arith.constant 78 : index
    %c0_166 = arith.constant 0 : index
    %115 = vector.load %arg11[%c78, %c0_166] : memref<98x8xf32, #tpu.memory_space<vmem>>, vector<4x8xf32>
    %c28_167 = arith.constant 28 : index
    %c0_168 = arith.constant 0 : index
    %116 = vector.load %arg12[%c28_167, %c0_168] : memref<32x8xf32, #tpu.memory_space<vmem>>, vector<4x8xf32>
    tpu.vector_store %arg12[%c28_167, %c0_168], %115 {strides = array<i32>} : memref<32x8xf32, #tpu.memory_space<vmem>>, vector<4x8xf32>,
    %c0_169 = arith.constant 0 : index
    %c0_170 = arith.constant 0 : index
    %117 = vector.load %arg12[%c0_169, %c0_170] : memref<32x8xf32, #tpu.memory_space<vmem>>, vector<32x8xf32>
    %c32 = arith.constant 32 : index
    %c0_171 = arith.constant 0 : index
    %118 = vector.load %arg4[%c32, %c0_171] : memref<72x16xf32, #tpu.memory_space<vmem>>, vector<8x16xf32>
    %cst_172 = arith.constant dense<0.000000e+00> : vector<32x16xf32>
    %119 = tpu.matmul %117, %118, %cst_172 {dimension_numbers = #tpu.dot_dimension_numbers<[1], [0], [0], [1], [0, 0, 1, 1], [], []>} : vector<32x8xf32>, vector<8x16xf32>, vector<32x16xf32> -> vector<32x16xf32>
    %120 = arith.addf %100, %119 : vector<32x16xf32>
    %c9_173 = arith.constant 9 : index
    %c0_174 = arith.constant 0 : index
    %121 = vector.load %arg11[%c9_173, %c0_174] : memref<98x8xf32, #tpu.memory_space<vmem>>, vector<4x8xf32>
    %c0_175 = arith.constant 0 : index
    %c0_176 = arith.constant 0 : index
    %122 = vector.load %arg12[%c0_175, %c0_176] : memref<32x8xf32, #tpu.memory_space<vmem>>, vector<4x8xf32>
    tpu.vector_store %arg12[%c0_175, %c0_176], %121 {strides = array<i32>} : memref<32x8xf32, #tpu.memory_space<vmem>>, vector<4x8xf32>,
    %c16_177 = arith.constant 16 : index
    %c0_178 = arith.constant 0 : index
    %123 = vector.load %arg11[%c16_177, %c0_178] : memref<98x8xf32, #tpu.memory_space<vmem>>, vector<4x8xf32>
    %c4_179 = arith.constant 4 : index
    %c0_180 = arith.constant 0 : index
    %124 = vector.load %arg12[%c4_179, %c0_180] : memref<32x8xf32, #tpu.memory_space<vmem>>, vector<4x8xf32>
    tpu.vector_store %arg12[%c4_179, %c0_180], %123 {strides = array<i32>} : memref<32x8xf32, #tpu.memory_space<vmem>>, vector<4x8xf32>,
    %c23_181 = arith.constant 23 : index
    %c0_182 = arith.constant 0 : index
    %125 = vector.load %arg11[%c23_181, %c0_182] : memref<98x8xf32, #tpu.memory_space<vmem>>, vector<4x8xf32>
    %c8_183 = arith.constant 8 : index
    %c0_184 = arith.constant 0 : index
    %126 = vector.load %arg12[%c8_183, %c0_184] : memref<32x8xf32, #tpu.memory_space<vmem>>, vector<4x8xf32>
    tpu.vector_store %arg12[%c8_183, %c0_184], %125 {strides = array<i32>} : memref<32x8xf32, #tpu.memory_space<vmem>>, vector<4x8xf32>,
    %c30 = arith.constant 30 : index
    %c0_185 = arith.constant 0 : index
    %127 = vector.load %arg11[%c30, %c0_185] : memref<98x8xf32, #tpu.memory_space<vmem>>, vector<4x8xf32>
    %c12_186 = arith.constant 12 : index
    %c0_187 = arith.constant 0 : index
    %128 = vector.load %arg12[%c12_186, %c0_187] : memref<32x8xf32, #tpu.memory_space<vmem>>, vector<4x8xf32>
    tpu.vector_store %arg12[%c12_186, %c0_187], %127 {strides = array<i32>} : memref<32x8xf32, #tpu.memory_space<vmem>>, vector<4x8xf32>,
    %c58_188 = arith.constant 58 : index
    %c0_189 = arith.constant 0 : index
    %129 = vector.load %arg11[%c58_188, %c0_189] : memref<98x8xf32, #tpu.memory_space<vmem>>, vector<4x8xf32>
    %c16_190 = arith.constant 16 : index
    %c0_191 = arith.constant 0 : index
    %130 = vector.load %arg12[%c16_190, %c0_191] : memref<32x8xf32, #tpu.memory_space<vmem>>, vector<4x8xf32>
    tpu.vector_store %arg12[%c16_190, %c0_191], %129 {strides = array<i32>} : memref<32x8xf32, #tpu.memory_space<vmem>>, vector<4x8xf32>,
    %c65_192 = arith.constant 65 : index
    %c0_193 = arith.constant 0 : index
    %131 = vector.load %arg11[%c65_192, %c0_193] : memref<98x8xf32, #tpu.memory_space<vmem>>, vector<4x8xf32>
    %c20_194 = arith.constant 20 : index
    %c0_195 = arith.constant 0 : index
    %132 = vector.load %arg12[%c20_194, %c0_195] : memref<32x8xf32, #tpu.memory_space<vmem>>, vector<4x8xf32>
    tpu.vector_store %arg12[%c20_194, %c0_195], %131 {strides = array<i32>} : memref<32x8xf32, #tpu.memory_space<vmem>>, vector<4x8xf32>,
    %c72_196 = arith.constant 72 : index
    %c0_197 = arith.constant 0 : index
    %133 = vector.load %arg11[%c72_196, %c0_197] : memref<98x8xf32, #tpu.memory_space<vmem>>, vector<4x8xf32>
    %c24_198 = arith.constant 24 : index
    %c0_199 = arith.constant 0 : index
    %134 = vector.load %arg12[%c24_198, %c0_199] : memref<32x8xf32, #tpu.memory_space<vmem>>, vector<4x8xf32>
    tpu.vector_store %arg12[%c24_198, %c0_199], %133 {strides = array<i32>} : memref<32x8xf32, #tpu.memory_space<vmem>>, vector<4x8xf32>,
    %c79 = arith.constant 79 : index
    %c0_200 = arith.constant 0 : index
    %135 = vector.load %arg11[%c79, %c0_200] : memref<98x8xf32, #tpu.memory_space<vmem>>, vector<4x8xf32>
    %c28_201 = arith.constant 28 : index
    %c0_202 = arith.constant 0 : index
    %136 = vector.load %arg12[%c28_201, %c0_202] : memref<32x8xf32, #tpu.memory_space<vmem>>, vector<4x8xf32>
    tpu.vector_store %arg12[%c28_201, %c0_202], %135 {strides = array<i32>} : memref<32x8xf32, #tpu.memory_space<vmem>>, vector<4x8xf32>,
    %c0_203 = arith.constant 0 : index
    %c0_204 = arith.constant 0 : index
    %137 = vector.load %arg12[%c0_203, %c0_204] : memref<32x8xf32, #tpu.memory_space<vmem>>, vector<32x8xf32>
    %c40 = arith.constant 40 : index
    %c0_205 = arith.constant 0 : index
    %138 = vector.load %arg4[%c40, %c0_205] : memref<72x16xf32, #tpu.memory_space<vmem>>, vector<8x16xf32>
    %cst_206 = arith.constant dense<0.000000e+00> : vector<32x16xf32>
    %139 = tpu.matmul %137, %138, %cst_206 {dimension_numbers = #tpu.dot_dimension_numbers<[1], [0], [0], [1], [0, 0, 1, 1], [], []>} : vector<32x8xf32>, vector<8x16xf32>, vector<32x16xf32> -> vector<32x16xf32>
    %140 = arith.addf %120, %139 : vector<32x16xf32>
    %c14_207 = arith.constant 14 : index
    %c0_208 = arith.constant 0 : index
    %141 = vector.load %arg11[%c14_207, %c0_208] : memref<98x8xf32, #tpu.memory_space<vmem>>, vector<4x8xf32>
    %c0_209 = arith.constant 0 : index
    %c0_210 = arith.constant 0 : index
    %142 = vector.load %arg12[%c0_209, %c0_210] : memref<32x8xf32, #tpu.memory_space<vmem>>, vector<4x8xf32>
    tpu.vector_store %arg12[%c0_209, %c0_210], %141 {strides = array<i32>} : memref<32x8xf32, #tpu.memory_space<vmem>>, vector<4x8xf32>,
    %c21_211 = arith.constant 21 : index
    %c0_212 = arith.constant 0 : index
    %143 = vector.load %arg11[%c21_211, %c0_212] : memref<98x8xf32, #tpu.memory_space<vmem>>, vector<4x8xf32>
    %c4_213 = arith.constant 4 : index
    %c0_214 = arith.constant 0 : index
    %144 = vector.load %arg12[%c4_213, %c0_214] : memref<32x8xf32, #tpu.memory_space<vmem>>, vector<4x8xf32>
    tpu.vector_store %arg12[%c4_213, %c0_214], %143 {strides = array<i32>} : memref<32x8xf32, #tpu.memory_space<vmem>>, vector<4x8xf32>,
    %c28_215 = arith.constant 28 : index
    %c0_216 = arith.constant 0 : index
    %145 = vector.load %arg11[%c28_215, %c0_216] : memref<98x8xf32, #tpu.memory_space<vmem>>, vector<4x8xf32>
    %c8_217 = arith.constant 8 : index
    %c0_218 = arith.constant 0 : index
    %146 = vector.load %arg12[%c8_217, %c0_218] : memref<32x8xf32, #tpu.memory_space<vmem>>, vector<4x8xf32>
    tpu.vector_store %arg12[%c8_217, %c0_218], %145 {strides = array<i32>} : memref<32x8xf32, #tpu.memory_space<vmem>>, vector<4x8xf32>,
    %c35 = arith.constant 35 : index
    %c0_219 = arith.constant 0 : index
    %147 = vector.load %arg11[%c35, %c0_219] : memref<98x8xf32, #tpu.memory_space<vmem>>, vector<4x8xf32>
    %c12_220 = arith.constant 12 : index
    %c0_221 = arith.constant 0 : index
    %148 = vector.load %arg12[%c12_220, %c0_221] : memref<32x8xf32, #tpu.memory_space<vmem>>, vector<4x8xf32>
    tpu.vector_store %arg12[%c12_220, %c0_221], %147 {strides = array<i32>} : memref<32x8xf32, #tpu.memory_space<vmem>>, vector<4x8xf32>,
    %c63_222 = arith.constant 63 : index
    %c0_223 = arith.constant 0 : index
    %149 = vector.load %arg11[%c63_222, %c0_223] : memref<98x8xf32, #tpu.memory_space<vmem>>, vector<4x8xf32>
    %c16_224 = arith.constant 16 : index
    %c0_225 = arith.constant 0 : index
    %150 = vector.load %arg12[%c16_224, %c0_225] : memref<32x8xf32, #tpu.memory_space<vmem>>, vector<4x8xf32>
    tpu.vector_store %arg12[%c16_224, %c0_225], %149 {strides = array<i32>} : memref<32x8xf32, #tpu.memory_space<vmem>>, vector<4x8xf32>,
    %c70_226 = arith.constant 70 : index
    %c0_227 = arith.constant 0 : index
    %151 = vector.load %arg11[%c70_226, %c0_227] : memref<98x8xf32, #tpu.memory_space<vmem>>, vector<4x8xf32>
    %c20_228 = arith.constant 20 : index
    %c0_229 = arith.constant 0 : index
    %152 = vector.load %arg12[%c20_228, %c0_229] : memref<32x8xf32, #tpu.memory_space<vmem>>, vector<4x8xf32>
    tpu.vector_store %arg12[%c20_228, %c0_229], %151 {strides = array<i32>} : memref<32x8xf32, #tpu.memory_space<vmem>>, vector<4x8xf32>,
    %c77_230 = arith.constant 77 : index
    %c0_231 = arith.constant 0 : index
    %153 = vector.load %arg11[%c77_230, %c0_231] : memref<98x8xf32, #tpu.memory_space<vmem>>, vector<4x8xf32>
    %c24_232 = arith.constant 24 : index
    %c0_233 = arith.constant 0 : index
    %154 = vector.load %arg12[%c24_232, %c0_233] : memref<32x8xf32, #tpu.memory_space<vmem>>, vector<4x8xf32>
    tpu.vector_store %arg12[%c24_232, %c0_233], %153 {strides = array<i32>} : memref<32x8xf32, #tpu.memory_space<vmem>>, vector<4x8xf32>,
    %c84 = arith.constant 84 : index
    %c0_234 = arith.constant 0 : index
    %155 = vector.load %arg11[%c84, %c0_234] : memref<98x8xf32, #tpu.memory_space<vmem>>, vector<4x8xf32>
    %c28_235 = arith.constant 28 : index
    %c0_236 = arith.constant 0 : index
    %156 = vector.load %arg12[%c28_235, %c0_236] : memref<32x8xf32, #tpu.memory_space<vmem>>, vector<4x8xf32>
    tpu.vector_store %arg12[%c28_235, %c0_236], %155 {strides = array<i32>} : memref<32x8xf32, #tpu.memory_space<vmem>>, vector<4x8xf32>,
    %c0_237 = arith.constant 0 : index
    %c0_238 = arith.constant 0 : index
    %157 = vector.load %arg12[%c0_237, %c0_238] : memref<32x8xf32, #tpu.memory_space<vmem>>, vector<32x8xf32>
    %c48 = arith.constant 48 : index
    %c0_239 = arith.constant 0 : index
    %158 = vector.load %arg4[%c48, %c0_239] : memref<72x16xf32, #tpu.memory_space<vmem>>, vector<8x16xf32>
    %cst_240 = arith.constant dense<0.000000e+00> : vector<32x16xf32>
    %159 = tpu.matmul %157, %158, %cst_240 {dimension_numbers = #tpu.dot_dimension_numbers<[1], [0], [0], [1], [0, 0, 1, 1], [], []>} : vector<32x8xf32>, vector<8x16xf32>, vector<32x16xf32> -> vector<32x16xf32>
    %160 = arith.addf %140, %159 : vector<32x16xf32>
    %c15_241 = arith.constant 15 : index
    %c0_242 = arith.constant 0 : index
    %161 = vector.load %arg11[%c15_241, %c0_242] : memref<98x8xf32, #tpu.memory_space<vmem>>, vector<4x8xf32>
    %c0_243 = arith.constant 0 : index
    %c0_244 = arith.constant 0 : index
    %162 = vector.load %arg12[%c0_243, %c0_244] : memref<32x8xf32, #tpu.memory_space<vmem>>, vector<4x8xf32>
    tpu.vector_store %arg12[%c0_243, %c0_244], %161 {strides = array<i32>} : memref<32x8xf32, #tpu.memory_space<vmem>>, vector<4x8xf32>,
    %c22_245 = arith.constant 22 : index
    %c0_246 = arith.constant 0 : index
    %163 = vector.load %arg11[%c22_245, %c0_246] : memref<98x8xf32, #tpu.memory_space<vmem>>, vector<4x8xf32>
    %c4_247 = arith.constant 4 : index
    %c0_248 = arith.constant 0 : index
    %164 = vector.load %arg12[%c4_247, %c0_248] : memref<32x8xf32, #tpu.memory_space<vmem>>, vector<4x8xf32>
    tpu.vector_store %arg12[%c4_247, %c0_248], %163 {strides = array<i32>} : memref<32x8xf32, #tpu.memory_space<vmem>>, vector<4x8xf32>,
    %c29_249 = arith.constant 29 : index
    %c0_250 = arith.constant 0 : index
    %165 = vector.load %arg11[%c29_249, %c0_250] : memref<98x8xf32, #tpu.memory_space<vmem>>, vector<4x8xf32>
    %c8_251 = arith.constant 8 : index
    %c0_252 = arith.constant 0 : index
    %166 = vector.load %arg12[%c8_251, %c0_252] : memref<32x8xf32, #tpu.memory_space<vmem>>, vector<4x8xf32>
    tpu.vector_store %arg12[%c8_251, %c0_252], %165 {strides = array<i32>} : memref<32x8xf32, #tpu.memory_space<vmem>>, vector<4x8xf32>,
    %c36 = arith.constant 36 : index
    %c0_253 = arith.constant 0 : index
    %167 = vector.load %arg11[%c36, %c0_253] : memref<98x8xf32, #tpu.memory_space<vmem>>, vector<4x8xf32>
    %c12_254 = arith.constant 12 : index
    %c0_255 = arith.constant 0 : index
    %168 = vector.load %arg12[%c12_254, %c0_255] : memref<32x8xf32, #tpu.memory_space<vmem>>, vector<4x8xf32>
    tpu.vector_store %arg12[%c12_254, %c0_255], %167 {strides = array<i32>} : memref<32x8xf32, #tpu.memory_space<vmem>>, vector<4x8xf32>,
    %c64_256 = arith.constant 64 : index
    %c0_257 = arith.constant 0 : index
    %169 = vector.load %arg11[%c64_256, %c0_257] : memref<98x8xf32, #tpu.memory_space<vmem>>, vector<4x8xf32>
    %c16_258 = arith.constant 16 : index
    %c0_259 = arith.constant 0 : index
    %170 = vector.load %arg12[%c16_258, %c0_259] : memref<32x8xf32, #tpu.memory_space<vmem>>, vector<4x8xf32>
    tpu.vector_store %arg12[%c16_258, %c0_259], %169 {strides = array<i32>} : memref<32x8xf32, #tpu.memory_space<vmem>>, vector<4x8xf32>,
    %c71_260 = arith.constant 71 : index
    %c0_261 = arith.constant 0 : index
    %171 = vector.load %arg11[%c71_260, %c0_261] : memref<98x8xf32, #tpu.memory_space<vmem>>, vector<4x8xf32>
    %c20_262 = arith.constant 20 : index
    %c0_263 = arith.constant 0 : index
    %172 = vector.load %arg12[%c20_262, %c0_263] : memref<32x8xf32, #tpu.memory_space<vmem>>, vector<4x8xf32>
    tpu.vector_store %arg12[%c20_262, %c0_263], %171 {strides = array<i32>} : memref<32x8xf32, #tpu.memory_space<vmem>>, vector<4x8xf32>,
    %c78_264 = arith.constant 78 : index
    %c0_265 = arith.constant 0 : index
    %173 = vector.load %arg11[%c78_264, %c0_265] : memref<98x8xf32, #tpu.memory_space<vmem>>, vector<4x8xf32>
    %c24_266 = arith.constant 24 : index
    %c0_267 = arith.constant 0 : index
    %174 = vector.load %arg12[%c24_266, %c0_267] : memref<32x8xf32, #tpu.memory_space<vmem>>, vector<4x8xf32>
    tpu.vector_store %arg12[%c24_266, %c0_267], %173 {strides = array<i32>} : memref<32x8xf32, #tpu.memory_space<vmem>>, vector<4x8xf32>,
    %c85 = arith.constant 85 : index
    %c0_268 = arith.constant 0 : index
    %175 = vector.load %arg11[%c85, %c0_268] : memref<98x8xf32, #tpu.memory_space<vmem>>, vector<4x8xf32>
    %c28_269 = arith.constant 28 : index
    %c0_270 = arith.constant 0 : index
    %176 = vector.load %arg12[%c28_269, %c0_270] : memref<32x8xf32, #tpu.memory_space<vmem>>, vector<4x8xf32>
    tpu.vector_store %arg12[%c28_269, %c0_270], %175 {strides = array<i32>} : memref<32x8xf32, #tpu.memory_space<vmem>>, vector<4x8xf32>,
    %c0_271 = arith.constant 0 : index
    %c0_272 = arith.constant 0 : index
    %177 = vector.load %arg12[%c0_271, %c0_272] : memref<32x8xf32, #tpu.memory_space<vmem>>, vector<32x8xf32>
    %c56_273 = arith.constant 56 : index
    %c0_274 = arith.constant 0 : index
    %178 = vector.load %arg4[%c56_273, %c0_274] : memref<72x16xf32, #tpu.memory_space<vmem>>, vector<8x16xf32>
    %cst_275 = arith.constant dense<0.000000e+00> : vector<32x16xf32>
    %179 = tpu.matmul %177, %178, %cst_275 {dimension_numbers = #tpu.dot_dimension_numbers<[1], [0], [0], [1], [0, 0, 1, 1], [], []>} : vector<32x8xf32>, vector<8x16xf32>, vector<32x16xf32> -> vector<32x16xf32>
    %180 = arith.addf %160, %179 : vector<32x16xf32>
    %c16_276 = arith.constant 16 : index
    %c0_277 = arith.constant 0 : index
    %181 = vector.load %arg11[%c16_276, %c0_277] : memref<98x8xf32, #tpu.memory_space<vmem>>, vector<4x8xf32>
    %c0_278 = arith.constant 0 : index
    %c0_279 = arith.constant 0 : index
    %182 = vector.load %arg12[%c0_278, %c0_279] : memref<32x8xf32, #tpu.memory_space<vmem>>, vector<4x8xf32>
    tpu.vector_store %arg12[%c0_278, %c0_279], %181 {strides = array<i32>} : memref<32x8xf32, #tpu.memory_space<vmem>>, vector<4x8xf32>,
    %c23_280 = arith.constant 23 : index
    %c0_281 = arith.constant 0 : index
    %183 = vector.load %arg11[%c23_280, %c0_281] : memref<98x8xf32, #tpu.memory_space<vmem>>, vector<4x8xf32>
    %c4_282 = arith.constant 4 : index
    %c0_283 = arith.constant 0 : index
    %184 = vector.load %arg12[%c4_282, %c0_283] : memref<32x8xf32, #tpu.memory_space<vmem>>, vector<4x8xf32>
    tpu.vector_store %arg12[%c4_282, %c0_283], %183 {strides = array<i32>} : memref<32x8xf32, #tpu.memory_space<vmem>>, vector<4x8xf32>,
    %c30_284 = arith.constant 30 : index
    %c0_285 = arith.constant 0 : index
    %185 = vector.load %arg11[%c30_284, %c0_285] : memref<98x8xf32, #tpu.memory_space<vmem>>, vector<4x8xf32>
    %c8_286 = arith.constant 8 : index
    %c0_287 = arith.constant 0 : index
    %186 = vector.load %arg12[%c8_286, %c0_287] : memref<32x8xf32, #tpu.memory_space<vmem>>, vector<4x8xf32>
    tpu.vector_store %arg12[%c8_286, %c0_287], %185 {strides = array<i32>} : memref<32x8xf32, #tpu.memory_space<vmem>>, vector<4x8xf32>,
    %c37 = arith.constant 37 : index
    %c0_288 = arith.constant 0 : index
    %187 = vector.load %arg11[%c37, %c0_288] : memref<98x8xf32, #tpu.memory_space<vmem>>, vector<4x8xf32>
    %c12_289 = arith.constant 12 : index
    %c0_290 = arith.constant 0 : index
    %188 = vector.load %arg12[%c12_289, %c0_290] : memref<32x8xf32, #tpu.memory_space<vmem>>, vector<4x8xf32>
    tpu.vector_store %arg12[%c12_289, %c0_290], %187 {strides = array<i32>} : memref<32x8xf32, #tpu.memory_space<vmem>>, vector<4x8xf32>,
    %c65_291 = arith.constant 65 : index
    %c0_292 = arith.constant 0 : index
    %189 = vector.load %arg11[%c65_291, %c0_292] : memref<98x8xf32, #tpu.memory_space<vmem>>, vector<4x8xf32>
    %c16_293 = arith.constant 16 : index
    %c0_294 = arith.constant 0 : index
    %190 = vector.load %arg12[%c16_293, %c0_294] : memref<32x8xf32, #tpu.memory_space<vmem>>, vector<4x8xf32>
    tpu.vector_store %arg12[%c16_293, %c0_294], %189 {strides = array<i32>} : memref<32x8xf32, #tpu.memory_space<vmem>>, vector<4x8xf32>,
    %c72_295 = arith.constant 72 : index
    %c0_296 = arith.constant 0 : index
    %191 = vector.load %arg11[%c72_295, %c0_296] : memref<98x8xf32, #tpu.memory_space<vmem>>, vector<4x8xf32>
    %c20_297 = arith.constant 20 : index
    %c0_298 = arith.constant 0 : index
    %192 = vector.load %arg12[%c20_297, %c0_298] : memref<32x8xf32, #tpu.memory_space<vmem>>, vector<4x8xf32>
    tpu.vector_store %arg12[%c20_297, %c0_298], %191 {strides = array<i32>} : memref<32x8xf32, #tpu.memory_space<vmem>>, vector<4x8xf32>,
    %c79_299 = arith.constant 79 : index
    %c0_300 = arith.constant 0 : index
    %193 = vector.load %arg11[%c79_299, %c0_300] : memref<98x8xf32, #tpu.memory_space<vmem>>, vector<4x8xf32>
    %c24_301 = arith.constant 24 : index
    %c0_302 = arith.constant 0 : index
    %194 = vector.load %arg12[%c24_301, %c0_302] : memref<32x8xf32, #tpu.memory_space<vmem>>, vector<4x8xf32>
    tpu.vector_store %arg12[%c24_301, %c0_302], %193 {strides = array<i32>} : memref<32x8xf32, #tpu.memory_space<vmem>>, vector<4x8xf32>,
    %c86 = arith.constant 86 : index
    %c0_303 = arith.constant 0 : index
    %195 = vector.load %arg11[%c86, %c0_303] : memref<98x8xf32, #tpu.memory_space<vmem>>, vector<4x8xf32>
    %c28_304 = arith.constant 28 : index
    %c0_305 = arith.constant 0 : index
    %196 = vector.load %arg12[%c28_304, %c0_305] : memref<32x8xf32, #tpu.memory_space<vmem>>, vector<4x8xf32>
    tpu.vector_store %arg12[%c28_304, %c0_305], %195 {strides = array<i32>} : memref<32x8xf32, #tpu.memory_space<vmem>>, vector<4x8xf32>,
    %c0_306 = arith.constant 0 : index
    %c0_307 = arith.constant 0 : index
    %197 = vector.load %arg12[%c0_306, %c0_307] : memref<32x8xf32, #tpu.memory_space<vmem>>, vector<32x8xf32>
    %c64_308 = arith.constant 64 : index
    %c0_309 = arith.constant 0 : index
    %198 = vector.load %arg4[%c64_308, %c0_309] : memref<72x16xf32, #tpu.memory_space<vmem>>, vector<8x16xf32>
    %cst_310 = arith.constant dense<0.000000e+00> : vector<32x16xf32>
    %199 = tpu.matmul %197, %198, %cst_310 {dimension_numbers = #tpu.dot_dimension_numbers<[1], [0], [0], [1], [0, 0, 1, 1], [], []>} : vector<32x8xf32>, vector<8x16xf32>, vector<32x16xf32> -> vector<32x16xf32>
    %200 = arith.addf %180, %199 : vector<32x16xf32>
    %c0_311 = arith.constant 0 : index
    %c0_312 = arith.constant 0 : index
    %201 = vector.load %arg5[%c0_311, %c0_312] : memref<1x16xf32, #tpu.memory_space<vmem>>, vector<1x16xf32>
    %202 = vector.broadcast %201 : vector<1x16xf32> to vector<32x16xf32>
    %203 = arith.addf %200, %202 : vector<32x16xf32>
    %c0_313 = arith.constant 0 : index
    %c0_314 = arith.constant 0 : index
    %204 = vector.load %arg13[%c0_313, %c0_314] : memref<32x16xf32, #tpu.memory_space<vmem>>, vector<32x16xf32>
    tpu.vector_store %arg13[%c0_313, %c0_314], %203 {strides = array<i32>} : memref<32x16xf32, #tpu.memory_space<vmem>>, vector<32x16xf32>,
    %cst_315 = arith.constant 0.000000e+00 : f32
    %205 = vector.broadcast %cst_315 : f32 to vector<2x32xf32>
    %c0_316 = arith.constant 0 : index
    %c0_317 = arith.constant 0 : index
    %206 = vector.load %arg13[%c0_316, %c0_317] : memref<32x16xf32, #tpu.memory_space<vmem>>, vector<1x16xf32>
    %c1_318 = arith.constant 1 : index
    %c0_319 = arith.constant 0 : index
    %207 = vector.load %arg13[%c1_318, %c0_319] : memref<32x16xf32, #tpu.memory_space<vmem>>, vector<1x16xf32>
    %208 = arith.maximumf %206, %207 : vector<1x16xf32>
    %c4_320 = arith.constant 4 : index
    %c0_321 = arith.constant 0 : index
    %209 = vector.load %arg13[%c4_320, %c0_321] : memref<32x16xf32, #tpu.memory_space<vmem>>, vector<1x16xf32>
    %c5 = arith.constant 5 : index
    %c0_322 = arith.constant 0 : index
    %210 = vector.load %arg13[%c5, %c0_322] : memref<32x16xf32, #tpu.memory_space<vmem>>, vector<1x16xf32>
    %211 = arith.maximumf %209, %210 : vector<1x16xf32>
    %212 = arith.maximumf %208, %211 : vector<1x16xf32>
    %c0_323 = arith.constant 0 : index
    %c0_324 = arith.constant 0 : index
    %213 = vector.load %arg14[%c0_323, %c0_324] : memref<2x16xf32, #tpu.memory_space<vmem>>, vector<1x16xf32>
    tpu.vector_store %arg14[%c0_323, %c0_324], %212 {strides = array<i32>} : memref<2x16xf32, #tpu.memory_space<vmem>>, vector<1x16xf32>,
    %c16_325 = arith.constant 16 : index
    %c0_326 = arith.constant 0 : index
    %214 = vector.load %arg13[%c16_325, %c0_326] : memref<32x16xf32, #tpu.memory_space<vmem>>, vector<1x16xf32>
    %c17 = arith.constant 17 : index
    %c0_327 = arith.constant 0 : index
    %215 = vector.load %arg13[%c17, %c0_327] : memref<32x16xf32, #tpu.memory_space<vmem>>, vector<1x16xf32>
    %216 = arith.maximumf %214, %215 : vector<1x16xf32>
    %c20_328 = arith.constant 20 : index
    %c0_329 = arith.constant 0 : index
    %217 = vector.load %arg13[%c20_328, %c0_329] : memref<32x16xf32, #tpu.memory_space<vmem>>, vector<1x16xf32>
    %c21_330 = arith.constant 21 : index
    %c0_331 = arith.constant 0 : index
    %218 = vector.load %arg13[%c21_330, %c0_331] : memref<32x16xf32, #tpu.memory_space<vmem>>, vector<1x16xf32>
    %219 = arith.maximumf %217, %218 : vector<1x16xf32>
    %220 = arith.maximumf %216, %219 : vector<1x16xf32>
    %c1_332 = arith.constant 1 : index
    %c0_333 = arith.constant 0 : index
    %221 = vector.load %arg14[%c1_332, %c0_333] : memref<2x16xf32, #tpu.memory_space<vmem>>, vector<1x16xf32>
    tpu.vector_store %arg14[%c1_332, %c0_333], %220 {strides = array<i32>} : memref<2x16xf32, #tpu.memory_space<vmem>>, vector<1x16xf32>,
    %c0_334 = arith.constant 0 : index
    %c0_335 = arith.constant 0 : index
    %222 = vector.load %arg14[%c0_334, %c0_335] : memref<2x16xf32, #tpu.memory_space<vmem>>, vector<2x16xf32>
    %c0_336 = arith.constant 0 : index
    %c0_337 = arith.constant 0 : index
    %223 = vector.load %arg6[%c0_336, %c0_337] : memref<64x32xf32, #tpu.memory_space<vmem>>, vector<16x32xf32>
    %cst_338 = arith.constant dense<0.000000e+00> : vector<2x32xf32>
    %224 = tpu.matmul %222, %223, %cst_338 {dimension_numbers = #tpu.dot_dimension_numbers<[1], [0], [0], [1], [0, 0, 1, 1], [], []>} : vector<2x16xf32>, vector<16x32xf32>, vector<2x32xf32> -> vector<2x32xf32>
    %225 = arith.addf %205, %224 : vector<2x32xf32>
    %c2_339 = arith.constant 2 : index
    %c0_340 = arith.constant 0 : index
    %226 = vector.load %arg13[%c2_339, %c0_340] : memref<32x16xf32, #tpu.memory_space<vmem>>, vector<1x16xf32>
    %c3_341 = arith.constant 3 : index
    %c0_342 = arith.constant 0 : index
    %227 = vector.load %arg13[%c3_341, %c0_342] : memref<32x16xf32, #tpu.memory_space<vmem>>, vector<1x16xf32>
    %228 = arith.maximumf %226, %227 : vector<1x16xf32>
    %c6 = arith.constant 6 : index
    %c0_343 = arith.constant 0 : index
    %229 = vector.load %arg13[%c6, %c0_343] : memref<32x16xf32, #tpu.memory_space<vmem>>, vector<1x16xf32>
    %c7_344 = arith.constant 7 : index
    %c0_345 = arith.constant 0 : index
    %230 = vector.load %arg13[%c7_344, %c0_345] : memref<32x16xf32, #tpu.memory_space<vmem>>, vector<1x16xf32>
    %231 = arith.maximumf %229, %230 : vector<1x16xf32>
    %232 = arith.maximumf %228, %231 : vector<1x16xf32>
    %c0_346 = arith.constant 0 : index
    %c0_347 = arith.constant 0 : index
    %233 = vector.load %arg14[%c0_346, %c0_347] : memref<2x16xf32, #tpu.memory_space<vmem>>, vector<1x16xf32>
    tpu.vector_store %arg14[%c0_346, %c0_347], %232 {strides = array<i32>} : memref<2x16xf32, #tpu.memory_space<vmem>>, vector<1x16xf32>,
    %c18 = arith.constant 18 : index
    %c0_348 = arith.constant 0 : index
    %234 = vector.load %arg13[%c18, %c0_348] : memref<32x16xf32, #tpu.memory_space<vmem>>, vector<1x16xf32>
    %c19 = arith.constant 19 : index
    %c0_349 = arith.constant 0 : index
    %235 = vector.load %arg13[%c19, %c0_349] : memref<32x16xf32, #tpu.memory_space<vmem>>, vector<1x16xf32>
    %236 = arith.maximumf %234, %235 : vector<1x16xf32>
    %c22_350 = arith.constant 22 : index
    %c0_351 = arith.constant 0 : index
    %237 = vector.load %arg13[%c22_350, %c0_351] : memref<32x16xf32, #tpu.memory_space<vmem>>, vector<1x16xf32>
    %c23_352 = arith.constant 23 : index
    %c0_353 = arith.constant 0 : index
    %238 = vector.load %arg13[%c23_352, %c0_353] : memref<32x16xf32, #tpu.memory_space<vmem>>, vector<1x16xf32>
    %239 = arith.maximumf %237, %238 : vector<1x16xf32>
    %240 = arith.maximumf %236, %239 : vector<1x16xf32>
    %c1_354 = arith.constant 1 : index
    %c0_355 = arith.constant 0 : index
    %241 = vector.load %arg14[%c1_354, %c0_355] : memref<2x16xf32, #tpu.memory_space<vmem>>, vector<1x16xf32>
    tpu.vector_store %arg14[%c1_354, %c0_355], %240 {strides = array<i32>} : memref<2x16xf32, #tpu.memory_space<vmem>>, vector<1x16xf32>,
    %c0_356 = arith.constant 0 : index
    %c0_357 = arith.constant 0 : index
    %242 = vector.load %arg14[%c0_356, %c0_357] : memref<2x16xf32, #tpu.memory_space<vmem>>, vector<2x16xf32>
    %c16_358 = arith.constant 16 : index
    %c0_359 = arith.constant 0 : index
    %243 = vector.load %arg6[%c16_358, %c0_359] : memref<64x32xf32, #tpu.memory_space<vmem>>, vector<16x32xf32>
    %cst_360 = arith.constant dense<0.000000e+00> : vector<2x32xf32>
    %244 = tpu.matmul %242, %243, %cst_360 {dimension_numbers = #tpu.dot_dimension_numbers<[1], [0], [0], [1], [0, 0, 1, 1], [], []>} : vector<2x16xf32>, vector<16x32xf32>, vector<2x32xf32> -> vector<2x32xf32>
    %245 = arith.addf %225, %244 : vector<2x32xf32>
    %c8_361 = arith.constant 8 : index
    %c0_362 = arith.constant 0 : index
    %246 = vector.load %arg13[%c8_361, %c0_362] : memref<32x16xf32, #tpu.memory_space<vmem>>, vector<1x16xf32>
    %c9_363 = arith.constant 9 : index
    %c0_364 = arith.constant 0 : index
    %247 = vector.load %arg13[%c9_363, %c0_364] : memref<32x16xf32, #tpu.memory_space<vmem>>, vector<1x16xf32>
    %248 = arith.maximumf %246, %247 : vector<1x16xf32>
    %c12_365 = arith.constant 12 : index
    %c0_366 = arith.constant 0 : index
    %249 = vector.load %arg13[%c12_365, %c0_366] : memref<32x16xf32, #tpu.memory_space<vmem>>, vector<1x16xf32>
    %c13 = arith.constant 13 : index
    %c0_367 = arith.constant 0 : index
    %250 = vector.load %arg13[%c13, %c0_367] : memref<32x16xf32, #tpu.memory_space<vmem>>, vector<1x16xf32>
    %251 = arith.maximumf %249, %250 : vector<1x16xf32>
    %252 = arith.maximumf %248, %251 : vector<1x16xf32>
    %c0_368 = arith.constant 0 : index
    %c0_369 = arith.constant 0 : index
    %253 = vector.load %arg14[%c0_368, %c0_369] : memref<2x16xf32, #tpu.memory_space<vmem>>, vector<1x16xf32>
    tpu.vector_store %arg14[%c0_368, %c0_369], %252 {strides = array<i32>} : memref<2x16xf32, #tpu.memory_space<vmem>>, vector<1x16xf32>,
    %c24_370 = arith.constant 24 : index
    %c0_371 = arith.constant 0 : index
    %254 = vector.load %arg13[%c24_370, %c0_371] : memref<32x16xf32, #tpu.memory_space<vmem>>, vector<1x16xf32>
    %c25 = arith.constant 25 : index
    %c0_372 = arith.constant 0 : index
    %255 = vector.load %arg13[%c25, %c0_372] : memref<32x16xf32, #tpu.memory_space<vmem>>, vector<1x16xf32>
    %256 = arith.maximumf %254, %255 : vector<1x16xf32>
    %c28_373 = arith.constant 28 : index
    %c0_374 = arith.constant 0 : index
    %257 = vector.load %arg13[%c28_373, %c0_374] : memref<32x16xf32, #tpu.memory_space<vmem>>, vector<1x16xf32>
    %c29_375 = arith.constant 29 : index
    %c0_376 = arith.constant 0 : index
    %258 = vector.load %arg13[%c29_375, %c0_376] : memref<32x16xf32, #tpu.memory_space<vmem>>, vector<1x16xf32>
    %259 = arith.maximumf %257, %258 : vector<1x16xf32>
    %260 = arith.maximumf %256, %259 : vector<1x16xf32>
    %c1_377 = arith.constant 1 : index
    %c0_378 = arith.constant 0 : index
    %261 = vector.load %arg14[%c1_377, %c0_378] : memref<2x16xf32, #tpu.memory_space<vmem>>, vector<1x16xf32>
    tpu.vector_store %arg14[%c1_377, %c0_378], %260 {strides = array<i32>} : memref<2x16xf32, #tpu.memory_space<vmem>>, vector<1x16xf32>,
    %c0_379 = arith.constant 0 : index
    %c0_380 = arith.constant 0 : index
    %262 = vector.load %arg14[%c0_379, %c0_380] : memref<2x16xf32, #tpu.memory_space<vmem>>, vector<2x16xf32>
    %c32_381 = arith.constant 32 : index
    %c0_382 = arith.constant 0 : index
    %263 = vector.load %arg6[%c32_381, %c0_382] : memref<64x32xf32, #tpu.memory_space<vmem>>, vector<16x32xf32>
    %cst_383 = arith.constant dense<0.000000e+00> : vector<2x32xf32>
    %264 = tpu.matmul %262, %263, %cst_383 {dimension_numbers = #tpu.dot_dimension_numbers<[1], [0], [0], [1], [0, 0, 1, 1], [], []>} : vector<2x16xf32>, vector<16x32xf32>, vector<2x32xf32> -> vector<2x32xf32>
    %265 = arith.addf %245, %264 : vector<2x32xf32>
    %c10 = arith.constant 10 : index
    %c0_384 = arith.constant 0 : index
    %266 = vector.load %arg13[%c10, %c0_384] : memref<32x16xf32, #tpu.memory_space<vmem>>, vector<1x16xf32>
    %c11 = arith.constant 11 : index
    %c0_385 = arith.constant 0 : index
    %267 = vector.load %arg13[%c11, %c0_385] : memref<32x16xf32, #tpu.memory_space<vmem>>, vector<1x16xf32>
    %268 = arith.maximumf %266, %267 : vector<1x16xf32>
    %c14_386 = arith.constant 14 : index
    %c0_387 = arith.constant 0 : index
    %269 = vector.load %arg13[%c14_386, %c0_387] : memref<32x16xf32, #tpu.memory_space<vmem>>, vector<1x16xf32>
    %c15_388 = arith.constant 15 : index
    %c0_389 = arith.constant 0 : index
    %270 = vector.load %arg13[%c15_388, %c0_389] : memref<32x16xf32, #tpu.memory_space<vmem>>, vector<1x16xf32>
    %271 = arith.maximumf %269, %270 : vector<1x16xf32>
    %272 = arith.maximumf %268, %271 : vector<1x16xf32>
    %c0_390 = arith.constant 0 : index
    %c0_391 = arith.constant 0 : index
    %273 = vector.load %arg14[%c0_390, %c0_391] : memref<2x16xf32, #tpu.memory_space<vmem>>, vector<1x16xf32>
    tpu.vector_store %arg14[%c0_390, %c0_391], %272 {strides = array<i32>} : memref<2x16xf32, #tpu.memory_space<vmem>>, vector<1x16xf32>,
    %c26 = arith.constant 26 : index
    %c0_392 = arith.constant 0 : index
    %274 = vector.load %arg13[%c26, %c0_392] : memref<32x16xf32, #tpu.memory_space<vmem>>, vector<1x16xf32>
    %c27 = arith.constant 27 : index
    %c0_393 = arith.constant 0 : index
    %275 = vector.load %arg13[%c27, %c0_393] : memref<32x16xf32, #tpu.memory_space<vmem>>, vector<1x16xf32>
    %276 = arith.maximumf %274, %275 : vector<1x16xf32>
    %c30_394 = arith.constant 30 : index
    %c0_395 = arith.constant 0 : index
    %277 = vector.load %arg13[%c30_394, %c0_395] : memref<32x16xf32, #tpu.memory_space<vmem>>, vector<1x16xf32>
    %c31 = arith.constant 31 : index
    %c0_396 = arith.constant 0 : index
    %278 = vector.load %arg13[%c31, %c0_396] : memref<32x16xf32, #tpu.memory_space<vmem>>, vector<1x16xf32>
    %279 = arith.maximumf %277, %278 : vector<1x16xf32>
    %280 = arith.maximumf %276, %279 : vector<1x16xf32>
    %c1_397 = arith.constant 1 : index
    %c0_398 = arith.constant 0 : index
    %281 = vector.load %arg14[%c1_397, %c0_398] : memref<2x16xf32, #tpu.memory_space<vmem>>, vector<1x16xf32>
    tpu.vector_store %arg14[%c1_397, %c0_398], %280 {strides = array<i32>} : memref<2x16xf32, #tpu.memory_space<vmem>>, vector<1x16xf32>,
    %c0_399 = arith.constant 0 : index
    %c0_400 = arith.constant 0 : index
    %282 = vector.load %arg14[%c0_399, %c0_400] : memref<2x16xf32, #tpu.memory_space<vmem>>, vector<2x16xf32>
    %c48_401 = arith.constant 48 : index
    %c0_402 = arith.constant 0 : index
    %283 = vector.load %arg6[%c48_401, %c0_402] : memref<64x32xf32, #tpu.memory_space<vmem>>, vector<16x32xf32>
    %cst_403 = arith.constant dense<0.000000e+00> : vector<2x32xf32>
    %284 = tpu.matmul %282, %283, %cst_403 {dimension_numbers = #tpu.dot_dimension_numbers<[1], [0], [0], [1], [0, 0, 1, 1], [], []>} : vector<2x16xf32>, vector<16x32xf32>, vector<2x32xf32> -> vector<2x32xf32>
    %285 = arith.addf %265, %284 : vector<2x32xf32>
    %c0_404 = arith.constant 0 : index
    %c0_405 = arith.constant 0 : index
    %286 = vector.load %arg7[%c0_404, %c0_405] : memref<1x32xf32, #tpu.memory_space<vmem>>, vector<1x32xf32>
    %287 = vector.broadcast %286 : vector<1x32xf32> to vector<2x32xf32>
    %288 = arith.addf %285, %287 : vector<2x32xf32>
    %c0_406 = arith.constant 0 : index
    %c0_407 = arith.constant 0 : index
    %289 = vector.load %arg8[%c0_406, %c0_407] : memref<32x10xf32, #tpu.memory_space<vmem>>, vector<32x10xf32>
    %cst_408 = arith.constant dense<0.000000e+00> : vector<2x10xf32>
    %290 = tpu.matmul %288, %289, %cst_408 {dimension_numbers = #tpu.dot_dimension_numbers<[1], [0], [0], [1], [0, 0, 1, 1], [], []>} : vector<2x32xf32>, vector<32x10xf32>, vector<2x10xf32> -> vector<2x10xf32>
    %c0_409 = arith.constant 0 : index
    %c0_410 = arith.constant 0 : index
    %291 = vector.load %arg9[%c0_409, %c0_410] : memref<1x10xf32, #tpu.memory_space<vmem>>, vector<1x10xf32>
    %292 = vector.broadcast %291 : vector<1x10xf32> to vector<2x10xf32>
    %293 = arith.addf %290, %292 : vector<2x10xf32>
    %c0_411 = arith.constant 0 : index
    %c0_412 = arith.constant 0 : index
    %294 = vector.load %arg10[%c0_411, %c0_412] : memref<2x10xf32, #tpu.memory_space<vmem>>, vector<2x10xf32>
    tpu.vector_store %arg10[%c0_411, %c0_412], %293 {strides = array<i32>} : memref<2x10xf32, #tpu.memory_space<vmem>>, vector<2x10xf32>,
    return
  }
  func.func @transform_0(%arg0: i32) -> (i32, i32, i32) {
    %c0_i32 = arith.constant 0 : i32
    %c0_i32_0 = arith.constant 0 : i32
    %c0_i32_1 = arith.constant 0 : i32
    %c0_i32_2 = arith.constant 0 : i32
    return %c0_i32, %c0_i32_0, %c0_i32_1 : i32, i32, i32
  }
  func.func @transform_1(%arg0: i32) -> (i32, i32) {
    %c0_i32 = arith.constant 0 : i32
    %c0_i32_0 = arith.constant 0 : i32
    %c0_i32_1 = arith.constant 0 : i32
    return %c0_i32, %c0_i32_0 : i32, i32
  }
  func.func @transform_2(%arg0: i32) -> (i32, i32) {
    %c0_i32 = arith.constant 0 : i32
    %c0_i32_0 = arith.constant 0 : i32
    %c0_i32_1 = arith.constant 0 : i32
    return %c0_i32, %c0_i32_0 : i32, i32
  }
  func.func @transform_3(%arg0: i32) -> (i32, i32) {
    %c0_i32 = arith.constant 0 : i32
    %c0_i32_0 = arith.constant 0 : i32
    %c0_i32_1 = arith.constant 0 : i32
    return %c0_i32, %c0_i32_0 : i32, i32
  }
  func.func @transform_4(%arg0: i32) -> (i32, i32) {
    %c0_i32 = arith.constant 0 : i32
    %c0_i32_0 = arith.constant 0 : i32
    %c0_i32_1 = arith.constant 0 : i32
    return %c0_i32, %c0_i32_0 : i32, i32
  }
  func.func @transform_5(%arg0: i32) -> (i32, i32) {
    %c0_i32 = arith.constant 0 : i32
    %c0_i32_0 = arith.constant 0 : i32
    %c0_i32_1 = arith.constant 0 : i32
    return %c0_i32, %c0_i32_0 : i32, i32
  }
  func.func @transform_6(%arg0: i32) -> (i32, i32) {
    %c0_i32 = arith.constant 0 : i32
    %c0_i32_0 = arith.constant 0 : i32
    %c0_i32_1 = arith.constant 0 : i32
    return %c0_i32, %c0_i32_0 : i32, i32
  }
  func.func @transform_7(%arg0: i32) -> (i32, i32) {
    %c0_i32 = arith.constant 0 : i32
    %c0_i32_0 = arith.constant 0 : i32
    %c0_i32_1 = arith.constant 0 : i32
    return %c0_i32, %c0_i32_0 : i32, i32
  }
  func.func @transform_8(%arg0: i32) -> (i32, i32) {
    %c0_i32 = arith.constant 0 : i32
    %c0_i32_0 = arith.constant 0 : i32
    %c0_i32_1 = arith.constant 0 : i32
    return %c0_i32, %c0_i32_0 : i32, i32
  }
  func.func @transform_9(%arg0: i32) -> (i32, i32) {
    %c0_i32 = arith.constant 0 : i32
    %c0_i32_0 = arith.constant 0 : i32
    %c0_i32_1 = arith.constant 0 : i32
    return %c0_i32, %c0_i32_0 : i32, i32
  }
}

</mosaic_0001>

<llo_original>
// kernel: cnn_forward_pallas.1
$region0: #{cnn_forward_pallas.1}
  #allocation0 [shape = 'u32[]', space=smem, size = 0x4, offset = 0x4, fixed_abs, tag = 'smem constant byte address 0x4 - core index']
  #allocation1 [shape = 'u32[144,128]{1,0:T(1,128)}', space=vmem, size = 0x12000, scoped, tag = 'internal scratch']
  #allocation2 [shape = 'f32[98,8]{1,0:T(8,128)}', space=vmem, size = 0xd000, scoped, tag = 'scratch operand']
  #allocation3 [shape = 'f32[32,8]{1,0:T(8,128)}', space=vmem, size = 0x4000, scoped, tag = 'scratch operand']
  #allocation4 [shape = 'f32[32,16]{1,0:T(8,128)}', space=vmem, size = 0x4000, scoped, tag = 'scratch operand']
  #allocation5 [shape = 'f32[2,16]{1,0:T(2,128)}', space=vmem, size = 0x400, scoped, tag = 'scratch operand']
  %s0 = inlined_call_operand.vmem [shape: f32[4,98,36], index: 0, kind: input, shape index: {}]
  %s1 = inlined_call_operand.vmem [shape: f32[36,8], index: 1, kind: input, shape index: {}]
  %s2 = inlined_call_operand.vmem [shape: f32[1,8], index: 2, kind: input, shape index: {}]
  %s3 = inlined_call_operand.vmem [shape: f32[72,16], index: 3, kind: input, shape index: {}]
  %s4 = inlined_call_operand.vmem [shape: f32[1,16], index: 4, kind: input, shape index: {}]
  %s5 = inlined_call_operand.vmem [shape: f32[64,32], index: 5, kind: input, shape index: {}]
  %s6 = inlined_call_operand.vmem [shape: f32[1,32], index: 6, kind: input, shape index: {}]
  %s7 = inlined_call_operand.vmem [shape: f32[32,10], index: 7, kind: input, shape index: {}]
  %s8 = inlined_call_operand.vmem [shape: f32[1,10], index: 8, kind: input, shape index: {}]
  %s9 = inlined_call_operand.hbm [shape: f32[2,10], index: 9, kind: output, shape index: {}]
  %s10 = sld [smem:[#allocation0]]
  $region46: #{cnn_forward_pallas.1} parent=0
    _
  %s12 = ssub.s32 1, %s10
  %s13 = scalar_select 0, %s12, %s10
  $region1: #{cnn_forward_pallas.1} parent=0
    #allocation6 [shape = 'u8[1024]{0}', space=vmem, size = 0x400, scoped, tag = 'output window, operand 0, single buffered']
    #allocation7 [shape = 's32[1]{0}', space=sflag, size = 0x4, scoped, tag = 'scoped memory for cnn_forward_pallas.1']
    %14 = vsyncpa [#allocation7], 0
    // Predicated region
    $region2: #{cnn_forward_pallas.1} parent=1 // pred_check
      _
    $region3: #{cnn_forward_pallas.1} parent=1 // pred_check_branch
      %16 = sbr.rel (0) target = $region5
    $region4: #{cnn_forward_pallas.1} parent=1 // pred_region
      _
    $region5: #{cnn_forward_pallas.1} parent=1 // pred_fallthru
      _
    // Predicated region
    $region6: #{cnn_forward_pallas.1} parent=1 // pred_check
      _
    $region7: #{cnn_forward_pallas.1} parent=1 // pred_check_branch
      %18 = sbr.rel (0) target = $region9
    $region8: #{cnn_forward_pallas.1} parent=1 // pred_region
      _
    $region9: #{cnn_forward_pallas.1} parent=1 // pred_fallthru
      _
    // Predicated region
    $region10: #{cnn_forward_pallas.1} parent=1 // pred_check
      _
    $region11: #{cnn_forward_pallas.1} parent=1 // pred_check_branch
      %20 = sbr.rel (0) target = $region13
    $region12: #{cnn_forward_pallas.1} parent=1 // pred_region
      _
    $region13: #{cnn_forward_pallas.1} parent=1 // pred_fallthru
      _
    // Predicated region
    $region14: #{cnn_forward_pallas.1} parent=1 // pred_check
      _
    $region15: #{cnn_forward_pallas.1} parent=1 // pred_check_branch
      %22 = sbr.rel (0) target = $region17
    $region16: #{cnn_forward_pallas.1} parent=1 // pred_region
      _
    $region17: #{cnn_forward_pallas.1} parent=1 // pred_fallthru
      _
    // Predicated region
    $region18: #{cnn_forward_pallas.1} parent=1 // pred_check
      _
    $region19: #{cnn_forward_pallas.1} parent=1 // pred_check_branch
      %24 = sbr.rel (0) target = $region21
    $region20: #{cnn_forward_pallas.1} parent=1 // pred_region
      _
    $region21: #{cnn_forward_pallas.1} parent=1 // pred_fallthru
      _
    // Predicated region
    $region22: #{cnn_forward_pallas.1} parent=1 // pred_check
      _
    $region23: #{cnn_forward_pallas.1} parent=1 // pred_check_branch
      %26 = sbr.rel (0) target = $region25
    $region24: #{cnn_forward_pallas.1} parent=1 // pred_region
      _
    $region25: #{cnn_forward_pallas.1} parent=1 // pred_fallthru
      _
    // Predicated region
    $region26: #{cnn_forward_pallas.1} parent=1 // pred_check
      _
    $region27: #{cnn_forward_pallas.1} parent=1 // pred_check_branch
      %28 = sbr.rel (0) target = $region29
    $region28: #{cnn_forward_pallas.1} parent=1 // pred_region
      _
    $region29: #{cnn_forward_pallas.1} parent=1 // pred_fallthru
      _
    // Predicated region
    $region30: #{cnn_forward_pallas.1} parent=1 // pred_check
      _
    $region31: #{cnn_forward_pallas.1} parent=1 // pred_check_branch
      %30 = sbr.rel (0) target = $region33
    $region32: #{cnn_forward_pallas.1} parent=1 // pred_region
      _
    $region33: #{cnn_forward_pallas.1} parent=1 // pred_fallthru
      _
    // Predicated region
    $region34: #{cnn_forward_pallas.1} parent=1 // pred_check
      _
    $region35: #{cnn_forward_pallas.1} parent=1 // pred_check_branch
      %32 = sbr.rel (0) target = $region37
    $region36: #{cnn_forward_pallas.1} parent=1 // pred_region
      _
    $region37: #{cnn_forward_pallas.1} parent=1 // pred_fallthru
      _
    %v33 = vld [vmem:[%s1] sm:$0xff]
    %v34 = vld [vmem:[%s1 + $0x8] sm:$0xff]
    %v35 = vld [vmem:[%s1 + $0x10] sm:$0xff]
    %v36 = vld [vmem:[%s1 + $0x18] sm:$0xff]
    %v37 = vld [vmem:[%s1 + $0x20] sm:$0xf]
    %v38 = vld [vmem:[%s0] sm:$0xff]
    %v39 = vld [vmem:[%s0 + $0x8] sm:$0xff]
    %v40 = vld [vmem:[%s0 + $0x10] sm:$0xff]
    %v41 = vld [vmem:[%s0 + $0x18] sm:$0xff]
    %v42 = vld [vmem:[%s0 + $0x20] sm:$0xff]
    %v43 = vld [vmem:[%s0 + $0x28] sm:$0xff]
    %v44 = vld [vmem:[%s0 + $0x30] sm:$0xff]
    %v45 = vld [vmem:[%s0 + $0x38] sm:$0xff]
    %v46 = vld [vmem:[%s0 + $0x40] sm:$0xff]
    %v47 = vld [vmem:[%s0 + $0x48] sm:$0xff]
    %v48 = vld [vmem:[%s0 + $0x50] sm:$0xff]
    %v49 = vld [vmem:[%s0 + $0x58] sm:$0xff]
    %v50 = vld [vmem:[%s0 + $0x60] sm:$0x3]
    %vm51 = vcmask 293888
    %v53 = vsel %vm51, %v38, 0
    %v56 = vsel %vm51, %v39, 0
    %v59 = vsel %vm51, %v40, 0
    %v62 = vsel %vm51, %v41, 0
    %v65 = vsel %vm51, %v42, 0
    %v68 = vsel %vm51, %v43, 0
    %v71 = vsel %vm51, %v44, 0
    %v74 = vsel %vm51, %v45, 0
    %v77 = vsel %vm51, %v46, 0
    %v80 = vsel %vm51, %v47, 0
    %v83 = vsel %vm51, %v48, 0
    %v86 = vsel %vm51, %v49, 0
    %v89 = vsel %vm51, %v50, 0
    %vm91 = vcmask 1043456
    %v93 = vsel %vm91, %v37, 0
    %95 = vmatprep.subr.mxu0 0.0
    %96 = vmatpush1.msra.mxu0 %v33
    %97 = vmatprep.subr.mxu0 0.0
    %98 = vmatpush1.msra.mxu0 %v34
    %99 = vmatprep.subr.mxu0 0.0
    %100 = vmatpush1.msra.mxu0 %v35
    %101 = vmatprep.subr.mxu0 0.0
    %102 = vmatpush1.msra.mxu0 %v36
    %103 = vmatprep.subr.mxu0 0.0
    %104 = vmatpush1.msra.mxu0 %v93
    %105 = vmatprep.subr.mxu0 0.0
    %106 = vmatpush1.msra.mxu0 0.0
    %107 = vmatprep.subr.mxu0 0.0
    %108 = vmatpush1.msra.mxu0 0.0
    %109 = vmatprep.subr.mxu0 0.0
    %110 = vmatpush1.msra.mxu0 0.0
    %111 = vmatprep.subr.mxu0 0.0
    %112 = vmatpush1.msra.mxu0 0.0
    %113 = vmatprep.subr.mxu0 0.0
    %114 = vmatpush1.msra.mxu0 0.0
    %115 = vmatprep.subr.mxu0 0.0
    %116 = vmatpush1.msra.mxu0 0.0
    %117 = vmatprep.subr.mxu0 0.0
    %118 = vmatpush1.msra.mxu0 0.0
    %119 = vmatprep.subr.mxu0 0.0
    %120 = vmatpush1.msra.mxu0 0.0
    %121 = vmatprep.subr.mxu0 0.0
    %122 = vmatpush1.msra.mxu0 0.0
    %123 = vmatprep.subr.mxu0 0.0
    %124 = vmatpush1.msra.mxu0 0.0
    %125 = vmatprep.subr.mxu0 0.0
    %126 = vmatpush1.msra.mxu0 0.0
    %127 = vmatprep.subr.mxu0 0.0
    %128 = vmatpush1.msra.mxu0 0.0
    %129 = vmatprep.subr.mxu0 0.0
    %130 = vmatpush1.msra.mxu0 0.0
    %131 = vmatprep.subr.mxu0 0.0
    %132 = vmatpush1.msra.mxu0 0.0
    %133 = vmatprep.subr.mxu0 0.0
    %134 = vmatpush1.msra.mxu0 0.0
    %135 = vmatprep.subr.mxu0 0.0
    %136 = vmatpush1.msra.mxu0 0.0
    %137 = vmatprep.subr.mxu0 0.0
    %138 = vmatpush1.msra.mxu0 0.0
    %139 = vmatprep.subr.mxu0 0.0
    %140 = vmatpush1.msra.mxu0 0.0
    %141 = vmatprep.subr.mxu0 0.0
    %142 = vmatpush1.msra.mxu0 0.0
    %143 = vmatprep.subr.mxu0 0.0
    %144 = vmatpush1.msra.mxu0 0.0
    %145 = vmatprep.subr.mxu0 0.0
    %146 = vmatpush1.msra.mxu0 0.0
    %147 = vmatprep.subr.mxu0 0.0
    %148 = vmatpush1.msra.mxu0 0.0
    %149 = vmatprep.subr.mxu0 0.0
    %150 = vmatpush1.msra.mxu0 0.0
    %151 = vmatprep.subr.mxu0 0.0
    %152 = vmatpush1.msra.mxu0 0.0
    %153 = vmatprep.subr.mxu0 0.0
    %154 = vmatpush1.msra.mxu0 0.0
    %155 = vmatprep.subr.mxu0 0.0
    %156 = vmatpush1.msra.mxu0 0.0
    %157 = vmatprep.subr.mxu0 0.0
    %158 = vmatpush1.msra.mxu0 0.0
    %159 = vmatprep.mubr.f32.mxu0 0.0
    %160 = vmatmul.mubr.f32.gmra.mrb[0].mxu0 %v53
    %v161 = vpop.f32.mrb[0].mxu0
    %v162 = vadd.f32 0.0, %v161
    %v163 = vpop.f32.mrb[0].mxu0
    %164 = vmatprep.mubr.f32.mxu0 0.0
    %165 = vmatmul.mubr.f32.gmra.mrb[0].mxu0 %v56
    %v166 = vpop.f32.mrb[0].mxu0
    %v167 = vadd.f32 0.0, %v166
    %v168 = vpop.f32.mrb[0].mxu0
    %169 = vmatprep.mubr.f32.mxu0 0.0
    %170 = vmatmul.mubr.f32.gmra.mrb[0].mxu0 %v59
    %v171 = vpop.f32.mrb[0].mxu0
    %v172 = vadd.f32 0.0, %v171
    %v173 = vpop.f32.mrb[0].mxu0
    %174 = vmatprep.mubr.f32.mxu0 0.0
    %175 = vmatmul.mubr.f32.gmra.mrb[0].mxu0 %v62
    %v176 = vpop.f32.mrb[0].mxu0
    %v177 = vadd.f32 0.0, %v176
    %v178 = vpop.f32.mrb[0].mxu0
    %179 = vmatprep.mubr.f32.mxu0 0.0
    %180 = vmatmul.mubr.f32.gmra.mrb[0].mxu0 %v65
    %v181 = vpop.f32.mrb[0].mxu0
    %v182 = vadd.f32 0.0, %v181
    %v183 = vpop.f32.mrb[0].mxu0
    %184 = vmatprep.mubr.f32.mxu0 0.0
    %185 = vmatmul.mubr.f32.gmra.mrb[0].mxu0 %v68
    %v186 = vpop.f32.mrb[0].mxu0
    %v187 = vadd.f32 0.0, %v186
    %v188 = vpop.f32.mrb[0].mxu0
    %189 = vmatprep.mubr.f32.mxu0 0.0
    %190 = vmatmul.mubr.f32.gmra.mrb[0].mxu0 %v71
    %v191 = vpop.f32.mrb[0].mxu0
    %v192 = vadd.f32 0.0, %v191
    %v193 = vpop.f32.mrb[0].mxu0
    %194 = vmatprep.mubr.f32.mxu0 0.0
    %195 = vmatmul.mubr.f32.gmra.mrb[0].mxu0 %v74
    %v196 = vpop.f32.mrb[0].mxu0
    %v197 = vadd.f32 0.0, %v196
    %v198 = vpop.f32.mrb[0].mxu0
    %199 = vmatprep.mubr.f32.mxu0 0.0
    %200 = vmatmul.mubr.f32.gmra.mrb[0].mxu0 %v77
    %v201 = vpop.f32.mrb[0].mxu0
    %v202 = vadd.f32 0.0, %v201
    %v203 = vpop.f32.mrb[0].mxu0
    %204 = vmatprep.mubr.f32.mxu0 0.0
    %205 = vmatmul.mubr.f32.gmra.mrb[0].mxu0 %v80
    %v206 = vpop.f32.mrb[0].mxu0
    %v207 = vadd.f32 0.0, %v206
    %v208 = vpop.f32.mrb[0].mxu0
    %209 = vmatprep.mubr.f32.mxu0 0.0
    %210 = vmatmul.mubr.f32.gmra.mrb[0].mxu0 %v83
    %v211 = vpop.f32.mrb[0].mxu0
    %v212 = vadd.f32 0.0, %v211
    %v213 = vpop.f32.mrb[0].mxu0
    %214 = vmatprep.mubr.f32.mxu0 0.0
    %215 = vmatmul.mubr.f32.gmra.mrb[0].mxu0 %v86
    %v216 = vpop.f32.mrb[0].mxu0
    %v217 = vadd.f32 0.0, %v216
    %v218 = vpop.f32.mrb[0].mxu0
    %219 = vmatprep.mubr.f32.mxu0 0.0
    %220 = vmatmul.mubr.f32.gmra.mrb[0].mxu0 %v89
    %v221 = vpop.f32.mrb[0].mxu0
    %v222 = vadd.f32 0.0, %v221
    %v223 = vpop.f32.mrb[0].mxu0
    %224 = vdwg.mxu0
    %s225 = scalar_lea.vmem %s0, 104
    %v226 = vld [vmem:[%s225] sm:$0xff]
    %v227 = vld [vmem:[%s225 + $0x8] sm:$0xff]
    %v228 = vld [vmem:[%s225 + $0x10] sm:$0xff]
    %v229 = vld [vmem:[%s225 + $0x18] sm:$0xff]
    %v230 = vld [vmem:[%s225 + $0x20] sm:$0xff]
    %v231 = vld [vmem:[%s225 + $0x28] sm:$0xff]
    %v232 = vld [vmem:[%s225 + $0x30] sm:$0xff]
    %v233 = vld [vmem:[%s225 + $0x38] sm:$0xff]
    %v234 = vld [vmem:[%s225 + $0x40] sm:$0xff]
    %v235 = vld [vmem:[%s225 + $0x48] sm:$0xff]
    %v236 = vld [vmem:[%s225 + $0x50] sm:$0xff]
    %v237 = vld [vmem:[%s225 + $0x58] sm:$0xff]
    %v238 = vld [vmem:[%s225 + $0x60] sm:$0x3]
    %v240 = vsel %vm51, %v226, 0
    %v243 = vsel %vm51, %v227, 0
    %v246 = vsel %vm51, %v228, 0
    %v249 = vsel %vm51, %v229, 0
    %v252 = vsel %vm51, %v230, 0
    %v255 = vsel %vm51, %v231, 0
    %v258 = vsel %vm51, %v232, 0
    %v261 = vsel %vm51, %v233, 0
    %v264 = vsel %vm51, %v234, 0
    %v267 = vsel %vm51, %v235, 0
    %v270 = vsel %vm51, %v236, 0
    %v273 = vsel %vm51, %v237, 0
    %v276 = vsel %vm51, %v238, 0
    %278 = vmatprep.subr.mxu0 0.0
    %279 = vmatpush1.msra.mxu0 %v33
    %280 = vmatprep.subr.mxu0 0.0
    %281 = vmatpush1.msra.mxu0 %v34
    %282 = vmatprep.subr.mxu0 0.0
    %283 = vmatpush1.msra.mxu0 %v35
    %284 = vmatprep.subr.mxu0 0.0
    %285 = vmatpush1.msra.mxu0 %v36
    %286 = vmatprep.subr.mxu0 0.0
    %287 = vmatpush1.msra.mxu0 %v93
    %288 = vmatprep.subr.mxu0 0.0
    %289 = vmatpush1.msra.mxu0 0.0
    %290 = vmatprep.subr.mxu0 0.0
    %291 = vmatpush1.msra.mxu0 0.0
    %292 = vmatprep.subr.mxu0 0.0
    %293 = vmatpush1.msra.mxu0 0.0
    %294 = vmatprep.subr.mxu0 0.0
    %295 = vmatpush1.msra.mxu0 0.0
    %296 = vmatprep.subr.mxu0 0.0
    %297 = vmatpush1.msra.mxu0 0.0
    %298 = vmatprep.subr.mxu0 0.0
    %299 = vmatpush1.msra.mxu0 0.0
    %300 = vmatprep.subr.mxu0 0.0
    %301 = vmatpush1.msra.mxu0 0.0
    %302 = vmatprep.subr.mxu0 0.0
    %303 = vmatpush1.msra.mxu0 0.0
    %304 = vmatprep.subr.mxu0 0.0
    %305 = vmatpush1.msra.mxu0 0.0
    %306 = vmatprep.subr.mxu0 0.0
    %307 = vmatpush1.msra.mxu0 0.0
    %308 = vmatprep.subr.mxu0 0.0
    %309 = vmatpush1.msra.mxu0 0.0
    %310 = vmatprep.subr.mxu0 0.0
    %311 = vmatpush1.msra.mxu0 0.0
    %312 = vmatprep.subr.mxu0 0.0
    %313 = vmatpush1.msra.mxu0 0.0
    %314 = vmatprep.subr.mxu0 0.0
    %315 = vmatpush1.msra.mxu0 0.0
    %316 = vmatprep.subr.mxu0 0.0
    %317 = vmatpush1.msra.mxu0 0.0
    %318 = vmatprep.subr.mxu0 0.0
    %319 = vmatpush1.msra.mxu0 0.0
    %320 = vmatprep.subr.mxu0 0.0
    %321 = vmatpush1.msra.mxu0 0.0
    %322 = vmatprep.subr.mxu0 0.0
    %323 = vmatpush1.msra.mxu0 0.0
    %324 = vmatprep.subr.mxu0 0.0
    %325 = vmatpush1.msra.mxu0 0.0
    %326 = vmatprep.subr.mxu0 0.0
    %327 = vmatpush1.msra.mxu0 0.0
    %328 = vmatprep.subr.mxu0 0.0
    %329 = vmatpush1.msra.mxu0 0.0
    %330 = vmatprep.subr.mxu0 0.0
    %331 = vmatpush1.msra.mxu0 0.0
    %332 = vmatprep.subr.mxu0 0.0
    %333 = vmatpush1.msra.mxu0 0.0
    %334 = vmatprep.subr.mxu0 0.0
    %335 = vmatpush1.msra.mxu0 0.0
    %336 = vmatprep.subr.mxu0 0.0
    %337 = vmatpush1.msra.mxu0 0.0
    %338 = vmatprep.subr.mxu0 0.0
    %339 = vmatpush1.msra.mxu0 0.0
    %340 = vmatprep.subr.mxu0 0.0
    %341 = vmatpush1.msra.mxu0 0.0
    %342 = vmatprep.mubr.f32.mxu0 0.0
    %343 = vmatmul.mubr.f32.gmra.mrb[0].mxu0 %v240
    %v344 = vpop.f32.mrb[0].mxu0
    %v345 = vadd.f32 0.0, %v344
    %v346 = vpop.f32.mrb[0].mxu0
    %347 = vmatprep.mubr.f32.mxu0 0.0
    %348 = vmatmul.mubr.f32.gmra.mrb[0].mxu0 %v243
    %v349 = vpop.f32.mrb[0].mxu0
    %v350 = vadd.f32 0.0, %v349
    %v351 = vpop.f32.mrb[0].mxu0
    %352 = vmatprep.mubr.f32.mxu0 0.0
    %353 = vmatmul.mubr.f32.gmra.mrb[0].mxu0 %v246
    %v354 = vpop.f32.mrb[0].mxu0
    %v355 = vadd.f32 0.0, %v354
    %v356 = vpop.f32.mrb[0].mxu0
    %357 = vmatprep.mubr.f32.mxu0 0.0
    %358 = vmatmul.mubr.f32.gmra.mrb[0].mxu0 %v249
    %v359 = vpop.f32.mrb[0].mxu0
    %v360 = vadd.f32 0.0, %v359
    %v361 = vpop.f32.mrb[0].mxu0
    %362 = vmatprep.mubr.f32.mxu0 0.0
    %363 = vmatmul.mubr.f32.gmra.mrb[0].mxu0 %v252
    %v364 = vpop.f32.mrb[0].mxu0
    %v365 = vadd.f32 0.0, %v364
    %v366 = vpop.f32.mrb[0].mxu0
    %367 = vmatprep.mubr.f32.mxu0 0.0
    %368 = vmatmul.mubr.f32.gmra.mrb[0].mxu0 %v255
    %v369 = vpop.f32.mrb[0].mxu0
    %v370 = vadd.f32 0.0, %v369
    %v371 = vpop.f32.mrb[0].mxu0
    %372 = vmatprep.mubr.f32.mxu0 0.0
    %373 = vmatmul.mubr.f32.gmra.mrb[0].mxu0 %v258
    %v374 = vpop.f32.mrb[0].mxu0
    %v375 = vadd.f32 0.0, %v374
    %v376 = vpop.f32.mrb[0].mxu0
    %377 = vmatprep.mubr.f32.mxu0 0.0
    %378 = vmatmul.mubr.f32.gmra.mrb[0].mxu0 %v261
    %v379 = vpop.f32.mrb[0].mxu0
    %v380 = vadd.f32 0.0, %v379
    %v381 = vpop.f32.mrb[0].mxu0
    %382 = vmatprep.mubr.f32.mxu0 0.0
    %383 = vmatmul.mubr.f32.gmra.mrb[0].mxu0 %v264
    %v384 = vpop.f32.mrb[0].mxu0
    %v385 = vadd.f32 0.0, %v384
    %v386 = vpop.f32.mrb[0].mxu0
    %387 = vmatprep.mubr.f32.mxu0 0.0
    %388 = vmatmul.mubr.f32.gmra.mrb[0].mxu0 %v267
    %v389 = vpop.f32.mrb[0].mxu0
    %v390 = vadd.f32 0.0, %v389
    %v391 = vpop.f32.mrb[0].mxu0
    %392 = vmatprep.mubr.f32.mxu0 0.0
    %393 = vmatmul.mubr.f32.gmra.mrb[0].mxu0 %v270
    %v394 = vpop.f32.mrb[0].mxu0
    %v395 = vadd.f32 0.0, %v394
    %v396 = vpop.f32.mrb[0].mxu0
    %397 = vmatprep.mubr.f32.mxu0 0.0
    %398 = vmatmul.mubr.f32.gmra.mrb[0].mxu0 %v273
    %v399 = vpop.f32.mrb[0].mxu0
    %v400 = vadd.f32 0.0, %v399
    %v401 = vpop.f32.mrb[0].mxu0
    %402 = vmatprep.mubr.f32.mxu0 0.0
    %403 = vmatmul.mubr.f32.gmra.mrb[0].mxu0 %v276
    %v404 = vpop.f32.mrb[0].mxu0
    %v405 = vadd.f32 0.0, %v404
    %v406 = vpop.f32.mrb[0].mxu0
    %407 = vdwg.mxu0
    %v408 = vmax.f32 %v162, %v345
    %v409 = vmax.f32 %v167, %v350
    %v410 = vmax.f32 %v172, %v355
    %v411 = vmax.f32 %v177, %v360
    %v412 = vmax.f32 %v182, %v365
    %v413 = vmax.f32 %v187, %v370
    %v414 = vmax.f32 %v192, %v375
    %v415 = vmax.f32 %v197, %v380
    %v416 = vmax.f32 %v202, %v385
    %v417 = vmax.f32 %v207, %v390
    %v418 = vmax.f32 %v212, %v395
    %v419 = vmax.f32 %v217, %v400
    %v420 = vmax.f32 %v222, %v405
    %s421 = scalar_lea.vmem %s0, 208
    %v422 = vld [vmem:[%s421] sm:$0xff]
    %v423 = vld [vmem:[%s421 + $0x8] sm:$0xff]
    %v424 = vld [vmem:[%s421 + $0x10] sm:$0xff]
    %v425 = vld [vmem:[%s421 + $0x18] sm:$0xff]
    %v426 = vld [vmem:[%s421 + $0x20] sm:$0xff]
    %v427 = vld [vmem:[%s421 + $0x28] sm:$0xff]
    %v428 = vld [vmem:[%s421 + $0x30] sm:$0xff]
    %v429 = vld [vmem:[%s421 + $0x38] sm:$0xff]
    %v430 = vld [vmem:[%s421 + $0x40] sm:$0xff]
    %v431 = vld [vmem:[%s421 + $0x48] sm:$0xff]
    %v432 = vld [vmem:[%s421 + $0x50] sm:$0xff]
    %v433 = vld [vmem:[%s421 + $0x58] sm:$0xff]
    %v434 = vld [vmem:[%s421 + $0x60] sm:$0x3]
    %v436 = vsel %vm51, %v422, 0
    %v439 = vsel %vm51, %v423, 0
    %v442 = vsel %vm51, %v424, 0
    %v445 = vsel %vm51, %v425, 0
    %v448 = vsel %vm51, %v426, 0
    %v451 = vsel %vm51, %v427, 0
    %v454 = vsel %vm51, %v428, 0
    %v457 = vsel %vm51, %v429, 0
    %v460 = vsel %vm51, %v430, 0
    %v463 = vsel %vm51, %v431, 0
    %v466 = vsel %vm51, %v432, 0
    %v469 = vsel %vm51, %v433, 0
    %v472 = vsel %vm51, %v434, 0
    %474 = vmatprep.subr.mxu0 0.0
    %475 = vmatpush1.msra.mxu0 %v33
    %476 = vmatprep.subr.mxu0 0.0
    %477 = vmatpush1.msra.mxu0 %v34
    %478 = vmatprep.subr.mxu0 0.0
    %479 = vmatpush1.msra.mxu0 %v35
    %480 = vmatprep.subr.mxu0 0.0
    %481 = vmatpush1.msra.mxu0 %v36
    %482 = vmatprep.subr.mxu0 0.0
    %483 = vmatpush1.msra.mxu0 %v93
    %484 = vmatprep.subr.mxu0 0.0
    %485 = vmatpush1.msra.mxu0 0.0
    %486 = vmatprep.subr.mxu0 0.0
    %487 = vmatpush1.msra.mxu0 0.0
    %488 = vmatprep.subr.mxu0 0.0
    %489 = vmatpush1.msra.mxu0 0.0
    %490 = vmatprep.subr.mxu0 0.0
    %491 = vmatpush1.msra.mxu0 0.0
    %492 = vmatprep.subr.mxu0 0.0
    %493 = vmatpush1.msra.mxu0 0.0
    %494 = vmatprep.subr.mxu0 0.0
    %495 = vmatpush1.msra.mxu0 0.0
    %496 = vmatprep.subr.mxu0 0.0
    %497 = vmatpush1.msra.mxu0 0.0
    %498 = vmatprep.subr.mxu0 0.0
    %499 = vmatpush1.msra.mxu0 0.0
    %500 = vmatprep.subr.mxu0 0.0
    %501 = vmatpush1.msra.mxu0 0.0
    %502 = vmatprep.subr.mxu0 0.0
    %503 = vmatpush1.msra.mxu0 0.0
    %504 = vmatprep.subr.mxu0 0.0
    %505 = vmatpush1.msra.mxu0 0.0
    %506 = vmatprep.subr.mxu0 0.0
    %507 = vmatpush1.msra.mxu0 0.0
    %508 = vmatprep.subr.mxu0 0.0
    %509 = vmatpush1.msra.mxu0 0.0
    %510 = vmatprep.subr.mxu0 0.0
    %511 = vmatpush1.msra.mxu0 0.0
    %512 = vmatprep.subr.mxu0 0.0
    %513 = vmatpush1.msra.mxu0 0.0
    %514 = vmatprep.subr.mxu0 0.0
    %515 = vmatpush1.msra.mxu0 0.0
    %516 = vmatprep.subr.mxu0 0.0
    %517 = vmatpush1.msra.mxu0 0.0
    %518 = vmatprep.subr.mxu0 0.0
    %519 = vmatpush1.msra.mxu0 0.0
    %520 = vmatprep.subr.mxu0 0.0
    %521 = vmatpush1.msra.mxu0 0.0
    %522 = vmatprep.subr.mxu0 0.0
    %523 = vmatpush1.msra.mxu0 0.0
    %524 = vmatprep.subr.mxu0 0.0
    %525 = vmatpush1.msra.mxu0 0.0
    %526 = vmatprep.subr.mxu0 0.0
    %527 = vmatpush1.msra.mxu0 0.0
    %528 = vmatprep.subr.mxu0 0.0
    %529 = vmatpush1.msra.mxu0 0.0
    %530 = vmatprep.subr.mxu0 0.0
    %531 = vmatpush1.msra.mxu0 0.0
    %532 = vmatprep.subr.mxu0 0.0
    %533 = vmatpush1.msra.mxu0 0.0
    %534 = vmatprep.subr.mxu0 0.0
    %535 = vmatpush1.msra.mxu0 0.0
    %536 = vmatprep.subr.mxu0 0.0
    %537 = vmatpush1.msra.mxu0 0.0
    %538 = vmatprep.mubr.f32.mxu0 0.0
    %539 = vmatmul.mubr.f32.gmra.mrb[0].mxu0 %v436
    %v540 = vpop.f32.mrb[0].mxu0
    %v541 = vadd.f32 0.0, %v540
    %v542 = vpop.f32.mrb[0].mxu0
    %543 = vmatprep.mubr.f32.mxu0 0.0
    %544 = vmatmul.mubr.f32.gmra.mrb[0].mxu0 %v439
    %v545 = vpop.f32.mrb[0].mxu0
    %v546 = vadd.f32 0.0, %v545
    %v547 = vpop.f32.mrb[0].mxu0
    %548 = vmatprep.mubr.f32.mxu0 0.0
    %549 = vmatmul.mubr.f32.gmra.mrb[0].mxu0 %v442
    %v550 = vpop.f32.mrb[0].mxu0
    %v551 = vadd.f32 0.0, %v550
    %v552 = vpop.f32.mrb[0].mxu0
    %553 = vmatprep.mubr.f32.mxu0 0.0
    %554 = vmatmul.mubr.f32.gmra.mrb[0].mxu0 %v445
    %v555 = vpop.f32.mrb[0].mxu0
    %v556 = vadd.f32 0.0, %v555
    %v557 = vpop.f32.mrb[0].mxu0
    %558 = vmatprep.mubr.f32.mxu0 0.0
    %559 = vmatmul.mubr.f32.gmra.mrb[0].mxu0 %v448
    %v560 = vpop.f32.mrb[0].mxu0
    %v561 = vadd.f32 0.0, %v560
    %v562 = vpop.f32.mrb[0].mxu0
    %563 = vmatprep.mubr.f32.mxu0 0.0
    %564 = vmatmul.mubr.f32.gmra.mrb[0].mxu0 %v451
    %v565 = vpop.f32.mrb[0].mxu0
    %v566 = vadd.f32 0.0, %v565
    %v567 = vpop.f32.mrb[0].mxu0
    %568 = vmatprep.mubr.f32.mxu0 0.0
    %569 = vmatmul.mubr.f32.gmra.mrb[0].mxu0 %v454
    %v570 = vpop.f32.mrb[0].mxu0
    %v571 = vadd.f32 0.0, %v570
    %v572 = vpop.f32.mrb[0].mxu0
    %573 = vmatprep.mubr.f32.mxu0 0.0
    %574 = vmatmul.mubr.f32.gmra.mrb[0].mxu0 %v457
    %v575 = vpop.f32.mrb[0].mxu0
    %v576 = vadd.f32 0.0, %v575
    %v577 = vpop.f32.mrb[0].mxu0
    %578 = vmatprep.mubr.f32.mxu0 0.0
    %579 = vmatmul.mubr.f32.gmra.mrb[0].mxu0 %v460
    %v580 = vpop.f32.mrb[0].mxu0
    %v581 = vadd.f32 0.0, %v580
    %v582 = vpop.f32.mrb[0].mxu0
    %583 = vmatprep.mubr.f32.mxu0 0.0
    %584 = vmatmul.mubr.f32.gmra.mrb[0].mxu0 %v463
    %v585 = vpop.f32.mrb[0].mxu0
    %v586 = vadd.f32 0.0, %v585
    %v587 = vpop.f32.mrb[0].mxu0
    %588 = vmatprep.mubr.f32.mxu0 0.0
    %589 = vmatmul.mubr.f32.gmra.mrb[0].mxu0 %v466
    %v590 = vpop.f32.mrb[0].mxu0
    %v591 = vadd.f32 0.0, %v590
    %v592 = vpop.f32.mrb[0].mxu0
    %593 = vmatprep.mubr.f32.mxu0 0.0
    %594 = vmatmul.mubr.f32.gmra.mrb[0].mxu0 %v469
    %v595 = vpop.f32.mrb[0].mxu0
    %v596 = vadd.f32 0.0, %v595
    %v597 = vpop.f32.mrb[0].mxu0
    %598 = vmatprep.mubr.f32.mxu0 0.0
    %599 = vmatmul.mubr.f32.gmra.mrb[0].mxu0 %v472
    %v600 = vpop.f32.mrb[0].mxu0
    %v601 = vadd.f32 0.0, %v600
    %v602 = vpop.f32.mrb[0].mxu0
    %603 = vdwg.mxu0
    %v604 = vmax.f32 %v408, %v541
    %v605 = vmax.f32 %v409, %v546
    %v606 = vmax.f32 %v410, %v551
    %v607 = vmax.f32 %v411, %v556
    %v608 = vmax.f32 %v412, %v561
    %v609 = vmax.f32 %v413, %v566
    %v610 = vmax.f32 %v414, %v571
    %v611 = vmax.f32 %v415, %v576
    %v612 = vmax.f32 %v416, %v581
    %v613 = vmax.f32 %v417, %v586
    %v614 = vmax.f32 %v418, %v591
    %v615 = vmax.f32 %v419, %v596
    %v616 = vmax.f32 %v420, %v601
    %s617 = scalar_lea.vmem %s0, 312
    %v618 = vld [vmem:[%s617] sm:$0xff]
    %v619 = vld [vmem:[%s617 + $0x8] sm:$0xff]
    %v620 = vld [vmem:[%s617 + $0x10] sm:$0xff]
    %v621 = vld [vmem:[%s617 + $0x18] sm:$0xff]
    %v622 = vld [vmem:[%s617 + $0x20] sm:$0xff]
    %v623 = vld [vmem:[%s617 + $0x28] sm:$0xff]
    %v624 = vld [vmem:[%s617 + $0x30] sm:$0xff]
    %v625 = vld [vmem:[%s617 + $0x38] sm:$0xff]
    %v626 = vld [vmem:[%s617 + $0x40] sm:$0xff]
    %v627 = vld [vmem:[%s617 + $0x48] sm:$0xff]
    %v628 = vld [vmem:[%s617 + $0x50] sm:$0xff]
    %v629 = vld [vmem:[%s617 + $0x58] sm:$0xff]
    %v630 = vld [vmem:[%s617 + $0x60] sm:$0x3]
    %v632 = vsel %vm51, %v618, 0
    %v635 = vsel %vm51, %v619, 0
    %v638 = vsel %vm51, %v620, 0
    %v641 = vsel %vm51, %v621, 0
    %v644 = vsel %vm51, %v622, 0
    %v647 = vsel %vm51, %v623, 0
    %v650 = vsel %vm51, %v624, 0
    %v653 = vsel %vm51, %v625, 0
    %v656 = vsel %vm51, %v626, 0
    %v659 = vsel %vm51, %v627, 0
    %v662 = vsel %vm51, %v628, 0
    %v665 = vsel %vm51, %v629, 0
    %v668 = vsel %vm51, %v630, 0
    %670 = vmatprep.subr.mxu0 0.0
    %671 = vmatpush1.msra.mxu0 %v33
    %672 = vmatprep.subr.mxu0 0.0
    %673 = vmatpush1.msra.mxu0 %v34
    %674 = vmatprep.subr.mxu0 0.0
    %675 = vmatpush1.msra.mxu0 %v35
    %676 = vmatprep.subr.mxu0 0.0
    %677 = vmatpush1.msra.mxu0 %v36
    %678 = vmatprep.subr.mxu0 0.0
    %679 = vmatpush1.msra.mxu0 %v93
    %680 = vmatprep.subr.mxu0 0.0
    %681 = vmatpush1.msra.mxu0 0.0
    %682 = vmatprep.subr.mxu0 0.0
    %683 = vmatpush1.msra.mxu0 0.0
    %684 = vmatprep.subr.mxu0 0.0
    %685 = vmatpush1.msra.mxu0 0.0
    %686 = vmatprep.subr.mxu0 0.0
    %687 = vmatpush1.msra.mxu0 0.0
    %688 = vmatprep.subr.mxu0 0.0
    %689 = vmatpush1.msra.mxu0 0.0
    %690 = vmatprep.subr.mxu0 0.0
    %691 = vmatpush1.msra.mxu0 0.0
    %692 = vmatprep.subr.mxu0 0.0
    %693 = vmatpush1.msra.mxu0 0.0
    %694 = vmatprep.subr.mxu0 0.0
    %695 = vmatpush1.msra.mxu0 0.0
    %696 = vmatprep.subr.mxu0 0.0
    %697 = vmatpush1.msra.mxu0 0.0
    %698 = vmatprep.subr.mxu0 0.0
    %699 = vmatpush1.msra.mxu0 0.0
    %700 = vmatprep.subr.mxu0 0.0
    %701 = vmatpush1.msra.mxu0 0.0
    %702 = vmatprep.subr.mxu0 0.0
    %703 = vmatpush1.msra.mxu0 0.0
    %704 = vmatprep.subr.mxu0 0.0
    %705 = vmatpush1.msra.mxu0 0.0
    %706 = vmatprep.subr.mxu0 0.0
    %707 = vmatpush1.msra.mxu0 0.0
    %708 = vmatprep.subr.mxu0 0.0
    %709 = vmatpush1.msra.mxu0 0.0
    %710 = vmatprep.subr.mxu0 0.0
    %711 = vmatpush1.msra.mxu0 0.0
    %712 = vmatprep.subr.mxu0 0.0
    %713 = vmatpush1.msra.mxu0 0.0
    %714 = vmatprep.subr.mxu0 0.0
    %715 = vmatpush1.msra.mxu0 0.0
    %716 = vmatprep.subr.mxu0 0.0
    %717 = vmatpush1.msra.mxu0 0.0
    %718 = vmatprep.subr.mxu0 0.0
    %719 = vmatpush1.msra.mxu0 0.0
    %720 = vmatprep.subr.mxu0 0.0
    %721 = vmatpush1.msra.mxu0 0.0
    %722 = vmatprep.subr.mxu0 0.0
    %723 = vmatpush1.msra.mxu0 0.0
    %724 = vmatprep.subr.mxu0 0.0
    %725 = vmatpush1.msra.mxu0 0.0
    %726 = vmatprep.subr.mxu0 0.0
    %727 = vmatpush1.msra.mxu0 0.0
    %728 = vmatprep.subr.mxu0 0.0
    %729 = vmatpush1.msra.mxu0 0.0
    %730 = vmatprep.subr.mxu0 0.0
    %731 = vmatpush1.msra.mxu0 0.0
    %732 = vmatprep.subr.mxu0 0.0
    %733 = vmatpush1.msra.mxu0 0.0
    %734 = vmatprep.mubr.f32.mxu0 0.0
    %735 = vmatmul.mubr.f32.gmra.mrb[0].mxu0 %v632
    %v736 = vpop.f32.mrb[0].mxu0
    %v737 = vadd.f32 0.0, %v736
    %v738 = vpop.f32.mrb[0].mxu0
    %739 = vmatprep.mubr.f32.mxu0 0.0
    %740 = vmatmul.mubr.f32.gmra.mrb[0].mxu0 %v635
    %v741 = vpop.f32.mrb[0].mxu0
    %v742 = vadd.f32 0.0, %v741
    %v743 = vpop.f32.mrb[0].mxu0
    %744 = vmatprep.mubr.f32.mxu0 0.0
    %745 = vmatmul.mubr.f32.gmra.mrb[0].mxu0 %v638
    %v746 = vpop.f32.mrb[0].mxu0
    %v747 = vadd.f32 0.0, %v746
    %v748 = vpop.f32.mrb[0].mxu0
    %749 = vmatprep.mubr.f32.mxu0 0.0
    %750 = vmatmul.mubr.f32.gmra.mrb[0].mxu0 %v641
    %v751 = vpop.f32.mrb[0].mxu0
    %v752 = vadd.f32 0.0, %v751
    %v753 = vpop.f32.mrb[0].mxu0
    %754 = vmatprep.mubr.f32.mxu0 0.0
    %755 = vmatmul.mubr.f32.gmra.mrb[0].mxu0 %v644
    %v756 = vpop.f32.mrb[0].mxu0
    %v757 = vadd.f32 0.0, %v756
    %v758 = vpop.f32.mrb[0].mxu0
    %759 = vmatprep.mubr.f32.mxu0 0.0
    %760 = vmatmul.mubr.f32.gmra.mrb[0].mxu0 %v647
    %v761 = vpop.f32.mrb[0].mxu0
    %v762 = vadd.f32 0.0, %v761
    %v763 = vpop.f32.mrb[0].mxu0
    %764 = vmatprep.mubr.f32.mxu0 0.0
    %765 = vmatmul.mubr.f32.gmra.mrb[0].mxu0 %v650
    %v766 = vpop.f32.mrb[0].mxu0
    %v767 = vadd.f32 0.0, %v766
    %v768 = vpop.f32.mrb[0].mxu0
    %769 = vmatprep.mubr.f32.mxu0 0.0
    %770 = vmatmul.mubr.f32.gmra.mrb[0].mxu0 %v653
    %v771 = vpop.f32.mrb[0].mxu0
    %v772 = vadd.f32 0.0, %v771
    %v773 = vpop.f32.mrb[0].mxu0
    %774 = vmatprep.mubr.f32.mxu0 0.0
    %775 = vmatmul.mubr.f32.gmra.mrb[0].mxu0 %v656
    %v776 = vpop.f32.mrb[0].mxu0
    %v777 = vadd.f32 0.0, %v776
    %v778 = vpop.f32.mrb[0].mxu0
    %779 = vmatprep.mubr.f32.mxu0 0.0
    %780 = vmatmul.mubr.f32.gmra.mrb[0].mxu0 %v659
    %v781 = vpop.f32.mrb[0].mxu0
    %v782 = vadd.f32 0.0, %v781
    %v783 = vpop.f32.mrb[0].mxu0
    %784 = vmatprep.mubr.f32.mxu0 0.0
    %785 = vmatmul.mubr.f32.gmra.mrb[0].mxu0 %v662
    %v786 = vpop.f32.mrb[0].mxu0
    %v787 = vadd.f32 0.0, %v786
    %v788 = vpop.f32.mrb[0].mxu0
    %789 = vmatprep.mubr.f32.mxu0 0.0
    %790 = vmatmul.mubr.f32.gmra.mrb[0].mxu0 %v665
    %v791 = vpop.f32.mrb[0].mxu0
    %v792 = vadd.f32 0.0, %v791
    %v793 = vpop.f32.mrb[0].mxu0
    %794 = vmatprep.mubr.f32.mxu0 0.0
    %795 = vmatmul.mubr.f32.gmra.mrb[0].mxu0 %v668
    %v796 = vpop.f32.mrb[0].mxu0
    %v797 = vadd.f32 0.0, %v796
    %v798 = vpop.f32.mrb[0].mxu0
    %799 = vdwg.mxu0
    %v800 = vmax.f32 %v604, %v737
    %v801 = vmax.f32 %v605, %v742
    %v802 = vmax.f32 %v606, %v747
    %v803 = vmax.f32 %v607, %v752
    %v804 = vmax.f32 %v608, %v757
    %v805 = vmax.f32 %v609, %v762
    %v806 = vmax.f32 %v610, %v767
    %v807 = vmax.f32 %v611, %v772
    %v808 = vmax.f32 %v612, %v777
    %v809 = vmax.f32 %v613, %v782
    %v810 = vmax.f32 %v614, %v787
    %v811 = vmax.f32 %v615, %v792
    %v812 = vmax.f32 %v616, %v797
    %v813 = vld [vmem:[%s2] sm:$0x1]
    %v815 = vlaneseq
    %v816 = vshrl.u32 %v815, 7
    %v817 = vsub.s32 0, %v816
    %v818 = vrot.slane %v813, %v817
    %v820 = vadd.f32 %v800, %v818
    %v821 = vadd.f32 %v801, %v818
    %v822 = vadd.f32 %v802, %v818
    %v823 = vadd.f32 %v803, %v818
    %v824 = vadd.f32 %v804, %v818
    %v825 = vadd.f32 %v805, %v818
    %v826 = vadd.f32 %v806, %v818
    %v827 = vadd.f32 %v807, %v818
    %v828 = vadd.f32 %v808, %v818
    %v829 = vadd.f32 %v809, %v818
    %v830 = vadd.f32 %v810, %v818
    %v831 = vadd.f32 %v811, %v818
    %v832 = vadd.f32 %v812, %v818
    %vm833 = vcmask 64512
    %834 = vst.msk [vmem:[#allocation2] sm:$0xff] %vm833, %v820
    %835 = vst.msk [vmem:[#allocation2 + $0x8] sm:$0xff] %vm833, %v821
    %836 = vst.msk [vmem:[#allocation2 + $0x10] sm:$0xff] %vm833, %v822
    %837 = vst.msk [vmem:[#allocation2 + $0x18] sm:$0xff] %vm833, %v823
    %838 = vst.msk [vmem:[#allocation2 + $0x20] sm:$0xff] %vm833, %v824
    %839 = vst.msk [vmem:[#allocation2 + $0x28] sm:$0xff] %vm833, %v825
    %840 = vst.msk [vmem:[#allocation2 + $0x30] sm:$0xff] %vm833, %v826
    %841 = vst.msk [vmem:[#allocation2 + $0x38] sm:$0xff] %vm833, %v827
    %842 = vst.msk [vmem:[#allocation2 + $0x40] sm:$0xff] %vm833, %v828
    %843 = vst.msk [vmem:[#allocation2 + $0x48] sm:$0xff] %vm833, %v829
    %844 = vst.msk [vmem:[#allocation2 + $0x50] sm:$0xff] %vm833, %v830
    %845 = vst.msk [vmem:[#allocation2 + $0x58] sm:$0xff] %vm833, %v831
    %vm846 = vcmask 58368
    %847 = vst.msk [vmem:[#allocation2 + $0x60] sm:$0x3] %vm846, %v832
    %v848 = vld [vmem:[#allocation2] sm:$0xf]
    %vm849 = vcmask 60416
    %850 = vst.msk [vmem:[#allocation3] sm:$0xf] %vm849, %v848
    %v851 = vld [vmem:[#allocation2 + $0x7] sm:$0xf]
    %852 = vst.msk [vmem:[#allocation3 + $0x4] sm:$0xf] %vm849, %v851
    %v853 = vld [vmem:[#allocation2 + $0xe] sm:$0xf]
    %854 = vst.msk [vmem:[#allocation3 + $0x8] sm:$0xf] %vm849, %v853
    %v855 = vld [vmem:[#allocation2 + $0x15] sm:$0xf]
    %856 = vst.msk [vmem:[#allocation3 + $0xc] sm:$0xf] %vm849, %v855
    %v857 = vld [vmem:[#allocation2 + $0x31] sm:$0xf]
    %858 = vst.msk [vmem:[#allocation3 + $0x10] sm:$0xf] %vm849, %v857
    %v859 = vld [vmem:[#allocation2 + $0x38] sm:$0xf]
    %860 = vst.msk [vmem:[#allocation3 + $0x14] sm:$0xf] %vm849, %v859
    %v861 = vld [vmem:[#allocation2 + $0x3f] sm:$0xf]
    %862 = vst.msk [vmem:[#allocation3 + $0x18] sm:$0xf] %vm849, %v861
    %v863 = vld [vmem:[#allocation2 + $0x46] sm:$0xf]
    %864 = vst.msk [vmem:[#allocation3 + $0x1c] sm:$0xf] %vm849, %v863
    %v865 = vld [vmem:[#allocation3] sm:$0xff]
    %v866 = vld [vmem:[#allocation3 + $0x8] sm:$0xff]
    %v867 = vld [vmem:[#allocation3 + $0x10] sm:$0xff]
    %v868 = vld [vmem:[#allocation3 + $0x18] sm:$0xff]
    %v869 = vld [vmem:[%s3] sm:$0xff]
    %v870 = vld [vmem:[#allocation2 + $0x1] sm:$0xf]
    %871 = vst.msk [vmem:[#allocation3] sm:$0xf] %vm849, %v870
    %v872 = vld [vmem:[#allocation2 + $0x8] sm:$0xf]
    %873 = vst.msk [vmem:[#allocation3 + $0x4] sm:$0xf] %vm849, %v872
    %v874 = vld [vmem:[#allocation2 + $0xf] sm:$0xf]
    %875 = vst.msk [vmem:[#allocation3 + $0x8] sm:$0xf] %vm849, %v874
    %v876 = vld [vmem:[#allocation2 + $0x16] sm:$0xf]
    %877 = vst.msk [vmem:[#allocation3 + $0xc] sm:$0xf] %vm849, %v876
    %v878 = vld [vmem:[#allocation2 + $0x32] sm:$0xf]
    %879 = vst.msk [vmem:[#allocation3 + $0x10] sm:$0xf] %vm849, %v878
    %v880 = vld [vmem:[#allocation2 + $0x39] sm:$0xf]
    %881 = vst.msk [vmem:[#allocation3 + $0x14] sm:$0xf] %vm849, %v880
    %v882 = vld [vmem:[#allocation2 + $0x40] sm:$0xf]
    %883 = vst.msk [vmem:[#allocation3 + $0x18] sm:$0xf] %vm849, %v882
    %v884 = vld [vmem:[#allocation2 + $0x47] sm:$0xf]
    %885 = vst.msk [vmem:[#allocation3 + $0x1c] sm:$0xf] %vm849, %v884
    %v886 = vld [vmem:[#allocation3] sm:$0xff]
    %v887 = vld [vmem:[#allocation3 + $0x8] sm:$0xff]
    %v888 = vld [vmem:[#allocation3 + $0x10] sm:$0xff]
    %v889 = vld [vmem:[#allocation3 + $0x18] sm:$0xff]
    %v890 = vld [vmem:[%s3 + $0x8] sm:$0xff]
    %v892 = vsel %vm833, %v886, 0
    %v895 = vsel %vm833, %v887, 0
    %v898 = vsel %vm833, %v888, 0
    %v901 = vsel %vm833, %v889, 0
    %903 = vmatprep.subr.mxu0 0.0
    %904 = vmatpush1.msra.mxu0 %v890
    %905 = vmatprep.subr.mxu0 0.0
    %906 = vmatpush1.msra.mxu0 0.0
    %907 = vmatprep.subr.mxu0 0.0
    %908 = vmatpush1.msra.mxu0 0.0
    %909 = vmatprep.subr.mxu0 0.0
    %910 = vmatpush1.msra.mxu0 0.0
    %911 = vmatprep.subr.mxu0 0.0
    %912 = vmatpush1.msra.mxu0 0.0
    %913 = vmatprep.subr.mxu0 0.0
    %914 = vmatpush1.msra.mxu0 0.0
    %915 = vmatprep.subr.mxu0 0.0
    %916 = vmatpush1.msra.mxu0 0.0
    %917 = vmatprep.subr.mxu0 0.0
    %918 = vmatpush1.msra.mxu0 0.0
    %919 = vmatprep.subr.mxu0 0.0
    %920 = vmatpush1.msra.mxu0 0.0
    %921 = vmatprep.subr.mxu0 0.0
    %922 = vmatpush1.msra.mxu0 0.0
    %923 = vmatprep.subr.mxu0 0.0
    %924 = vmatpush1.msra.mxu0 0.0
    %925 = vmatprep.subr.mxu0 0.0
    %926 = vmatpush1.msra.mxu0 0.0
    %927 = vmatprep.subr.mxu0 0.0
    %928 = vmatpush1.msra.mxu0 0.0
    %929 = vmatprep.subr.mxu0 0.0
    %930 = vmatpush1.msra.mxu0 0.0
    %931 = vmatprep.subr.mxu0 0.0
    %932 = vmatpush1.msra.mxu0 0.0
    %933 = vmatprep.subr.mxu0 0.0
    %934 = vmatpush1.msra.mxu0 0.0
    %935 = vmatprep.subr.mxu0 0.0
    %936 = vmatpush1.msra.mxu0 0.0
    %937 = vmatprep.subr.mxu0 0.0
    %938 = vmatpush1.msra.mxu0 0.0
    %939 = vmatprep.subr.mxu0 0.0
    %940 = vmatpush1.msra.mxu0 0.0
    %941 = vmatprep.subr.mxu0 0.0
    %942 = vmatpush1.msra.mxu0 0.0
    %943 = vmatprep.subr.mxu0 0.0
    %944 = vmatpush1.msra.mxu0 0.0
    %945 = vmatprep.subr.mxu0 0.0
    %946 = vmatpush1.msra.mxu0 0.0
    %947 = vmatprep.subr.mxu0 0.0
    %948 = vmatpush1.msra.mxu0 0.0
    %949 = vmatprep.subr.mxu0 0.0
    %950 = vmatpush1.msra.mxu0 0.0
    %951 = vmatprep.subr.mxu0 0.0
    %952 = vmatpush1.msra.mxu0 0.0
    %953 = vmatprep.subr.mxu0 0.0
    %954 = vmatpush1.msra.mxu0 0.0
    %955 = vmatprep.subr.mxu0 0.0
    %956 = vmatpush1.msra.mxu0 0.0
    %957 = vmatprep.subr.mxu0 0.0
    %958 = vmatpush1.msra.mxu0 0.0
    %959 = vmatprep.subr.mxu0 0.0
    %960 = vmatpush1.msra.mxu0 0.0
    %961 = vmatprep.subr.mxu0 0.0
    %962 = vmatpush1.msra.mxu0 0.0
    %963 = vmatprep.subr.mxu0 0.0
    %964 = vmatpush1.msra.mxu0 0.0
    %965 = vmatprep.subr.mxu0 0.0
    %966 = vmatpush1.msra.mxu0 0.0
    %967 = vmatprep.mubr.f32.mxu0 0.0
    %968 = vmatmul.mubr.f32.gmra.mrb[0].mxu0 %v892
    %v969 = vpop.f32.mrb[0].mxu0
    %v970 = vadd.f32 0.0, %v969
    %v971 = vpop.f32.mrb[0].mxu0
    %972 = vmatprep.mubr.f32.mxu0 0.0
    %973 = vmatmul.mubr.f32.gmra.mrb[0].mxu0 %v895
    %v974 = vpop.f32.mrb[0].mxu0
    %v975 = vadd.f32 0.0, %v974
    %v976 = vpop.f32.mrb[0].mxu0
    %977 = vmatprep.mubr.f32.mxu0 0.0
    %978 = vmatmul.mubr.f32.gmra.mrb[0].mxu0 %v898
    %v979 = vpop.f32.mrb[0].mxu0
    %v980 = vadd.f32 0.0, %v979
    %v981 = vpop.f32.mrb[0].mxu0
    %982 = vmatprep.mubr.f32.mxu0 0.0
    %983 = vmatmul.mubr.f32.gmra.mrb[0].mxu0 %v901
    %v984 = vpop.f32.mrb[0].mxu0
    %v985 = vadd.f32 0.0, %v984
    %v986 = vpop.f32.mrb[0].mxu0
    %987 = vdwg.mxu0
    %v989 = vsel %vm833, %v865, 0
    %v992 = vsel %vm833, %v866, 0
    %v995 = vsel %vm833, %v867, 0
    %v998 = vsel %vm833, %v868, 0
    %1000 = vmatprep.subr.mxu0 0.0
    %1001 = vmatpush1.msra.mxu0 %v869
    %1002 = vmatprep.subr.mxu0 0.0
    %1003 = vmatpush1.msra.mxu0 0.0
    %1004 = vmatprep.subr.mxu0 0.0
    %1005 = vmatpush1.msra.mxu0 0.0
    %1006 = vmatprep.subr.mxu0 0.0
    %1007 = vmatpush1.msra.mxu0 0.0
    %1008 = vmatprep.subr.mxu0 0.0
    %1009 = vmatpush1.msra.mxu0 0.0
    %1010 = vmatprep.subr.mxu0 0.0
    %1011 = vmatpush1.msra.mxu0 0.0
    %1012 = vmatprep.subr.mxu0 0.0
    %1013 = vmatpush1.msra.mxu0 0.0
    %1014 = vmatprep.subr.mxu0 0.0
    %1015 = vmatpush1.msra.mxu0 0.0
    %1016 = vmatprep.subr.mxu0 0.0
    %1017 = vmatpush1.msra.mxu0 0.0
    %1018 = vmatprep.subr.mxu0 0.0
    %1019 = vmatpush1.msra.mxu0 0.0
    %1020 = vmatprep.subr.mxu0 0.0
    %1021 = vmatpush1.msra.mxu0 0.0
    %1022 = vmatprep.subr.mxu0 0.0
    %1023 = vmatpush1.msra.mxu0 0.0
    %1024 = vmatprep.subr.mxu0 0.0
    %1025 = vmatpush1.msra.mxu0 0.0
    %1026 = vmatprep.subr.mxu0 0.0
    %1027 = vmatpush1.msra.mxu0 0.0
    %1028 = vmatprep.subr.mxu0 0.0
    %1029 = vmatpush1.msra.mxu0 0.0
    %1030 = vmatprep.subr.mxu0 0.0
    %1031 = vmatpush1.msra.mxu0 0.0
    %1032 = vmatprep.subr.mxu0 0.0
    %1033 = vmatpush1.msra.mxu0 0.0
    %1034 = vmatprep.subr.mxu0 0.0
    %1035 = vmatpush1.msra.mxu0 0.0
    %1036 = vmatprep.subr.mxu0 0.0
    %1037 = vmatpush1.msra.mxu0 0.0
    %1038 = vmatprep.subr.mxu0 0.0
    %1039 = vmatpush1.msra.mxu0 0.0
    %1040 = vmatprep.subr.mxu0 0.0
    %1041 = vmatpush1.msra.mxu0 0.0
    %1042 = vmatprep.subr.mxu0 0.0
    %1043 = vmatpush1.msra.mxu0 0.0
    %1044 = vmatprep.subr.mxu0 0.0
    %1045 = vmatpush1.msra.mxu0 0.0
    %1046 = vmatprep.subr.mxu0 0.0
    %1047 = vmatpush1.msra.mxu0 0.0
    %1048 = vmatprep.subr.mxu0 0.0
    %1049 = vmatpush1.msra.mxu0 0.0
    %1050 = vmatprep.subr.mxu0 0.0
    %1051 = vmatpush1.msra.mxu0 0.0
    %1052 = vmatprep.subr.mxu0 0.0
    %1053 = vmatpush1.msra.mxu0 0.0
    %1054 = vmatprep.subr.mxu0 0.0
    %1055 = vmatpush1.msra.mxu0 0.0
    %1056 = vmatprep.subr.mxu0 0.0
    %1057 = vmatpush1.msra.mxu0 0.0
    %1058 = vmatprep.subr.mxu0 0.0
    %1059 = vmatpush1.msra.mxu0 0.0
    %1060 = vmatprep.subr.mxu0 0.0
    %1061 = vmatpush1.msra.mxu0 0.0
    %1062 = vmatprep.subr.mxu0 0.0
    %1063 = vmatpush1.msra.mxu0 0.0
    %1064 = vmatprep.mubr.f32.mxu0 0.0
    %1065 = vmatmul.mubr.f32.gmra.mrb[0].mxu0 %v989
    %v1066 = vpop.f32.mrb[0].mxu0
    %v1067 = vadd.f32 %v970, %v1066
    %v1068 = vpop.f32.mrb[0].mxu0
    %1069 = vmatprep.mubr.f32.mxu0 0.0
    %1070 = vmatmul.mubr.f32.gmra.mrb[0].mxu0 %v992
    %v1071 = vpop.f32.mrb[0].mxu0
    %v1072 = vadd.f32 %v975, %v1071
    %v1073 = vpop.f32.mrb[0].mxu0
    %1074 = vmatprep.mubr.f32.mxu0 0.0
    %1075 = vmatmul.mubr.f32.gmra.mrb[0].mxu0 %v995
    %v1076 = vpop.f32.mrb[0].mxu0
    %v1077 = vadd.f32 %v980, %v1076
    %v1078 = vpop.f32.mrb[0].mxu0
    %1079 = vmatprep.mubr.f32.mxu0 0.0
    %1080 = vmatmul.mubr.f32.gmra.mrb[0].mxu0 %v998
    %v1081 = vpop.f32.mrb[0].mxu0
    %v1082 = vadd.f32 %v985, %v1081
    %v1083 = vpop.f32.mrb[0].mxu0
    %1084 = vdwg.mxu0
    %v1085 = vld [vmem:[#allocation2 + $0x2] sm:$0xf]
    %1086 = vst.msk [vmem:[#allocation3] sm:$0xf] %vm849, %v1085
    %v1087 = vld [vmem:[#allocation2 + $0x9] sm:$0xf]
    %1088 = vst.msk [vmem:[#allocation3 + $0x4] sm:$0xf] %vm849, %v1087
    %v1089 = vld [vmem:[#allocation2 + $0x10] sm:$0xf]
    %1090 = vst.msk [vmem:[#allocation3 + $0x8] sm:$0xf] %vm849, %v1089
    %v1091 = vld [vmem:[#allocation2 + $0x17] sm:$0xf]
    %1092 = vst.msk [vmem:[#allocation3 + $0xc] sm:$0xf] %vm849, %v1091
    %v1093 = vld [vmem:[#allocation2 + $0x33] sm:$0xf]
    %1094 = vst.msk [vmem:[#allocation3 + $0x10] sm:$0xf] %vm849, %v1093
    %v1095 = vld [vmem:[#allocation2 + $0x3a] sm:$0xf]
    %1096 = vst.msk [vmem:[#allocation3 + $0x14] sm:$0xf] %vm849, %v1095
    %v1097 = vld [vmem:[#allocation2 + $0x41] sm:$0xf]
    %1098 = vst.msk [vmem:[#allocation3 + $0x18] sm:$0xf] %vm849, %v1097
    %v1099 = vld [vmem:[#allocation2 + $0x48] sm:$0xf]
    %1100 = vst.msk [vmem:[#allocation3 + $0x1c] sm:$0xf] %vm849, %v1099
    %v1101 = vld [vmem:[#allocation3] sm:$0xff]
    %v1102 = vld [vmem:[#allocation3 + $0x8] sm:$0xff]
    %v1103 = vld [vmem:[#allocation3 + $0x10] sm:$0xff]
    %v1104 = vld [vmem:[#allocation3 + $0x18] sm:$0xff]
    %v1105 = vld [vmem:[%s3 + $0x10] sm:$0xff]
    %v1107 = vsel %vm833, %v1101, 0
    %v1110 = vsel %vm833, %v1102, 0
    %v1113 = vsel %vm833, %v1103, 0
    %v1116 = vsel %vm833, %v1104, 0
    %1118 = vmatprep.subr.mxu0 0.0
    %1119 = vmatpush1.msra.mxu0 %v1105
    %1120 = vmatprep.subr.mxu0 0.0
    %1121 = vmatpush1.msra.mxu0 0.0
    %1122 = vmatprep.subr.mxu0 0.0
    %1123 = vmatpush1.msra.mxu0 0.0
    %1124 = vmatprep.subr.mxu0 0.0
    %1125 = vmatpush1.msra.mxu0 0.0
    %1126 = vmatprep.subr.mxu0 0.0
    %1127 = vmatpush1.msra.mxu0 0.0
    %1128 = vmatprep.subr.mxu0 0.0
    %1129 = vmatpush1.msra.mxu0 0.0
    %1130 = vmatprep.subr.mxu0 0.0
    %1131 = vmatpush1.msra.mxu0 0.0
    %1132 = vmatprep.subr.mxu0 0.0
    %1133 = vmatpush1.msra.mxu0 0.0
    %1134 = vmatprep.subr.mxu0 0.0
    %1135 = vmatpush1.msra.mxu0 0.0
    %1136 = vmatprep.subr.mxu0 0.0
    %1137 = vmatpush1.msra.mxu0 0.0
    %1138 = vmatprep.subr.mxu0 0.0
    %1139 = vmatpush1.msra.mxu0 0.0
    %1140 = vmatprep.subr.mxu0 0.0
    %1141 = vmatpush1.msra.mxu0 0.0
    %1142 = vmatprep.subr.mxu0 0.0
    %1143 = vmatpush1.msra.mxu0 0.0
    %1144 = vmatprep.subr.mxu0 0.0
    %1145 = vmatpush1.msra.mxu0 0.0
    %1146 = vmatprep.subr.mxu0 0.0
    %1147 = vmatpush1.msra.mxu0 0.0
    %1148 = vmatprep.subr.mxu0 0.0
    %1149 = vmatpush1.msra.mxu0 0.0
    %1150 = vmatprep.subr.mxu0 0.0
    %1151 = vmatpush1.msra.mxu0 0.0
    %1152 = vmatprep.subr.mxu0 0.0
    %1153 = vmatpush1.msra.mxu0 0.0
    %1154 = vmatprep.subr.mxu0 0.0
    %1155 = vmatpush1.msra.mxu0 0.0
    %1156 = vmatprep.subr.mxu0 0.0
    %1157 = vmatpush1.msra.mxu0 0.0
    %1158 = vmatprep.subr.mxu0 0.0
    %1159 = vmatpush1.msra.mxu0 0.0
    %1160 = vmatprep.subr.mxu0 0.0
    %1161 = vmatpush1.msra.mxu0 0.0
    %1162 = vmatprep.subr.mxu0 0.0
    %1163 = vmatpush1.msra.mxu0 0.0
    %1164 = vmatprep.subr.mxu0 0.0
    %1165 = vmatpush1.msra.mxu0 0.0
    %1166 = vmatprep.subr.mxu0 0.0
    %1167 = vmatpush1.msra.mxu0 0.0
    %1168 = vmatprep.subr.mxu0 0.0
    %1169 = vmatpush1.msra.mxu0 0.0
    %1170 = vmatprep.subr.mxu0 0.0
    %1171 = vmatpush1.msra.mxu0 0.0
    %1172 = vmatprep.subr.mxu0 0.0
    %1173 = vmatpush1.msra.mxu0 0.0
    %1174 = vmatprep.subr.mxu0 0.0
    %1175 = vmatpush1.msra.mxu0 0.0
    %1176 = vmatprep.subr.mxu0 0.0
    %1177 = vmatpush1.msra.mxu0 0.0
    %1178 = vmatprep.subr.mxu0 0.0
    %1179 = vmatpush1.msra.mxu0 0.0
    %1180 = vmatprep.subr.mxu0 0.0
    %1181 = vmatpush1.msra.mxu0 0.0
    %1182 = vmatprep.mubr.f32.mxu0 0.0
    %1183 = vmatmul.mubr.f32.gmra.mrb[0].mxu0 %v1107
    %v1184 = vpop.f32.mrb[0].mxu0
    %v1185 = vadd.f32 0.0, %v1184
    %v1186 = vpop.f32.mrb[0].mxu0
    %1187 = vmatprep.mubr.f32.mxu0 0.0
    %1188 = vmatmul.mubr.f32.gmra.mrb[0].mxu0 %v1110
    %v1189 = vpop.f32.mrb[0].mxu0
    %v1190 = vadd.f32 0.0, %v1189
    %v1191 = vpop.f32.mrb[0].mxu0
    %1192 = vmatprep.mubr.f32.mxu0 0.0
    %1193 = vmatmul.mubr.f32.gmra.mrb[0].mxu0 %v1113
    %v1194 = vpop.f32.mrb[0].mxu0
    %v1195 = vadd.f32 0.0, %v1194
    %v1196 = vpop.f32.mrb[0].mxu0
    %1197 = vmatprep.mubr.f32.mxu0 0.0
    %1198 = vmatmul.mubr.f32.gmra.mrb[0].mxu0 %v1116
    %v1199 = vpop.f32.mrb[0].mxu0
    %v1200 = vadd.f32 0.0, %v1199
    %v1201 = vpop.f32.mrb[0].mxu0
    %1202 = vdwg.mxu0
    %v1203 = vadd.f32 %v1067, %v1185
    %v1204 = vadd.f32 %v1072, %v1190
    %v1205 = vadd.f32 %v1077, %v1195
    %v1206 = vadd.f32 %v1082, %v1200
    %v1207 = vld [vmem:[#allocation2 + $0x7] sm:$0xf]
    %1208 = vst.msk [vmem:[#allocation3] sm:$0xf] %vm849, %v1207
    %v1209 = vld [vmem:[#allocation2 + $0xe] sm:$0xf]
    %1210 = vst.msk [vmem:[#allocation3 + $0x4] sm:$0xf] %vm849, %v1209
    %v1211 = vld [vmem:[#allocation2 + $0x15] sm:$0xf]
    %1212 = vst.msk [vmem:[#allocation3 + $0x8] sm:$0xf] %vm849, %v1211
    %v1213 = vld [vmem:[#allocation2 + $0x1c] sm:$0xf]
    %1214 = vst.msk [vmem:[#allocation3 + $0xc] sm:$0xf] %vm849, %v1213
    %v1215 = vld [vmem:[#allocation2 + $0x38] sm:$0xf]
    %1216 = vst.msk [vmem:[#allocation3 + $0x10] sm:$0xf] %vm849, %v1215
    %v1217 = vld [vmem:[#allocation2 + $0x3f] sm:$0xf]
    %1218 = vst.msk [vmem:[#allocation3 + $0x14] sm:$0xf] %vm849, %v1217
    %v1219 = vld [vmem:[#allocation2 + $0x46] sm:$0xf]
    %1220 = vst.msk [vmem:[#allocation3 + $0x18] sm:$0xf] %vm849, %v1219
    %v1221 = vld [vmem:[#allocation2 + $0x4d] sm:$0xf]
    %1222 = vst.msk [vmem:[#allocation3 + $0x1c] sm:$0xf] %vm849, %v1221
    %v1223 = vld [vmem:[#allocation3] sm:$0xff]
    %v1224 = vld [vmem:[#allocation3 + $0x8] sm:$0xff]
    %v1225 = vld [vmem:[#allocation3 + $0x10] sm:$0xff]
    %v1226 = vld [vmem:[#allocation3 + $0x18] sm:$0xff]
    %v1227 = vld [vmem:[%s3 + $0x18] sm:$0xff]
    %v1229 = vsel %vm833, %v1223, 0
    %v1232 = vsel %vm833, %v1224, 0
    %v1235 = vsel %vm833, %v1225, 0
    %v1238 = vsel %vm833, %v1226, 0
    %1240 = vmatprep.subr.mxu0 0.0
    %1241 = vmatpush1.msra.mxu0 %v1227
    %1242 = vmatprep.subr.mxu0 0.0
    %1243 = vmatpush1.msra.mxu0 0.0
    %1244 = vmatprep.subr.mxu0 0.0
    %1245 = vmatpush1.msra.mxu0 0.0
    %1246 = vmatprep.subr.mxu0 0.0
    %1247 = vmatpush1.msra.mxu0 0.0
    %1248 = vmatprep.subr.mxu0 0.0
    %1249 = vmatpush1.msra.mxu0 0.0
    %1250 = vmatprep.subr.mxu0 0.0
    %1251 = vmatpush1.msra.mxu0 0.0
    %1252 = vmatprep.subr.mxu0 0.0
    %1253 = vmatpush1.msra.mxu0 0.0
    %1254 = vmatprep.subr.mxu0 0.0
    %1255 = vmatpush1.msra.mxu0 0.0
    %1256 = vmatprep.subr.mxu0 0.0
    %1257 = vmatpush1.msra.mxu0 0.0
    %1258 = vmatprep.subr.mxu0 0.0
    %1259 = vmatpush1.msra.mxu0 0.0
    %1260 = vmatprep.subr.mxu0 0.0
    %1261 = vmatpush1.msra.mxu0 0.0
    %1262 = vmatprep.subr.mxu0 0.0
    %1263 = vmatpush1.msra.mxu0 0.0
    %1264 = vmatprep.subr.mxu0 0.0
    %1265 = vmatpush1.msra.mxu0 0.0
    %1266 = vmatprep.subr.mxu0 0.0
    %1267 = vmatpush1.msra.mxu0 0.0
    %1268 = vmatprep.subr.mxu0 0.0
    %1269 = vmatpush1.msra.mxu0 0.0
    %1270 = vmatprep.subr.mxu0 0.0
    %1271 = vmatpush1.msra.mxu0 0.0
    %1272 = vmatprep.subr.mxu0 0.0
    %1273 = vmatpush1.msra.mxu0 0.0
    %1274 = vmatprep.subr.mxu0 0.0
    %1275 = vmatpush1.msra.mxu0 0.0
    %1276 = vmatprep.subr.mxu0 0.0
    %1277 = vmatpush1.msra.mxu0 0.0
    %1278 = vmatprep.subr.mxu0 0.0
    %1279 = vmatpush1.msra.mxu0 0.0
    %1280 = vmatprep.subr.mxu0 0.0
    %1281 = vmatpush1.msra.mxu0 0.0
    %1282 = vmatprep.subr.mxu0 0.0
    %1283 = vmatpush1.msra.mxu0 0.0
    %1284 = vmatprep.subr.mxu0 0.0
    %1285 = vmatpush1.msra.mxu0 0.0
    %1286 = vmatprep.subr.mxu0 0.0
    %1287 = vmatpush1.msra.mxu0 0.0
    %1288 = vmatprep.subr.mxu0 0.0
    %1289 = vmatpush1.msra.mxu0 0.0
    %1290 = vmatprep.subr.mxu0 0.0
    %1291 = vmatpush1.msra.mxu0 0.0
    %1292 = vmatprep.subr.mxu0 0.0
    %1293 = vmatpush1.msra.mxu0 0.0
    %1294 = vmatprep.subr.mxu0 0.0
    %1295 = vmatpush1.msra.mxu0 0.0
    %1296 = vmatprep.subr.mxu0 0.0
    %1297 = vmatpush1.msra.mxu0 0.0
    %1298 = vmatprep.subr.mxu0 0.0
    %1299 = vmatpush1.msra.mxu0 0.0
    %1300 = vmatprep.subr.mxu0 0.0
    %1301 = vmatpush1.msra.mxu0 0.0
    %1302 = vmatprep.subr.mxu0 0.0
    %1303 = vmatpush1.msra.mxu0 0.0
    %1304 = vmatprep.mubr.f32.mxu0 0.0
    %1305 = vmatmul.mubr.f32.gmra.mrb[0].mxu0 %v1229
    %v1306 = vpop.f32.mrb[0].mxu0
    %v1307 = vadd.f32 0.0, %v1306
    %v1308 = vpop.f32.mrb[0].mxu0
    %1309 = vmatprep.mubr.f32.mxu0 0.0
    %1310 = vmatmul.mubr.f32.gmra.mrb[0].mxu0 %v1232
    %v1311 = vpop.f32.mrb[0].mxu0
    %v1312 = vadd.f32 0.0, %v1311
    %v1313 = vpop.f32.mrb[0].mxu0
    %1314 = vmatprep.mubr.f32.mxu0 0.0
    %1315 = vmatmul.mubr.f32.gmra.mrb[0].mxu0 %v1235
    %v1316 = vpop.f32.mrb[0].mxu0
    %v1317 = vadd.f32 0.0, %v1316
    %v1318 = vpop.f32.mrb[0].mxu0
    %1319 = vmatprep.mubr.f32.mxu0 0.0
    %1320 = vmatmul.mubr.f32.gmra.mrb[0].mxu0 %v1238
    %v1321 = vpop.f32.mrb[0].mxu0
    %v1322 = vadd.f32 0.0, %v1321
    %v1323 = vpop.f32.mrb[0].mxu0
    %1324 = vdwg.mxu0
    %v1325 = vadd.f32 %v1203, %v1307
    %v1326 = vadd.f32 %v1204, %v1312
    %v1327 = vadd.f32 %v1205, %v1317
    %v1328 = vadd.f32 %v1206, %v1322
    %v1329 = vld [vmem:[#allocation2 + $0x8] sm:$0xf]
    %1330 = vst.msk [vmem:[#allocation3] sm:$0xf] %vm849, %v1329
    %v1331 = vld [vmem:[#allocation2 + $0xf] sm:$0xf]
    %1332 = vst.msk [vmem:[#allocation3 + $0x4] sm:$0xf] %vm849, %v1331
    %v1333 = vld [vmem:[#allocation2 + $0x16] sm:$0xf]
    %1334 = vst.msk [vmem:[#allocation3 + $0x8] sm:$0xf] %vm849, %v1333
    %v1335 = vld [vmem:[#allocation2 + $0x1d] sm:$0xf]
    %1336 = vst.msk [vmem:[#allocation3 + $0xc] sm:$0xf] %vm849, %v1335
    %v1337 = vld [vmem:[#allocation2 + $0x39] sm:$0xf]
    %1338 = vst.msk [vmem:[#allocation3 + $0x10] sm:$0xf] %vm849, %v1337
    %v1339 = vld [vmem:[#allocation2 + $0x40] sm:$0xf]
    %1340 = vst.msk [vmem:[#allocation3 + $0x14] sm:$0xf] %vm849, %v1339
    %v1341 = vld [vmem:[#allocation2 + $0x47] sm:$0xf]
    %1342 = vst.msk [vmem:[#allocation3 + $0x18] sm:$0xf] %vm849, %v1341
    %v1343 = vld [vmem:[#allocation2 + $0x4e] sm:$0xf]
    %1344 = vst.msk [vmem:[#allocation3 + $0x1c] sm:$0xf] %vm849, %v1343
    %v1345 = vld [vmem:[#allocation3] sm:$0xff]
    %v1346 = vld [vmem:[#allocation3 + $0x8] sm:$0xff]
    %v1347 = vld [vmem:[#allocation3 + $0x10] sm:$0xff]
    %v1348 = vld [vmem:[#allocation3 + $0x18] sm:$0xff]
    %v1349 = vld [vmem:[%s3 + $0x20] sm:$0xff]
    %v1351 = vsel %vm833, %v1345, 0
    %v1354 = vsel %vm833, %v1346, 0
    %v1357 = vsel %vm833, %v1347, 0
    %v1360 = vsel %vm833, %v1348, 0
    %1362 = vmatprep.subr.mxu0 0.0
    %1363 = vmatpush1.msra.mxu0 %v1349
    %1364 = vmatprep.subr.mxu0 0.0
    %1365 = vmatpush1.msra.mxu0 0.0
    %1366 = vmatprep.subr.mxu0 0.0
    %1367 = vmatpush1.msra.mxu0 0.0
    %1368 = vmatprep.subr.mxu0 0.0
    %1369 = vmatpush1.msra.mxu0 0.0
    %1370 = vmatprep.subr.mxu0 0.0
    %1371 = vmatpush1.msra.mxu0 0.0
    %1372 = vmatprep.subr.mxu0 0.0
    %1373 = vmatpush1.msra.mxu0 0.0
    %1374 = vmatprep.subr.mxu0 0.0
    %1375 = vmatpush1.msra.mxu0 0.0
    %1376 = vmatprep.subr.mxu0 0.0
    %1377 = vmatpush1.msra.mxu0 0.0
    %1378 = vmatprep.subr.mxu0 0.0
    %1379 = vmatpush1.msra.mxu0 0.0
    %1380 = vmatprep.subr.mxu0 0.0
    %1381 = vmatpush1.msra.mxu0 0.0
    %1382 = vmatprep.subr.mxu0 0.0
    %1383 = vmatpush1.msra.mxu0 0.0
    %1384 = vmatprep.subr.mxu0 0.0
    %1385 = vmatpush1.msra.mxu0 0.0
    %1386 = vmatprep.subr.mxu0 0.0
    %1387 = vmatpush1.msra.mxu0 0.0
    %1388 = vmatprep.subr.mxu0 0.0
    %1389 = vmatpush1.msra.mxu0 0.0
    %1390 = vmatprep.subr.mxu0 0.0
    %1391 = vmatpush1.msra.mxu0 0.0
    %1392 = vmatprep.subr.mxu0 0.0
    %1393 = vmatpush1.msra.mxu0 0.0
    %1394 = vmatprep.subr.mxu0 0.0
    %1395 = vmatpush1.msra.mxu0 0.0
    %1396 = vmatprep.subr.mxu0 0.0
    %1397 = vmatpush1.msra.mxu0 0.0
    %1398 = vmatprep.subr.mxu0 0.0
    %1399 = vmatpush1.msra.mxu0 0.0
    %1400 = vmatprep.subr.mxu0 0.0
    %1401 = vmatpush1.msra.mxu0 0.0
    %1402 = vmatprep.subr.mxu0 0.0
    %1403 = vmatpush1.msra.mxu0 0.0
    %1404 = vmatprep.subr.mxu0 0.0
    %1405 = vmatpush1.msra.mxu0 0.0
    %1406 = vmatprep.subr.mxu0 0.0
    %1407 = vmatpush1.msra.mxu0 0.0
    %1408 = vmatprep.subr.mxu0 0.0
    %1409 = vmatpush1.msra.mxu0 0.0
    %1410 = vmatprep.subr.mxu0 0.0
    %1411 = vmatpush1.msra.mxu0 0.0
    %1412 = vmatprep.subr.mxu0 0.0
    %1413 = vmatpush1.msra.mxu0 0.0
    %1414 = vmatprep.subr.mxu0 0.0
    %1415 = vmatpush1.msra.mxu0 0.0
    %1416 = vmatprep.subr.mxu0 0.0
    %1417 = vmatpush1.msra.mxu0 0.0
    %1418 = vmatprep.subr.mxu0 0.0
    %1419 = vmatpush1.msra.mxu0 0.0
    %1420 = vmatprep.subr.mxu0 0.0
    %1421 = vmatpush1.msra.mxu0 0.0
    %1422 = vmatprep.subr.mxu0 0.0
    %1423 = vmatpush1.msra.mxu0 0.0
    %1424 = vmatprep.subr.mxu0 0.0
    %1425 = vmatpush1.msra.mxu0 0.0
    %1426 = vmatprep.mubr.f32.mxu0 0.0
    %1427 = vmatmul.mubr.f32.gmra.mrb[0].mxu0 %v1351
    %v1428 = vpop.f32.mrb[0].mxu0
    %v1429 = vadd.f32 0.0, %v1428
    %v1430 = vpop.f32.mrb[0].mxu0
    %1431 = vmatprep.mubr.f32.mxu0 0.0
    %1432 = vmatmul.mubr.f32.gmra.mrb[0].mxu0 %v1354
    %v1433 = vpop.f32.mrb[0].mxu0
    %v1434 = vadd.f32 0.0, %v1433
    %v1435 = vpop.f32.mrb[0].mxu0
    %1436 = vmatprep.mubr.f32.mxu0 0.0
    %1437 = vmatmul.mubr.f32.gmra.mrb[0].mxu0 %v1357
    %v1438 = vpop.f32.mrb[0].mxu0
    %v1439 = vadd.f32 0.0, %v1438
    %v1440 = vpop.f32.mrb[0].mxu0
    %1441 = vmatprep.mubr.f32.mxu0 0.0
    %1442 = vmatmul.mubr.f32.gmra.mrb[0].mxu0 %v1360
    %v1443 = vpop.f32.mrb[0].mxu0
    %v1444 = vadd.f32 0.0, %v1443
    %v1445 = vpop.f32.mrb[0].mxu0
    %1446 = vdwg.mxu0
    %v1447 = vadd.f32 %v1325, %v1429
    %v1448 = vadd.f32 %v1326, %v1434
    %v1449 = vadd.f32 %v1327, %v1439
    %v1450 = vadd.f32 %v1328, %v1444
    %v1451 = vld [vmem:[#allocation2 + $0x9] sm:$0xf]
    %1452 = vst.msk [vmem:[#allocation3] sm:$0xf] %vm849, %v1451
    %v1453 = vld [vmem:[#allocation2 + $0x10] sm:$0xf]
    %1454 = vst.msk [vmem:[#allocation3 + $0x4] sm:$0xf] %vm849, %v1453
    %v1455 = vld [vmem:[#allocation2 + $0x17] sm:$0xf]
    %1456 = vst.msk [vmem:[#allocation3 + $0x8] sm:$0xf] %vm849, %v1455
    %v1457 = vld [vmem:[#allocation2 + $0x1e] sm:$0xf]
    %1458 = vst.msk [vmem:[#allocation3 + $0xc] sm:$0xf] %vm849, %v1457
    %v1459 = vld [vmem:[#allocation2 + $0x3a] sm:$0xf]
    %1460 = vst.msk [vmem:[#allocation3 + $0x10] sm:$0xf] %vm849, %v1459
    %v1461 = vld [vmem:[#allocation2 + $0x41] sm:$0xf]
    %1462 = vst.msk [vmem:[#allocation3 + $0x14] sm:$0xf] %vm849, %v1461
    %v1463 = vld [vmem:[#allocation2 + $0x48] sm:$0xf]
    %1464 = vst.msk [vmem:[#allocation3 + $0x18] sm:$0xf] %vm849, %v1463
    %v1465 = vld [vmem:[#allocation2 + $0x4f] sm:$0xf]
    %1466 = vst.msk [vmem:[#allocation3 + $0x1c] sm:$0xf] %vm849, %v1465
    %v1467 = vld [vmem:[#allocation3] sm:$0xff]
    %v1468 = vld [vmem:[#allocation3 + $0x8] sm:$0xff]
    %v1469 = vld [vmem:[#allocation3 + $0x10] sm:$0xff]
    %v1470 = vld [vmem:[#allocation3 + $0x18] sm:$0xff]
    %v1471 = vld [vmem:[%s3 + $0x28] sm:$0xff]
    %v1473 = vsel %vm833, %v1467, 0
    %v1476 = vsel %vm833, %v1468, 0
    %v1479 = vsel %vm833, %v1469, 0
    %v1482 = vsel %vm833, %v1470, 0
    %1484 = vmatprep.subr.mxu0 0.0
    %1485 = vmatpush1.msra.mxu0 %v1471
    %1486 = vmatprep.subr.mxu0 0.0
    %1487 = vmatpush1.msra.mxu0 0.0
    %1488 = vmatprep.subr.mxu0 0.0
    %1489 = vmatpush1.msra.mxu0 0.0
    %1490 = vmatprep.subr.mxu0 0.0
    %1491 = vmatpush1.msra.mxu0 0.0
    %1492 = vmatprep.subr.mxu0 0.0
    %1493 = vmatpush1.msra.mxu0 0.0
    %1494 = vmatprep.subr.mxu0 0.0
    %1495 = vmatpush1.msra.mxu0 0.0
    %1496 = vmatprep.subr.mxu0 0.0
    %1497 = vmatpush1.msra.mxu0 0.0
    %1498 = vmatprep.subr.mxu0 0.0
    %1499 = vmatpush1.msra.mxu0 0.0
    %1500 = vmatprep.subr.mxu0 0.0
    %1501 = vmatpush1.msra.mxu0 0.0
    %1502 = vmatprep.subr.mxu0 0.0
    %1503 = vmatpush1.msra.mxu0 0.0
    %1504 = vmatprep.subr.mxu0 0.0
    %1505 = vmatpush1.msra.mxu0 0.0
    %1506 = vmatprep.subr.mxu0 0.0
    %1507 = vmatpush1.msra.mxu0 0.0
    %1508 = vmatprep.subr.mxu0 0.0
    %1509 = vmatpush1.msra.mxu0 0.0
    %1510 = vmatprep.subr.mxu0 0.0
    %1511 = vmatpush1.msra.mxu0 0.0
    %1512 = vmatprep.subr.mxu0 0.0
    %1513 = vmatpush1.msra.mxu0 0.0
    %1514 = vmatprep.subr.mxu0 0.0
    %1515 = vmatpush1.msra.mxu0 0.0
    %1516 = vmatprep.subr.mxu0 0.0
    %1517 = vmatpush1.msra.mxu0 0.0
    %1518 = vmatprep.subr.mxu0 0.0
    %1519 = vmatpush1.msra.mxu0 0.0
    %1520 = vmatprep.subr.mxu0 0.0
    %1521 = vmatpush1.msra.mxu0 0.0
    %1522 = vmatprep.subr.mxu0 0.0
    %1523 = vmatpush1.msra.mxu0 0.0
    %1524 = vmatprep.subr.mxu0 0.0
    %1525 = vmatpush1.msra.mxu0 0.0
    %1526 = vmatprep.subr.mxu0 0.0
    %1527 = vmatpush1.msra.mxu0 0.0
    %1528 = vmatprep.subr.mxu0 0.0
    %1529 = vmatpush1.msra.mxu0 0.0
    %1530 = vmatprep.subr.mxu0 0.0
    %1531 = vmatpush1.msra.mxu0 0.0
    %1532 = vmatprep.subr.mxu0 0.0
    %1533 = vmatpush1.msra.mxu0 0.0
    %1534 = vmatprep.subr.mxu0 0.0
    %1535 = vmatpush1.msra.mxu0 0.0
    %1536 = vmatprep.subr.mxu0 0.0
    %1537 = vmatpush1.msra.mxu0 0.0
    %1538 = vmatprep.subr.mxu0 0.0
    %1539 = vmatpush1.msra.mxu0 0.0
    %1540 = vmatprep.subr.mxu0 0.0
    %1541 = vmatpush1.msra.mxu0 0.0
    %1542 = vmatprep.subr.mxu0 0.0
    %1543 = vmatpush1.msra.mxu0 0.0
    %1544 = vmatprep.subr.mxu0 0.0
    %1545 = vmatpush1.msra.mxu0 0.0
    %1546 = vmatprep.subr.mxu0 0.0
    %1547 = vmatpush1.msra.mxu0 0.0
    %1548 = vmatprep.mubr.f32.mxu0 0.0
    %1549 = vmatmul.mubr.f32.gmra.mrb[0].mxu0 %v1473
    %v1550 = vpop.f32.mrb[0].mxu0
    %v1551 = vadd.f32 0.0, %v1550
    %v1552 = vpop.f32.mrb[0].mxu0
    %1553 = vmatprep.mubr.f32.mxu0 0.0
    %1554 = vmatmul.mubr.f32.gmra.mrb[0].mxu0 %v1476
    %v1555 = vpop.f32.mrb[0].mxu0
    %v1556 = vadd.f32 0.0, %v1555
    %v1557 = vpop.f32.mrb[0].mxu0
    %1558 = vmatprep.mubr.f32.mxu0 0.0
    %1559 = vmatmul.mubr.f32.gmra.mrb[0].mxu0 %v1479
    %v1560 = vpop.f32.mrb[0].mxu0
    %v1561 = vadd.f32 0.0, %v1560
    %v1562 = vpop.f32.mrb[0].mxu0
    %1563 = vmatprep.mubr.f32.mxu0 0.0
    %1564 = vmatmul.mubr.f32.gmra.mrb[0].mxu0 %v1482
    %v1565 = vpop.f32.mrb[0].mxu0
    %v1566 = vadd.f32 0.0, %v1565
    %v1567 = vpop.f32.mrb[0].mxu0
    %1568 = vdwg.mxu0
    %v1569 = vadd.f32 %v1447, %v1551
    %v1570 = vadd.f32 %v1448, %v1556
    %v1571 = vadd.f32 %v1449, %v1561
    %v1572 = vadd.f32 %v1450, %v1566
    %v1573 = vld [vmem:[#allocation2 + $0xe] sm:$0xf]
    %1574 = vst.msk [vmem:[#allocation3] sm:$0xf] %vm849, %v1573
    %v1575 = vld [vmem:[#allocation2 + $0x15] sm:$0xf]
    %1576 = vst.msk [vmem:[#allocation3 + $0x4] sm:$0xf] %vm849, %v1575
    %v1577 = vld [vmem:[#allocation2 + $0x1c] sm:$0xf]
    %1578 = vst.msk [vmem:[#allocation3 + $0x8] sm:$0xf] %vm849, %v1577
    %v1579 = vld [vmem:[#allocation2 + $0x23] sm:$0xf]
    %1580 = vst.msk [vmem:[#allocation3 + $0xc] sm:$0xf] %vm849, %v1579
    %v1581 = vld [vmem:[#allocation2 + $0x3f] sm:$0xf]
    %1582 = vst.msk [vmem:[#allocation3 + $0x10] sm:$0xf] %vm849, %v1581
    %v1583 = vld [vmem:[#allocation2 + $0x46] sm:$0xf]
    %1584 = vst.msk [vmem:[#allocation3 + $0x14] sm:$0xf] %vm849, %v1583
    %v1585 = vld [vmem:[#allocation2 + $0x4d] sm:$0xf]
    %1586 = vst.msk [vmem:[#allocation3 + $0x18] sm:$0xf] %vm849, %v1585
    %v1587 = vld [vmem:[#allocation2 + $0x54] sm:$0xf]
    %1588 = vst.msk [vmem:[#allocation3 + $0x1c] sm:$0xf] %vm849, %v1587
    %v1589 = vld [vmem:[#allocation3] sm:$0xff]
    %v1590 = vld [vmem:[#allocation3 + $0x8] sm:$0xff]
    %v1591 = vld [vmem:[#allocation3 + $0x10] sm:$0xff]
    %v1592 = vld [vmem:[#allocation3 + $0x18] sm:$0xff]
    %v1593 = vld [vmem:[%s3 + $0x30] sm:$0xff]
    %v1595 = vsel %vm833, %v1589, 0
    %v1598 = vsel %vm833, %v1590, 0
    %v1601 = vsel %vm833, %v1591, 0
    %v1604 = vsel %vm833, %v1592, 0
    %1606 = vmatprep.subr.mxu0 0.0
    %1607 = vmatpush1.msra.mxu0 %v1593
    %1608 = vmatprep.subr.mxu0 0.0
    %1609 = vmatpush1.msra.mxu0 0.0
    %1610 = vmatprep.subr.mxu0 0.0
    %1611 = vmatpush1.msra.mxu0 0.0
    %1612 = vmatprep.subr.mxu0 0.0
    %1613 = vmatpush1.msra.mxu0 0.0
    %1614 = vmatprep.subr.mxu0 0.0
    %1615 = vmatpush1.msra.mxu0 0.0
    %1616 = vmatprep.subr.mxu0 0.0
    %1617 = vmatpush1.msra.mxu0 0.0
    %1618 = vmatprep.subr.mxu0 0.0
    %1619 = vmatpush1.msra.mxu0 0.0
    %1620 = vmatprep.subr.mxu0 0.0
    %1621 = vmatpush1.msra.mxu0 0.0
    %1622 = vmatprep.subr.mxu0 0.0
    %1623 = vmatpush1.msra.mxu0 0.0
    %1624 = vmatprep.subr.mxu0 0.0
    %1625 = vmatpush1.msra.mxu0 0.0
    %1626 = vmatprep.subr.mxu0 0.0
    %1627 = vmatpush1.msra.mxu0 0.0
    %1628 = vmatprep.subr.mxu0 0.0
    %1629 = vmatpush1.msra.mxu0 0.0
    %1630 = vmatprep.subr.mxu0 0.0
    %1631 = vmatpush1.msra.mxu0 0.0
    %1632 = vmatprep.subr.mxu0 0.0
    %1633 = vmatpush1.msra.mxu0 0.0
    %1634 = vmatprep.subr.mxu0 0.0
    %1635 = vmatpush1.msra.mxu0 0.0
    %1636 = vmatprep.subr.mxu0 0.0
    %1637 = vmatpush1.msra.mxu0 0.0
    %1638 = vmatprep.subr.mxu0 0.0
    %1639 = vmatpush1.msra.mxu0 0.0
    %1640 = vmatprep.subr.mxu0 0.0
    %1641 = vmatpush1.msra.mxu0 0.0
    %1642 = vmatprep.subr.mxu0 0.0
    %1643 = vmatpush1.msra.mxu0 0.0
    %1644 = vmatprep.subr.mxu0 0.0
    %1645 = vmatpush1.msra.mxu0 0.0
    %1646 = vmatprep.subr.mxu0 0.0
    %1647 = vmatpush1.msra.mxu0 0.0
    %1648 = vmatprep.subr.mxu0 0.0
    %1649 = vmatpush1.msra.mxu0 0.0
    %1650 = vmatprep.subr.mxu0 0.0
    %1651 = vmatpush1.msra.mxu0 0.0
    %1652 = vmatprep.subr.mxu0 0.0
    %1653 = vmatpush1.msra.mxu0 0.0
    %1654 = vmatprep.subr.mxu0 0.0
    %1655 = vmatpush1.msra.mxu0 0.0
    %1656 = vmatprep.subr.mxu0 0.0
    %1657 = vmatpush1.msra.mxu0 0.0
    %1658 = vmatprep.subr.mxu0 0.0
    %1659 = vmatpush1.msra.mxu0 0.0
    %1660 = vmatprep.subr.mxu0 0.0
    %1661 = vmatpush1.msra.mxu0 0.0
    %1662 = vmatprep.subr.mxu0 0.0
    %1663 = vmatpush1.msra.mxu0 0.0
    %1664 = vmatprep.subr.mxu0 0.0
    %1665 = vmatpush1.msra.mxu0 0.0
    %1666 = vmatprep.subr.mxu0 0.0
    %1667 = vmatpush1.msra.mxu0 0.0
    %1668 = vmatprep.subr.mxu0 0.0
    %1669 = vmatpush1.msra.mxu0 0.0
    %1670 = vmatprep.mubr.f32.mxu0 0.0
    %1671 = vmatmul.mubr.f32.gmra.mrb[0].mxu0 %v1595
    %v1672 = vpop.f32.mrb[0].mxu0
    %v1673 = vadd.f32 0.0, %v1672
    %v1674 = vpop.f32.mrb[0].mxu0
    %1675 = vmatprep.mubr.f32.mxu0 0.0
    %1676 = vmatmul.mubr.f32.gmra.mrb[0].mxu0 %v1598
    %v1677 = vpop.f32.mrb[0].mxu0
    %v1678 = vadd.f32 0.0, %v1677
    %v1679 = vpop.f32.mrb[0].mxu0
    %1680 = vmatprep.mubr.f32.mxu0 0.0
    %1681 = vmatmul.mubr.f32.gmra.mrb[0].mxu0 %v1601
    %v1682 = vpop.f32.mrb[0].mxu0
    %v1683 = vadd.f32 0.0, %v1682
    %v1684 = vpop.f32.mrb[0].mxu0
    %1685 = vmatprep.mubr.f32.mxu0 0.0
    %1686 = vmatmul.mubr.f32.gmra.mrb[0].mxu0 %v1604
    %v1687 = vpop.f32.mrb[0].mxu0
    %v1688 = vadd.f32 0.0, %v1687
    %v1689 = vpop.f32.mrb[0].mxu0
    %1690 = vdwg.mxu0
    %v1691 = vadd.f32 %v1569, %v1673
    %v1692 = vadd.f32 %v1570, %v1678
    %v1693 = vadd.f32 %v1571, %v1683
    %v1694 = vadd.f32 %v1572, %v1688
    %v1695 = vld [vmem:[#allocation2 + $0xf] sm:$0xf]
    %1696 = vst.msk [vmem:[#allocation3] sm:$0xf] %vm849, %v1695
    %v1697 = vld [vmem:[#allocation2 + $0x16] sm:$0xf]
    %1698 = vst.msk [vmem:[#allocation3 + $0x4] sm:$0xf] %vm849, %v1697
    %v1699 = vld [vmem:[#allocation2 + $0x1d] sm:$0xf]
    %1700 = vst.msk [vmem:[#allocation3 + $0x8] sm:$0xf] %vm849, %v1699
    %v1701 = vld [vmem:[#allocation2 + $0x24] sm:$0xf]
    %1702 = vst.msk [vmem:[#allocation3 + $0xc] sm:$0xf] %vm849, %v1701
    %v1703 = vld [vmem:[#allocation2 + $0x40] sm:$0xf]
    %1704 = vst.msk [vmem:[#allocation3 + $0x10] sm:$0xf] %vm849, %v1703
    %v1705 = vld [vmem:[#allocation2 + $0x47] sm:$0xf]
    %1706 = vst.msk [vmem:[#allocation3 + $0x14] sm:$0xf] %vm849, %v1705
    %v1707 = vld [vmem:[#allocation2 + $0x4e] sm:$0xf]
    %1708 = vst.msk [vmem:[#allocation3 + $0x18] sm:$0xf] %vm849, %v1707
    %v1709 = vld [vmem:[#allocation2 + $0x55] sm:$0xf]
    %1710 = vst.msk [vmem:[#allocation3 + $0x1c] sm:$0xf] %vm849, %v1709
    %v1711 = vld [vmem:[#allocation3] sm:$0xff]
    %v1712 = vld [vmem:[#allocation3 + $0x8] sm:$0xff]
    %v1713 = vld [vmem:[#allocation3 + $0x10] sm:$0xff]
    %v1714 = vld [vmem:[#allocation3 + $0x18] sm:$0xff]
    %v1715 = vld [vmem:[%s3 + $0x38] sm:$0xff]
    %v1717 = vsel %vm833, %v1711, 0
    %v1720 = vsel %vm833, %v1712, 0
    %v1723 = vsel %vm833, %v1713, 0
    %v1726 = vsel %vm833, %v1714, 0
    %1728 = vmatprep.subr.mxu0 0.0
    %1729 = vmatpush1.msra.mxu0 %v1715
    %1730 = vmatprep.subr.mxu0 0.0
    %1731 = vmatpush1.msra.mxu0 0.0
    %1732 = vmatprep.subr.mxu0 0.0
    %1733 = vmatpush1.msra.mxu0 0.0
    %1734 = vmatprep.subr.mxu0 0.0
    %1735 = vmatpush1.msra.mxu0 0.0
    %1736 = vmatprep.subr.mxu0 0.0
    %1737 = vmatpush1.msra.mxu0 0.0
    %1738 = vmatprep.subr.mxu0 0.0
    %1739 = vmatpush1.msra.mxu0 0.0
    %1740 = vmatprep.subr.mxu0 0.0
    %1741 = vmatpush1.msra.mxu0 0.0
    %1742 = vmatprep.subr.mxu0 0.0
    %1743 = vmatpush1.msra.mxu0 0.0
    %1744 = vmatprep.subr.mxu0 0.0
    %1745 = vmatpush1.msra.mxu0 0.0
    %1746 = vmatprep.subr.mxu0 0.0
    %1747 = vmatpush1.msra.mxu0 0.0
    %1748 = vmatprep.subr.mxu0 0.0
    %1749 = vmatpush1.msra.mxu0 0.0
    %1750 = vmatprep.subr.mxu0 0.0
    %1751 = vmatpush1.msra.mxu0 0.0
    %1752 = vmatprep.subr.mxu0 0.0
    %1753 = vmatpush1.msra.mxu0 0.0
    %1754 = vmatprep.subr.mxu0 0.0
    %1755 = vmatpush1.msra.mxu0 0.0
    %1756 = vmatprep.subr.mxu0 0.0
    %1757 = vmatpush1.msra.mxu0 0.0
    %1758 = vmatprep.subr.mxu0 0.0
    %1759 = vmatpush1.msra.mxu0 0.0
    %1760 = vmatprep.subr.mxu0 0.0
    %1761 = vmatpush1.msra.mxu0 0.0
    %1762 = vmatprep.subr.mxu0 0.0
    %1763 = vmatpush1.msra.mxu0 0.0
    %1764 = vmatprep.subr.mxu0 0.0
    %1765 = vmatpush1.msra.mxu0 0.0
    %1766 = vmatprep.subr.mxu0 0.0
    %1767 = vmatpush1.msra.mxu0 0.0
    %1768 = vmatprep.subr.mxu0 0.0
    %1769 = vmatpush1.msra.mxu0 0.0
    %1770 = vmatprep.subr.mxu0 0.0
    %1771 = vmatpush1.msra.mxu0 0.0
    %1772 = vmatprep.subr.mxu0 0.0
    %1773 = vmatpush1.msra.mxu0 0.0
    %1774 = vmatprep.subr.mxu0 0.0
    %1775 = vmatpush1.msra.mxu0 0.0
    %1776 = vmatprep.subr.mxu0 0.0
    %1777 = vmatpush1.msra.mxu0 0.0
    %1778 = vmatprep.subr.mxu0 0.0
    %1779 = vmatpush1.msra.mxu0 0.0
    %1780 = vmatprep.subr.mxu0 0.0
    %1781 = vmatpush1.msra.mxu0 0.0
    %1782 = vmatprep.subr.mxu0 0.0
    %1783 = vmatpush1.msra.mxu0 0.0
    %1784 = vmatprep.subr.mxu0 0.0
    %1785 = vmatpush1.msra.mxu0 0.0
    %1786 = vmatprep.subr.mxu0 0.0
    %1787 = vmatpush1.msra.mxu0 0.0
    %1788 = vmatprep.subr.mxu0 0.0
    %1789 = vmatpush1.msra.mxu0 0.0
    %1790 = vmatprep.subr.mxu0 0.0
    %1791 = vmatpush1.msra.mxu0 0.0
    %1792 = vmatprep.mubr.f32.mxu0 0.0
    %1793 = vmatmul.mubr.f32.gmra.mrb[0].mxu0 %v1717
    %v1794 = vpop.f32.mrb[0].mxu0
    %v1795 = vadd.f32 0.0, %v1794
    %v1796 = vpop.f32.mrb[0].mxu0
    %1797 = vmatprep.mubr.f32.mxu0 0.0
    %1798 = vmatmul.mubr.f32.gmra.mrb[0].mxu0 %v1720
    %v1799 = vpop.f32.mrb[0].mxu0
    %v1800 = vadd.f32 0.0, %v1799
    %v1801 = vpop.f32.mrb[0].mxu0
    %1802 = vmatprep.mubr.f32.mxu0 0.0
    %1803 = vmatmul.mubr.f32.gmra.mrb[0].mxu0 %v1723
    %v1804 = vpop.f32.mrb[0].mxu0
    %v1805 = vadd.f32 0.0, %v1804
    %v1806 = vpop.f32.mrb[0].mxu0
    %1807 = vmatprep.mubr.f32.mxu0 0.0
    %1808 = vmatmul.mubr.f32.gmra.mrb[0].mxu0 %v1726
    %v1809 = vpop.f32.mrb[0].mxu0
    %v1810 = vadd.f32 0.0, %v1809
    %v1811 = vpop.f32.mrb[0].mxu0
    %1812 = vdwg.mxu0
    %v1813 = vadd.f32 %v1691, %v1795
    %v1814 = vadd.f32 %v1692, %v1800
    %v1815 = vadd.f32 %v1693, %v1805
    %v1816 = vadd.f32 %v1694, %v1810
    %v1817 = vld [vmem:[#allocation2 + $0x10] sm:$0xf]
    %1818 = vst.msk [vmem:[#allocation3] sm:$0xf] %vm849, %v1817
    %v1819 = vld [vmem:[#allocation2 + $0x17] sm:$0xf]
    %1820 = vst.msk [vmem:[#allocation3 + $0x4] sm:$0xf] %vm849, %v1819
    %v1821 = vld [vmem:[#allocation2 + $0x1e] sm:$0xf]
    %1822 = vst.msk [vmem:[#allocation3 + $0x8] sm:$0xf] %vm849, %v1821
    %v1823 = vld [vmem:[#allocation2 + $0x25] sm:$0xf]
    %1824 = vst.msk [vmem:[#allocation3 + $0xc] sm:$0xf] %vm849, %v1823
    %v1825 = vld [vmem:[#allocation2 + $0x41] sm:$0xf]
    %1826 = vst.msk [vmem:[#allocation3 + $0x10] sm:$0xf] %vm849, %v1825
    %v1827 = vld [vmem:[#allocation2 + $0x48] sm:$0xf]
    %1828 = vst.msk [vmem:[#allocation3 + $0x14] sm:$0xf] %vm849, %v1827
    %v1829 = vld [vmem:[#allocation2 + $0x4f] sm:$0xf]
    %1830 = vst.msk [vmem:[#allocation3 + $0x18] sm:$0xf] %vm849, %v1829
    %v1831 = vld [vmem:[#allocation2 + $0x56] sm:$0xf]
    %1832 = vst.msk [vmem:[#allocation3 + $0x1c] sm:$0xf] %vm849, %v1831
    %v1833 = vld [vmem:[#allocation3] sm:$0xff]
    %v1834 = vld [vmem:[#allocation3 + $0x8] sm:$0xff]
    %v1835 = vld [vmem:[#allocation3 + $0x10] sm:$0xff]
    %v1836 = vld [vmem:[#allocation3 + $0x18] sm:$0xff]
    %v1837 = vld [vmem:[%s3 + $0x40] sm:$0xff]
    %v1839 = vsel %vm833, %v1833, 0
    %v1842 = vsel %vm833, %v1834, 0
    %v1845 = vsel %vm833, %v1835, 0
    %v1848 = vsel %vm833, %v1836, 0
    %1850 = vmatprep.subr.mxu0 0.0
    %1851 = vmatpush1.msra.mxu0 %v1837
    %1852 = vmatprep.subr.mxu0 0.0
    %1853 = vmatpush1.msra.mxu0 0.0
    %1854 = vmatprep.subr.mxu0 0.0
    %1855 = vmatpush1.msra.mxu0 0.0
    %1856 = vmatprep.subr.mxu0 0.0
    %1857 = vmatpush1.msra.mxu0 0.0
    %1858 = vmatprep.subr.mxu0 0.0
    %1859 = vmatpush1.msra.mxu0 0.0
    %1860 = vmatprep.subr.mxu0 0.0
    %1861 = vmatpush1.msra.mxu0 0.0
    %1862 = vmatprep.subr.mxu0 0.0
    %1863 = vmatpush1.msra.mxu0 0.0
    %1864 = vmatprep.subr.mxu0 0.0
    %1865 = vmatpush1.msra.mxu0 0.0
    %1866 = vmatprep.subr.mxu0 0.0
    %1867 = vmatpush1.msra.mxu0 0.0
    %1868 = vmatprep.subr.mxu0 0.0
    %1869 = vmatpush1.msra.mxu0 0.0
    %1870 = vmatprep.subr.mxu0 0.0
    %1871 = vmatpush1.msra.mxu0 0.0
    %1872 = vmatprep.subr.mxu0 0.0
    %1873 = vmatpush1.msra.mxu0 0.0
    %1874 = vmatprep.subr.mxu0 0.0
    %1875 = vmatpush1.msra.mxu0 0.0
    %1876 = vmatprep.subr.mxu0 0.0
    %1877 = vmatpush1.msra.mxu0 0.0
    %1878 = vmatprep.subr.mxu0 0.0
    %1879 = vmatpush1.msra.mxu0 0.0
    %1880 = vmatprep.subr.mxu0 0.0
    %1881 = vmatpush1.msra.mxu0 0.0
    %1882 = vmatprep.subr.mxu0 0.0
    %1883 = vmatpush1.msra.mxu0 0.0
    %1884 = vmatprep.subr.mxu0 0.0
    %1885 = vmatpush1.msra.mxu0 0.0
    %1886 = vmatprep.subr.mxu0 0.0
    %1887 = vmatpush1.msra.mxu0 0.0
    %1888 = vmatprep.subr.mxu0 0.0
    %1889 = vmatpush1.msra.mxu0 0.0
    %1890 = vmatprep.subr.mxu0 0.0
    %1891 = vmatpush1.msra.mxu0 0.0
    %1892 = vmatprep.subr.mxu0 0.0
    %1893 = vmatpush1.msra.mxu0 0.0
    %1894 = vmatprep.subr.mxu0 0.0
    %1895 = vmatpush1.msra.mxu0 0.0
    %1896 = vmatprep.subr.mxu0 0.0
    %1897 = vmatpush1.msra.mxu0 0.0
    %1898 = vmatprep.subr.mxu0 0.0
    %1899 = vmatpush1.msra.mxu0 0.0
    %1900 = vmatprep.subr.mxu0 0.0
    %1901 = vmatpush1.msra.mxu0 0.0
    %1902 = vmatprep.subr.mxu0 0.0
    %1903 = vmatpush1.msra.mxu0 0.0
    %1904 = vmatprep.subr.mxu0 0.0
    %1905 = vmatpush1.msra.mxu0 0.0
    %1906 = vmatprep.subr.mxu0 0.0
    %1907 = vmatpush1.msra.mxu0 0.0
    %1908 = vmatprep.subr.mxu0 0.0
    %1909 = vmatpush1.msra.mxu0 0.0
    %1910 = vmatprep.subr.mxu0 0.0
    %1911 = vmatpush1.msra.mxu0 0.0
    %1912 = vmatprep.subr.mxu0 0.0
    %1913 = vmatpush1.msra.mxu0 0.0
    %1914 = vmatprep.mubr.f32.mxu0 0.0
    %1915 = vmatmul.mubr.f32.gmra.mrb[0].mxu0 %v1839
    %v1916 = vpop.f32.mrb[0].mxu0
    %v1917 = vadd.f32 0.0, %v1916
    %v1918 = vpop.f32.mrb[0].mxu0
    %1919 = vmatprep.mubr.f32.mxu0 0.0
    %1920 = vmatmul.mubr.f32.gmra.mrb[0].mxu0 %v1842
    %v1921 = vpop.f32.mrb[0].mxu0
    %v1922 = vadd.f32 0.0, %v1921
    %v1923 = vpop.f32.mrb[0].mxu0
    %1924 = vmatprep.mubr.f32.mxu0 0.0
    %1925 = vmatmul.mubr.f32.gmra.mrb[0].mxu0 %v1845
    %v1926 = vpop.f32.mrb[0].mxu0
    %v1927 = vadd.f32 0.0, %v1926
    %v1928 = vpop.f32.mrb[0].mxu0
    %1929 = vmatprep.mubr.f32.mxu0 0.0
    %1930 = vmatmul.mubr.f32.gmra.mrb[0].mxu0 %v1848
    %v1931 = vpop.f32.mrb[0].mxu0
    %v1932 = vadd.f32 0.0, %v1931
    %v1933 = vpop.f32.mrb[0].mxu0
    %1934 = vdwg.mxu0
    %v1935 = vadd.f32 %v1813, %v1917
    %v1936 = vadd.f32 %v1814, %v1922
    %v1937 = vadd.f32 %v1815, %v1927
    %v1938 = vadd.f32 %v1816, %v1932
    %v1939 = vld [vmem:[%s4] sm:$0x1]
    %v1941 = vlaneseq
    %v1942 = vshrl.u32 %v1941, 7
    %v1943 = vsub.s32 0, %v1942
    %v1944 = vrot.slane %v1939, %v1943
    %v1946 = vadd.f32 %v1935, %v1944
    %v1947 = vadd.f32 %v1936, %v1944
    %v1948 = vadd.f32 %v1937, %v1944
    %v1949 = vadd.f32 %v1938, %v1944
    %vm1950 = vcmask 130048
    %1951 = vst.msk [vmem:[#allocation4] sm:$0xff] %vm1950, %v1946
    %1952 = vst.msk [vmem:[#allocation4 + $0x8] sm:$0xff] %vm1950, %v1947
    %1953 = vst.msk [vmem:[#allocation4 + $0x10] sm:$0xff] %vm1950, %v1948
    %1954 = vst.msk [vmem:[#allocation4 + $0x18] sm:$0xff] %vm1950, %v1949
    %v1955 = vld [vmem:[#allocation4] sm:$0x1]
    %v1956 = vld [vmem:[#allocation4 + $0x1] sm:$0x1]
    %v1957 = vmax.f32 %v1955, %v1956
    %v1958 = vld [vmem:[#allocation4 + $0x4] sm:$0x1]
    %v1959 = vld [vmem:[#allocation4 + $0x5] sm:$0x1]
    %v1960 = vmax.f32 %v1958, %v1959
    %v1961 = vmax.f32 %v1957, %v1960
    %vm1962 = vcmask 122880
    %1963 = vst.msk [vmem:[#allocation5] sm:$0x1] %vm1962, %v1961
    %v1964 = vld [vmem:[#allocation4 + $0x10] sm:$0x1]
    %v1965 = vld [vmem:[#allocation4 + $0x11] sm:$0x1]
    %v1966 = vmax.f32 %v1964, %v1965
    %v1967 = vld [vmem:[#allocation4 + $0x14] sm:$0x1]
    %v1968 = vld [vmem:[#allocation4 + $0x15] sm:$0x1]
    %v1969 = vmax.f32 %v1967, %v1968
    %v1970 = vmax.f32 %v1966, %v1969
    %1971 = vst.msk [vmem:[#allocation5 + $0x1] sm:$0x1] %vm1962, %v1970
    %v1972 = vld [vmem:[#allocation5] sm:$0x3]
    %v1973 = vld [vmem:[%s5] sm:$0xff]
    %v1974 = vld [vmem:[%s5 + $0x8] sm:$0xff]
    %v1975 = vld [vmem:[#allocation4 + $0x2] sm:$0x1]
    %v1976 = vld [vmem:[#allocation4 + $0x3] sm:$0x1]
    %v1977 = vmax.f32 %v1975, %v1976
    %v1978 = vld [vmem:[#allocation4 + $0x6] sm:$0x1]
    %v1979 = vld [vmem:[#allocation4 + $0x7] sm:$0x1]
    %v1980 = vmax.f32 %v1978, %v1979
    %v1981 = vmax.f32 %v1977, %v1980
    %1982 = vst.msk [vmem:[#allocation5] sm:$0x1] %vm1962, %v1981
    %v1983 = vld [vmem:[#allocation4 + $0x12] sm:$0x1]
    %v1984 = vld [vmem:[#allocation4 + $0x13] sm:$0x1]
    %v1985 = vmax.f32 %v1983, %v1984
    %v1986 = vld [vmem:[#allocation4 + $0x16] sm:$0x1]
    %v1987 = vld [vmem:[#allocation4 + $0x17] sm:$0x1]
    %v1988 = vmax.f32 %v1986, %v1987
    %v1989 = vmax.f32 %v1985, %v1988
    %1990 = vst.msk [vmem:[#allocation5 + $0x1] sm:$0x1] %vm1962, %v1989
    %v1991 = vld [vmem:[#allocation5] sm:$0x3]
    %v1992 = vld [vmem:[%s5 + $0x10] sm:$0xff]
    %v1993 = vld [vmem:[%s5 + $0x18] sm:$0xff]
    %v1995 = vsel %vm1950, %v1991, 0
    %1997 = vmatprep.subr.mxu0 0.0
    %1998 = vmatpush1.msra.mxu0 %v1992
    %1999 = vmatprep.subr.mxu0 0.0
    %2000 = vmatpush1.msra.mxu0 %v1993
    %2001 = vmatprep.subr.mxu0 0.0
    %2002 = vmatpush1.msra.mxu0 0.0
    %2003 = vmatprep.subr.mxu0 0.0
    %2004 = vmatpush1.msra.mxu0 0.0
    %2005 = vmatprep.subr.mxu0 0.0
    %2006 = vmatpush1.msra.mxu0 0.0
    %2007 = vmatprep.subr.mxu0 0.0
    %2008 = vmatpush1.msra.mxu0 0.0
    %2009 = vmatprep.subr.mxu0 0.0
    %2010 = vmatpush1.msra.mxu0 0.0
    %2011 = vmatprep.subr.mxu0 0.0
    %2012 = vmatpush1.msra.mxu0 0.0
    %2013 = vmatprep.subr.mxu0 0.0
    %2014 = vmatpush1.msra.mxu0 0.0
    %2015 = vmatprep.subr.mxu0 0.0
    %2016 = vmatpush1.msra.mxu0 0.0
    %2017 = vmatprep.subr.mxu0 0.0
    %2018 = vmatpush1.msra.mxu0 0.0
    %2019 = vmatprep.subr.mxu0 0.0
    %2020 = vmatpush1.msra.mxu0 0.0
    %2021 = vmatprep.subr.mxu0 0.0
    %2022 = vmatpush1.msra.mxu0 0.0
    %2023 = vmatprep.subr.mxu0 0.0
    %2024 = vmatpush1.msra.mxu0 0.0
    %2025 = vmatprep.subr.mxu0 0.0
    %2026 = vmatpush1.msra.mxu0 0.0
    %2027 = vmatprep.subr.mxu0 0.0
    %2028 = vmatpush1.msra.mxu0 0.0
    %2029 = vmatprep.subr.mxu0 0.0
    %2030 = vmatpush1.msra.mxu0 0.0
    %2031 = vmatprep.subr.mxu0 0.0
    %2032 = vmatpush1.msra.mxu0 0.0
    %2033 = vmatprep.subr.mxu0 0.0
    %2034 = vmatpush1.msra.mxu0 0.0
    %2035 = vmatprep.subr.mxu0 0.0
    %2036 = vmatpush1.msra.mxu0 0.0
    %2037 = vmatprep.subr.mxu0 0.0
    %2038 = vmatpush1.msra.mxu0 0.0
    %2039 = vmatprep.subr.mxu0 0.0
    %2040 = vmatpush1.msra.mxu0 0.0
    %2041 = vmatprep.subr.mxu0 0.0
    %2042 = vmatpush1.msra.mxu0 0.0
    %2043 = vmatprep.subr.mxu0 0.0
    %2044 = vmatpush1.msra.mxu0 0.0
    %2045 = vmatprep.subr.mxu0 0.0
    %2046 = vmatpush1.msra.mxu0 0.0
    %2047 = vmatprep.subr.mxu0 0.0
    %2048 = vmatpush1.msra.mxu0 0.0
    %2049 = vmatprep.subr.mxu0 0.0
    %2050 = vmatpush1.msra.mxu0 0.0
    %2051 = vmatprep.subr.mxu0 0.0
    %2052 = vmatpush1.msra.mxu0 0.0
    %2053 = vmatprep.subr.mxu0 0.0
    %2054 = vmatpush1.msra.mxu0 0.0
    %2055 = vmatprep.subr.mxu0 0.0
    %2056 = vmatpush1.msra.mxu0 0.0
    %2057 = vmatprep.subr.mxu0 0.0
    %2058 = vmatpush1.msra.mxu0 0.0
    %2059 = vmatprep.subr.mxu0 0.0
    %2060 = vmatpush1.msra.mxu0 0.0
    %2061 = vmatprep.mubr.f32.mxu0 0.0
    %2062 = vmatmul.mubr.f32.gmra.mrb[0].mxu0 %v1995
    %v2063 = vpop.f32.mrb[0].mxu0
    %v2064 = vadd.f32 0.0, %v2063
    %v2065 = vpop.f32.mrb[0].mxu0
    %2066 = vdwg.mxu0
    %v2068 = vsel %vm1950, %v1972, 0
    %2070 = vmatprep.subr.mxu0 0.0
    %2071 = vmatpush1.msra.mxu0 %v1973
    %2072 = vmatprep.subr.mxu0 0.0
    %2073 = vmatpush1.msra.mxu0 %v1974
    %2074 = vmatprep.subr.mxu0 0.0
    %2075 = vmatpush1.msra.mxu0 0.0
    %2076 = vmatprep.subr.mxu0 0.0
    %2077 = vmatpush1.msra.mxu0 0.0
    %2078 = vmatprep.subr.mxu0 0.0
    %2079 = vmatpush1.msra.mxu0 0.0
    %2080 = vmatprep.subr.mxu0 0.0
    %2081 = vmatpush1.msra.mxu0 0.0
    %2082 = vmatprep.subr.mxu0 0.0
    %2083 = vmatpush1.msra.mxu0 0.0
    %2084 = vmatprep.subr.mxu0 0.0
    %2085 = vmatpush1.msra.mxu0 0.0
    %2086 = vmatprep.subr.mxu0 0.0
    %2087 = vmatpush1.msra.mxu0 0.0
    %2088 = vmatprep.subr.mxu0 0.0
    %2089 = vmatpush1.msra.mxu0 0.0
    %2090 = vmatprep.subr.mxu0 0.0
    %2091 = vmatpush1.msra.mxu0 0.0
    %2092 = vmatprep.subr.mxu0 0.0
    %2093 = vmatpush1.msra.mxu0 0.0
    %2094 = vmatprep.subr.mxu0 0.0
    %2095 = vmatpush1.msra.mxu0 0.0
    %2096 = vmatprep.subr.mxu0 0.0
    %2097 = vmatpush1.msra.mxu0 0.0
    %2098 = vmatprep.subr.mxu0 0.0
    %2099 = vmatpush1.msra.mxu0 0.0
    %2100 = vmatprep.subr.mxu0 0.0
    %2101 = vmatpush1.msra.mxu0 0.0
    %2102 = vmatprep.subr.mxu0 0.0
    %2103 = vmatpush1.msra.mxu0 0.0
    %2104 = vmatprep.subr.mxu0 0.0
    %2105 = vmatpush1.msra.mxu0 0.0
    %2106 = vmatprep.subr.mxu0 0.0
    %2107 = vmatpush1.msra.mxu0 0.0
    %2108 = vmatprep.subr.mxu0 0.0
    %2109 = vmatpush1.msra.mxu0 0.0
    %2110 = vmatprep.subr.mxu0 0.0
    %2111 = vmatpush1.msra.mxu0 0.0
    %2112 = vmatprep.subr.mxu0 0.0
    %2113 = vmatpush1.msra.mxu0 0.0
    %2114 = vmatprep.subr.mxu0 0.0
    %2115 = vmatpush1.msra.mxu0 0.0
    %2116 = vmatprep.subr.mxu0 0.0
    %2117 = vmatpush1.msra.mxu0 0.0
    %2118 = vmatprep.subr.mxu0 0.0
    %2119 = vmatpush1.msra.mxu0 0.0
    %2120 = vmatprep.subr.mxu0 0.0
    %2121 = vmatpush1.msra.mxu0 0.0
    %2122 = vmatprep.subr.mxu0 0.0
    %2123 = vmatpush1.msra.mxu0 0.0
    %2124 = vmatprep.subr.mxu0 0.0
    %2125 = vmatpush1.msra.mxu0 0.0
    %2126 = vmatprep.subr.mxu0 0.0
    %2127 = vmatpush1.msra.mxu0 0.0
    %2128 = vmatprep.subr.mxu0 0.0
    %2129 = vmatpush1.msra.mxu0 0.0
    %2130 = vmatprep.subr.mxu0 0.0
    %2131 = vmatpush1.msra.mxu0 0.0
    %2132 = vmatprep.subr.mxu0 0.0
    %2133 = vmatpush1.msra.mxu0 0.0
    %2134 = vmatprep.mubr.f32.mxu0 0.0
    %2135 = vmatmul.mubr.f32.gmra.mrb[0].mxu0 %v2068
    %v2136 = vpop.f32.mrb[0].mxu0
    %v2137 = vadd.f32 %v2064, %v2136
    %v2138 = vpop.f32.mrb[0].mxu0
    %2139 = vdwg.mxu0
    %v2140 = vld [vmem:[#allocation4 + $0x8] sm:$0x1]
    %v2141 = vld [vmem:[#allocation4 + $0x9] sm:$0x1]
    %v2142 = vmax.f32 %v2140, %v2141
    %v2143 = vld [vmem:[#allocation4 + $0xc] sm:$0x1]
    %v2144 = vld [vmem:[#allocation4 + $0xd] sm:$0x1]
    %v2145 = vmax.f32 %v2143, %v2144
    %v2146 = vmax.f32 %v2142, %v2145
    %2147 = vst.msk [vmem:[#allocation5] sm:$0x1] %vm1962, %v2146
    %v2148 = vld [vmem:[#allocation4 + $0x18] sm:$0x1]
    %v2149 = vld [vmem:[#allocation4 + $0x19] sm:$0x1]
    %v2150 = vmax.f32 %v2148, %v2149
    %v2151 = vld [vmem:[#allocation4 + $0x1c] sm:$0x1]
    %v2152 = vld [vmem:[#allocation4 + $0x1d] sm:$0x1]
    %v2153 = vmax.f32 %v2151, %v2152
    %v2154 = vmax.f32 %v2150, %v2153
    %2155 = vst.msk [vmem:[#allocation5 + $0x1] sm:$0x1] %vm1962, %v2154
    %v2156 = vld [vmem:[#allocation5] sm:$0x3]
    %v2157 = vld [vmem:[%s5 + $0x20] sm:$0xff]
    %v2158 = vld [vmem:[%s5 + $0x28] sm:$0xff]
    %v2160 = vsel %vm1950, %v2156, 0
    %2162 = vmatprep.subr.mxu0 0.0
    %2163 = vmatpush1.msra.mxu0 %v2157
    %2164 = vmatprep.subr.mxu0 0.0
    %2165 = vmatpush1.msra.mxu0 %v2158
    %2166 = vmatprep.subr.mxu0 0.0
    %2167 = vmatpush1.msra.mxu0 0.0
    %2168 = vmatprep.subr.mxu0 0.0
    %2169 = vmatpush1.msra.mxu0 0.0
    %2170 = vmatprep.subr.mxu0 0.0
    %2171 = vmatpush1.msra.mxu0 0.0
    %2172 = vmatprep.subr.mxu0 0.0
    %2173 = vmatpush1.msra.mxu0 0.0
    %2174 = vmatprep.subr.mxu0 0.0
    %2175 = vmatpush1.msra.mxu0 0.0
    %2176 = vmatprep.subr.mxu0 0.0
    %2177 = vmatpush1.msra.mxu0 0.0
    %2178 = vmatprep.subr.mxu0 0.0
    %2179 = vmatpush1.msra.mxu0 0.0
    %2180 = vmatprep.subr.mxu0 0.0
    %2181 = vmatpush1.msra.mxu0 0.0
    %2182 = vmatprep.subr.mxu0 0.0
    %2183 = vmatpush1.msra.mxu0 0.0
    %2184 = vmatprep.subr.mxu0 0.0
    %2185 = vmatpush1.msra.mxu0 0.0
    %2186 = vmatprep.subr.mxu0 0.0
    %2187 = vmatpush1.msra.mxu0 0.0
    %2188 = vmatprep.subr.mxu0 0.0
    %2189 = vmatpush1.msra.mxu0 0.0
    %2190 = vmatprep.subr.mxu0 0.0
    %2191 = vmatpush1.msra.mxu0 0.0
    %2192 = vmatprep.subr.mxu0 0.0
    %2193 = vmatpush1.msra.mxu0 0.0
    %2194 = vmatprep.subr.mxu0 0.0
    %2195 = vmatpush1.msra.mxu0 0.0
    %2196 = vmatprep.subr.mxu0 0.0
    %2197 = vmatpush1.msra.mxu0 0.0
    %2198 = vmatprep.subr.mxu0 0.0
    %2199 = vmatpush1.msra.mxu0 0.0
    %2200 = vmatprep.subr.mxu0 0.0
    %2201 = vmatpush1.msra.mxu0 0.0
    %2202 = vmatprep.subr.mxu0 0.0
    %2203 = vmatpush1.msra.mxu0 0.0
    %2204 = vmatprep.subr.mxu0 0.0
    %2205 = vmatpush1.msra.mxu0 0.0
    %2206 = vmatprep.subr.mxu0 0.0
    %2207 = vmatpush1.msra.mxu0 0.0
    %2208 = vmatprep.subr.mxu0 0.0
    %2209 = vmatpush1.msra.mxu0 0.0
    %2210 = vmatprep.subr.mxu0 0.0
    %2211 = vmatpush1.msra.mxu0 0.0
    %2212 = vmatprep.subr.mxu0 0.0
    %2213 = vmatpush1.msra.mxu0 0.0
    %2214 = vmatprep.subr.mxu0 0.0
    %2215 = vmatpush1.msra.mxu0 0.0
    %2216 = vmatprep.subr.mxu0 0.0
    %2217 = vmatpush1.msra.mxu0 0.0
    %2218 = vmatprep.subr.mxu0 0.0
    %2219 = vmatpush1.msra.mxu0 0.0
    %2220 = vmatprep.subr.mxu0 0.0
    %2221 = vmatpush1.msra.mxu0 0.0
    %2222 = vmatprep.subr.mxu0 0.0
    %2223 = vmatpush1.msra.mxu0 0.0
    %2224 = vmatprep.subr.mxu0 0.0
    %2225 = vmatpush1.msra.mxu0 0.0
    %2226 = vmatprep.mubr.f32.mxu0 0.0
    %2227 = vmatmul.mubr.f32.gmra.mrb[0].mxu0 %v2160
    %v2228 = vpop.f32.mrb[0].mxu0
    %v2229 = vadd.f32 0.0, %v2228
    %v2230 = vpop.f32.mrb[0].mxu0
    %2231 = vdwg.mxu0
    %v2232 = vadd.f32 %v2137, %v2229
    %v2233 = vld [vmem:[#allocation4 + $0xa] sm:$0x1]
    %v2234 = vld [vmem:[#allocation4 + $0xb] sm:$0x1]
    %v2235 = vmax.f32 %v2233, %v2234
    %v2236 = vld [vmem:[#allocation4 + $0xe] sm:$0x1]
    %v2237 = vld [vmem:[#allocation4 + $0xf] sm:$0x1]
    %v2238 = vmax.f32 %v2236, %v2237
    %v2239 = vmax.f32 %v2235, %v2238
    %2240 = vst.msk [vmem:[#allocation5] sm:$0x1] %vm1962, %v2239
    %v2241 = vld [vmem:[#allocation4 + $0x1a] sm:$0x1]
    %v2242 = vld [vmem:[#allocation4 + $0x1b] sm:$0x1]
    %v2243 = vmax.f32 %v2241, %v2242
    %v2244 = vld [vmem:[#allocation4 + $0x1e] sm:$0x1]
    %v2245 = vld [vmem:[#allocation4 + $0x1f] sm:$0x1]
    %v2246 = vmax.f32 %v2244, %v2245
    %v2247 = vmax.f32 %v2243, %v2246
    %2248 = vst.msk [vmem:[#allocation5 + $0x1] sm:$0x1] %vm1962, %v2247
    %v2249 = vld [vmem:[#allocation5] sm:$0x3]
    %v2250 = vld [vmem:[%s5 + $0x30] sm:$0xff]
    %v2251 = vld [vmem:[%s5 + $0x38] sm:$0xff]
    %v2253 = vsel %vm1950, %v2249, 0
    %2255 = vmatprep.subr.mxu0 0.0
    %2256 = vmatpush1.msra.mxu0 %v2250
    %2257 = vmatprep.subr.mxu0 0.0
    %2258 = vmatpush1.msra.mxu0 %v2251
    %2259 = vmatprep.subr.mxu0 0.0
    %2260 = vmatpush1.msra.mxu0 0.0
    %2261 = vmatprep.subr.mxu0 0.0
    %2262 = vmatpush1.msra.mxu0 0.0
    %2263 = vmatprep.subr.mxu0 0.0
    %2264 = vmatpush1.msra.mxu0 0.0
    %2265 = vmatprep.subr.mxu0 0.0
    %2266 = vmatpush1.msra.mxu0 0.0
    %2267 = vmatprep.subr.mxu0 0.0
    %2268 = vmatpush1.msra.mxu0 0.0
    %2269 = vmatprep.subr.mxu0 0.0
    %2270 = vmatpush1.msra.mxu0 0.0
    %2271 = vmatprep.subr.mxu0 0.0
    %2272 = vmatpush1.msra.mxu0 0.0
    %2273 = vmatprep.subr.mxu0 0.0
    %2274 = vmatpush1.msra.mxu0 0.0
    %2275 = vmatprep.subr.mxu0 0.0
    %2276 = vmatpush1.msra.mxu0 0.0
    %2277 = vmatprep.subr.mxu0 0.0
    %2278 = vmatpush1.msra.mxu0 0.0
    %2279 = vmatprep.subr.mxu0 0.0
    %2280 = vmatpush1.msra.mxu0 0.0
    %2281 = vmatprep.subr.mxu0 0.0
    %2282 = vmatpush1.msra.mxu0 0.0
    %2283 = vmatprep.subr.mxu0 0.0
    %2284 = vmatpush1.msra.mxu0 0.0
    %2285 = vmatprep.subr.mxu0 0.0
    %2286 = vmatpush1.msra.mxu0 0.0
    %2287 = vmatprep.subr.mxu0 0.0
    %2288 = vmatpush1.msra.mxu0 0.0
    %2289 = vmatprep.subr.mxu0 0.0
    %2290 = vmatpush1.msra.mxu0 0.0
    %2291 = vmatprep.subr.mxu0 0.0
    %2292 = vmatpush1.msra.mxu0 0.0
    %2293 = vmatprep.subr.mxu0 0.0
    %2294 = vmatpush1.msra.mxu0 0.0
    %2295 = vmatprep.subr.mxu0 0.0
    %2296 = vmatpush1.msra.mxu0 0.0
    %2297 = vmatprep.subr.mxu0 0.0
    %2298 = vmatpush1.msra.mxu0 0.0
    %2299 = vmatprep.subr.mxu0 0.0
    %2300 = vmatpush1.msra.mxu0 0.0
    %2301 = vmatprep.subr.mxu0 0.0
    %2302 = vmatpush1.msra.mxu0 0.0
    %2303 = vmatprep.subr.mxu0 0.0
    %2304 = vmatpush1.msra.mxu0 0.0
    %2305 = vmatprep.subr.mxu0 0.0
    %2306 = vmatpush1.msra.mxu0 0.0
    %2307 = vmatprep.subr.mxu0 0.0
    %2308 = vmatpush1.msra.mxu0 0.0
    %2309 = vmatprep.subr.mxu0 0.0
    %2310 = vmatpush1.msra.mxu0 0.0
    %2311 = vmatprep.subr.mxu0 0.0
    %2312 = vmatpush1.msra.mxu0 0.0
    %2313 = vmatprep.subr.mxu0 0.0
    %2314 = vmatpush1.msra.mxu0 0.0
    %2315 = vmatprep.subr.mxu0 0.0
    %2316 = vmatpush1.msra.mxu0 0.0
    %2317 = vmatprep.subr.mxu0 0.0
    %2318 = vmatpush1.msra.mxu0 0.0
    %2319 = vmatprep.mubr.f32.mxu0 0.0
    %2320 = vmatmul.mubr.f32.gmra.mrb[0].mxu0 %v2253
    %v2321 = vpop.f32.mrb[0].mxu0
    %v2322 = vadd.f32 0.0, %v2321
    %v2323 = vpop.f32.mrb[0].mxu0
    %2324 = vdwg.mxu0
    %v2325 = vadd.f32 %v2232, %v2322
    %v2326 = vld [vmem:[%s6] sm:$0x1]
    %v2328 = vlaneseq
    %v2329 = vshrl.u32 %v2328, 7
    %v2330 = vsub.s32 0, %v2329
    %v2331 = vrot.slane %v2326, %v2330
    %v2333 = vadd.f32 %v2325, %v2331
    %v2334 = vld [vmem:[%s7] sm:$0xff]
    %v2335 = vld [vmem:[%s7 + $0x8] sm:$0xff]
    %v2336 = vld [vmem:[%s7 + $0x10] sm:$0xff]
    %v2337 = vld [vmem:[%s7 + $0x18] sm:$0xff]
    %v2338 = vld [vmem:[%s8] sm:$0x1]
    %v2340 = vlaneseq
    %v2341 = vshrl.u32 %v2340, 7
    %v2342 = vsub.s32 0, %v2341
    %v2343 = vrot.slane %v2338, %v2342
    %vm2345 = vcmask 261120
    %v2347 = vsel %vm2345, %v2333, 0
    %2349 = vmatprep.subr.mxu0 0.0
    %2350 = vmatpush1.msra.mxu0 %v2334
    %2351 = vmatprep.subr.mxu0 0.0
    %2352 = vmatpush1.msra.mxu0 %v2335
    %2353 = vmatprep.subr.mxu0 0.0
    %2354 = vmatpush1.msra.mxu0 %v2336
    %2355 = vmatprep.subr.mxu0 0.0
    %2356 = vmatpush1.msra.mxu0 %v2337
    %2357 = vmatprep.subr.mxu0 0.0
    %2358 = vmatpush1.msra.mxu0 0.0
    %2359 = vmatprep.subr.mxu0 0.0
    %2360 = vmatpush1.msra.mxu0 0.0
    %2361 = vmatprep.subr.mxu0 0.0
    %2362 = vmatpush1.msra.mxu0 0.0
    %2363 = vmatprep.subr.mxu0 0.0
    %2364 = vmatpush1.msra.mxu0 0.0
    %2365 = vmatprep.subr.mxu0 0.0
    %2366 = vmatpush1.msra.mxu0 0.0
    %2367 = vmatprep.subr.mxu0 0.0
    %2368 = vmatpush1.msra.mxu0 0.0
    %2369 = vmatprep.subr.mxu0 0.0
    %2370 = vmatpush1.msra.mxu0 0.0
    %2371 = vmatprep.subr.mxu0 0.0
    %2372 = vmatpush1.msra.mxu0 0.0
    %2373 = vmatprep.subr.mxu0 0.0
    %2374 = vmatpush1.msra.mxu0 0.0
    %2375 = vmatprep.subr.mxu0 0.0
    %2376 = vmatpush1.msra.mxu0 0.0
    %2377 = vmatprep.subr.mxu0 0.0
    %2378 = vmatpush1.msra.mxu0 0.0
    %2379 = vmatprep.subr.mxu0 0.0
    %2380 = vmatpush1.msra.mxu0 0.0
    %2381 = vmatprep.subr.mxu0 0.0
    %2382 = vmatpush1.msra.mxu0 0.0
    %2383 = vmatprep.subr.mxu0 0.0
    %2384 = vmatpush1.msra.mxu0 0.0
    %2385 = vmatprep.subr.mxu0 0.0
    %2386 = vmatpush1.msra.mxu0 0.0
    %2387 = vmatprep.subr.mxu0 0.0
    %2388 = vmatpush1.msra.mxu0 0.0
    %2389 = vmatprep.subr.mxu0 0.0
    %2390 = vmatpush1.msra.mxu0 0.0
    %2391 = vmatprep.subr.mxu0 0.0
    %2392 = vmatpush1.msra.mxu0 0.0
    %2393 = vmatprep.subr.mxu0 0.0
    %2394 = vmatpush1.msra.mxu0 0.0
    %2395 = vmatprep.subr.mxu0 0.0
    %2396 = vmatpush1.msra.mxu0 0.0
    %2397 = vmatprep.subr.mxu0 0.0
    %2398 = vmatpush1.msra.mxu0 0.0
    %2399 = vmatprep.subr.mxu0 0.0
    %2400 = vmatpush1.msra.mxu0 0.0
    %2401 = vmatprep.subr.mxu0 0.0
    %2402 = vmatpush1.msra.mxu0 0.0
    %2403 = vmatprep.subr.mxu0 0.0
    %2404 = vmatpush1.msra.mxu0 0.0
    %2405 = vmatprep.subr.mxu0 0.0
    %2406 = vmatpush1.msra.mxu0 0.0
    %2407 = vmatprep.subr.mxu0 0.0
    %2408 = vmatpush1.msra.mxu0 0.0
    %2409 = vmatprep.subr.mxu0 0.0
    %2410 = vmatpush1.msra.mxu0 0.0
    %2411 = vmatprep.subr.mxu0 0.0
    %2412 = vmatpush1.msra.mxu0 0.0
    %2413 = vmatprep.mubr.f32.mxu0 0.0
    %2414 = vmatmul.mubr.f32.gmra.mrb[0].mxu0 %v2347
    %v2415 = vpop.f32.mrb[0].mxu0
    %v2416 = vadd.f32 %v2343, %v2415
    %v2417 = vpop.f32.mrb[0].mxu0
    %2418 = vdwg.mxu0
    %vm2419 = vcmask 74752
    %2420 = vst.msk [vmem:[#allocation6] sm:$0x3] %vm2419, %v2416
    // Predicated region
    $region38: #{cnn_forward_pallas.1} parent=1 // pred_check
      _
    $region39: #{cnn_forward_pallas.1} parent=1 // pred_check_branch
      %2422 = sbr.rel (0) target = $region41
    $region40: #{cnn_forward_pallas.1} parent=1 // pred_region
      %s2424 = ssub.s32 32, 32
      %2425 = vsyncadd [#allocation7], %s2424
      %s2427 = sshll.u32 [#allocation6], 4
      %s2428 = int_to_ptr.vmem [resolvable:$true] %s2427
      %2430 = dma.vmem_to_hbm [thread:$0]  %s2428, 32, %s9, [#allocation7]
    $region41: #{cnn_forward_pallas.1} parent=1 // pred_fallthru
      _
    // Predicated region
    $region42: #{cnn_forward_pallas.1} parent=1 // pred_check
      _
    $region43: #{cnn_forward_pallas.1} parent=1 // pred_check_branch
      %2432 = sbr.rel (0) target = $region45
    $region44: #{cnn_forward_pallas.1} parent=1 // pred_region
      %2433 = dma.done [#allocation7], 32
    $region45: #{cnn_forward_pallas.1} parent=1 // pred_fallthru
      _
    %2434 = vsyncpa [#allocation7], 1

</llo_original>
